<compile_context>
chip_gen: v6e
topology: v6e:2x2x1
jax: 0.10.0
libtpu: 0.0.40
codegen_flags: <defaults>
</compile_context>

<pallas_src>
import functools

import jax
import jax.numpy as jnp
from jax.experimental import pallas as pl
from jax.experimental.pallas import tpu as pltpu


# ----------------------------- spike helper --------------------------------
def _spike(x):
    # Multispike (eval): floor(clamp(x, 0, 8) + 0.5) / 8 -- fp32 elementwise (VPU).
    return jnp.floor(jnp.clip(x, 0.0, 8.0) + 0.5) * 0.125


# ------------------------------ fused kernel --------------------------------
def ms_block_kernel(x_ref, wqkv_ref, bqkv_ref, wproj_ref, bproj_ref,
                    wfc1_ref, bfc1_ref, wfc2_ref, bfc2_ref, o_ref, att_ref,
                    *, dim, c_v, num_heads, group, n):
    """One grid step: G samples packed along lanes as a (C, L=G*N) slab."""
    x = x_ref[...]                                        # (C, L) fp32

    # ---- fused q/k/v 1x1 conv (+folded BN): one lane-dense bf16 matmul ------
    xs = _spike(x).astype(jnp.bfloat16)                   # spike levels k/8 exact in bf16
    qkv = jnp.dot(wqkv_ref[...], xs,
                  preferred_element_type=jnp.float32) + bqkv_ref[...]   # (2C+Cv, L) fp32

    qs = _spike(qkv[:dim])                                # (C,  L) fp32
    ks = _spike(qkv[dim:2 * dim])                         # (C,  L) fp32
    vs = _spike(qkv[2 * dim:])                            # (Cv, L) fp32

    # Transpose k ONCE per step (fp32) so the per-head v @ k^T dot is a plain
    # NN matmul instead of paying an implicit per-head transpose.
    ks_t = ks.T                                           # (L, C) fp32

    ch = dim // num_heads
    cvh = c_v // num_heads

    # ---- spike-driven linear attention: per-sample, per-head (unrolled) -----
    # The contraction over N must not mix samples, so attention works on
    # N-wide column slices.  Head/sample slices are taken in fp32 (sublane
    # aligned) and cast to bf16 right before each MXU dot.
    for g in range(group):
        col = slice(g * n, (g + 1) * n)
        for h in range(num_heads):
            q_h = qs[h * ch:(h + 1) * ch, col].astype(jnp.bfloat16)      # (Ch,  N)
            k_h = ks_t[col, h * ch:(h + 1) * ch].astype(jnp.bfloat16)    # (N,   Ch)
            v_h = vs[h * cvh:(h + 1) * cvh, col].astype(jnp.bfloat16)    # (Cvh, N)
            vk = jnp.dot(v_h, k_h,
                         preferred_element_type=jnp.float32)             # (Cvh, Ch)
            # scale*2 (scale=0.125) applied on the tiny vk tile, bf16 into MXU.
            out_h = jnp.dot((vk * 0.25).astype(jnp.bfloat16), q_h,
                            preferred_element_type=jnp.float32)          # (Cvh, N)
            # Write straight into the lane-dense attention slab (no concat copy).
            att_ref[h * cvh:(h + 1) * cvh, col] = out_h

    # ---- proj conv (+BN, layer_scale1 folded) + residual ---------------------
    a_s = _spike(att_ref[...]).astype(jnp.bfloat16)       # (Cv, L)
    proj = jnp.dot(wproj_ref[...], a_s,
                   preferred_element_type=jnp.float32) + bproj_ref[...]
    x1 = x + proj                                         # (C, L)

    # ---- MLP (fc1 + fc2, BN + layer_scale2 folded) + residual ----------------
    x1s = _spike(x1).astype(jnp.bfloat16)
    hid = jnp.dot(wfc1_ref[...], x1s,
                  preferred_element_type=jnp.float32) + bfc1_ref[...]
    hs = _spike(hid).astype(jnp.bfloat16)
    mlp = jnp.dot(wfc2_ref[...], hs,
                  preferred_element_type=jnp.float32) + bfc2_ref[...]

    o_ref[...] = (x1 + mlp).astype(o_ref.dtype)


# --------------------------- VMEM sizing helpers -----------------------------
def _step_vmem_bytes(l, c, c_v, hidden):
    """Rough per-grid-step VMEM footprint (bytes) for a lane block of width l."""
    f32, bf16 = 4, 2
    io = 2 * 2 * c * l * f32                                   # x + out, double-buffered
    inter = ((2 * c + c_v) + hidden + c_v + 2 * c) * l * f32   # qkv, hid, att scratch, proj/x1
    spiked = (c + c_v + hidden + c) * l * bf16                 # bf16 spiked activations
    return io + inter + spiked


def _weight_vmem_bytes(c, c_v, hidden):
    """Resident folded weights/biases (BlockSpec inputs are double-buffered)."""
    w = ((2 * c + c_v) * c + c * c_v + hidden * c + c * hidden) * 2    # bf16
    b = (2 * c + c_v + c + hidden + c) * 4                             # fp32
    return 2 * (w + b)


def _choose_group(tb, n, c, c_v, hidden, budget_bytes=20 << 20):
    """Samples-per-step G: lane width G*N a multiple of 128 when possible,
    step footprint under a v7x-safe budget, and >= 2 grid steps when possible."""
    fits = [g for g in range(1, tb + 1)
            if tb % g == 0 and _step_vmem_bytes(g * n, c, c_v, hidden) <= budget_bytes]
    if not fits:
        return 1
    aligned = [g for g in fits if (g * n) % 128 == 0]
    pool = aligned if aligned else fits
    multi_step = [g for g in pool if tb // g >= 2]
    return max(multi_step) if multi_step else max(pool)


# ------------------------------ pallas wrapper -------------------------------
@functools.partial(jax.jit, static_argnames=("num_heads", "n", "group"))
def _ms_block_lanes(x_cm, params, num_heads, n, group):
    # x_cm: (C, TB*N) fp32, channel-major with samples packed along the lane axis.
    C, l_total = x_cm.shape
    wqkv, bqkv = params["qkv"]
    wproj, bproj = params["proj"]
    wfc1, bfc1 = params["fc1"]
    wfc2, bfc2 = params["fc2"]
    c_v = wproj.shape[1]
    hidden = wfc1.shape[0]
    L = group * n
    steps = l_total // L

    kernel = functools.partial(ms_block_kernel, dim=C, c_v=c_v,
                               num_heads=num_heads, group=group, n=n)

    def const(a):
        # weights / biases: constant block index -> fetched once, VMEM-resident.
        # (On v7x, pipeline_mode=pl.Buffered(1) or a one-shot manual copy into
        #  scratch would additionally halve the resident double-buffer footprint.)
        return pl.BlockSpec(a.shape, lambda t: (0, 0))

    vmem_limit = int(min(64 << 20,                      # keep under v7x's 64 MiB VMEM
                         max(32 << 20,
                             2 * (_step_vmem_bytes(L, C, c_v, hidden)
                                  + _weight_vmem_bytes(C, c_v, hidden)))))

    return pl.pallas_call(
        kernel,
        out_shape=jax.ShapeDtypeStruct((C, l_total), x_cm.dtype),
        grid=(steps,),
        in_specs=[
            pl.BlockSpec((C, L), lambda t: (0, t)),      # x slab (streamed, lane-dense)
            const(wqkv), const(bqkv),                    # fused q/k/v (folded BN)
            const(wproj), const(bproj),                  # proj (folded BN + layer_scale1)
            const(wfc1), const(bfc1),                    # fc1 (folded BN)
            const(wfc2), const(bfc2),                    # fc2 (folded BN + layer_scale2)
        ],
        out_specs=pl.BlockSpec((C, L), lambda t: (0, t)),
        scratch_shapes=[pltpu.VMEM((c_v, L), jnp.float32)],   # attention output slab
        compiler_params=pltpu.CompilerParams(
            dimension_semantics=("parallel",),           # shardable across v7x's 2 TCs
            vmem_limit_bytes=vmem_limit),
    )(x_cm, wqkv, bqkv, wproj, bproj, wfc1, bfc1, wfc2, bfc2)


def ms_block_forward(x, params, num_heads, group=None):
    # x: (T, B, C, H, W) float32
    T, B, C, H, W = x.shape
    N, TB = H * W, T * B
    c_v = params["proj"][0].shape[1]
    hidden = params["fc1"][0].shape[0]
    if group is None:
        group = _choose_group(TB, N, C, c_v, hidden)
    # Layout plumbing only: pack samples along the lane axis so the kernel's
    # matmuls and stores see a dense (multiple-of-128) last dimension.
    x_cm = jnp.transpose(x.reshape(TB, C, N), (1, 0, 2)).reshape(C, TB * N)
    out = _ms_block_lanes(x_cm, params, num_heads=num_heads, n=N, group=group)
    return jnp.transpose(out.reshape(C, TB, N), (1, 0, 2)).reshape(T, B, C, H, W)


# ------------------------------ parameter setup ------------------------------
def fold_conv_bn(w, conv_b, gamma, beta, mean, var, eps=1e-5, out_scale=None):
    """Fold 1x1 Conv1d + BatchNorm1d (eval mode) [+ per-out-channel layer_scale]
    into (W_fold bf16, b_fold fp32)."""
    inv = gamma / jnp.sqrt(var + eps)
    w_f = w * inv[:, None]
    b_f = (conv_b - mean) * inv + beta
    if out_scale is not None:                      # ls*(W@a+b) = (diag(ls)W)@a + ls*b
        w_f = w_f * out_scale[:, None]
        b_f = b_f * out_scale
    # bf16 weights: half the resident VMEM + full-rate MXU; accumulation stays fp32.
    return w_f.astype(jnp.bfloat16), b_f[:, None].astype(jnp.float32)


def make_conv_bn(key, cout, cin, conv_bias, out_scale=None):
    k = jax.random.split(key, 6)
    w = 0.02 * jax.random.normal(k[0], (cout, cin), jnp.float32)
    b = (0.02 * jax.random.normal(k[1], (cout,), jnp.float32)
         if conv_bias else jnp.zeros((cout,), jnp.float32))
    gamma = 1.0 + 0.1 * jax.random.normal(k[2], (cout,), jnp.float32)
    beta = 0.1 * jax.random.normal(k[3], (cout,), jnp.float32)
    mean = 0.1 * jax.random.normal(k[4], (cout,), jnp.float32)
    var = 1.0 + 0.1 * jax.random.uniform(k[5], (cout,), jnp.float32)
    return fold_conv_bn(w, b, gamma, beta, mean, var, out_scale=out_scale)


def init_ms_block_params(key, dim, num_heads, mlp_ratio=4.0, lamda_ratio=4,
                         init_values=1e-6):
    hidden = int(dim * mlp_ratio)
    c_v = int(dim * lamda_ratio)
    keys = jax.random.split(key, 6)
    ls1 = init_values * jnp.ones((dim,), jnp.float32)
    ls2 = init_values * jnp.ones((dim,), jnp.float32)
    wq, bq = make_conv_bn(keys[0], dim, dim, conv_bias=False)
    wk, bk = make_conv_bn(keys[1], dim, dim, conv_bias=False)
    wv, bv = make_conv_bn(keys[2], c_v, dim, conv_bias=False)
    params = {
        # q/k/v weights concatenated along Cout -> single qkv matmul in-kernel
        "qkv": (jnp.concatenate([wq, wk, wv], axis=0),
                jnp.concatenate([bq, bk, bv], axis=0)),
        # layer_scale1 / layer_scale2 folded straight into proj / fc2
        "proj": make_conv_bn(keys[3], dim, c_v, conv_bias=False, out_scale=ls1),
        "fc1": make_conv_bn(keys[4], hidden, dim, conv_bias=True),
        "fc2": make_conv_bn(keys[5], dim, hidden, conv_bias=True, out_scale=ls2),
    }
    return params


# ----------------------------------- main ------------------------------------
if __name__ == "__main__":
    T, B, dim, H, W = 2, 2, 32, 8, 8
    num_heads = 4

    key = jax.random.PRNGKey(0)
    kx, kp = jax.random.split(key)
    x = jax.random.normal(kx, (T, B, dim, H, W), jnp.float32) * 4.0

    params = init_ms_block_params(kp, dim, num_heads)

    out = ms_block_forward(x, params, num_heads)
    out = jax.block_until_ready(out)

    assert out.shape == (T, B, dim, H, W)
    assert out.dtype == jnp.float32
    assert bool(jnp.all(jnp.isfinite(out)))
    print("KERNEL_OK")
</pallas_src>

<mosaic_0001>
module attributes {stable_mosaic.version = 11 : i64} {
  func.func @ms_block_kernel(%arg0: i32, %arg1: memref<32x128xf32, #tpu.memory_space<vmem>>, %arg2: memref<192x32xbf16, #tpu.memory_space<vmem>>, %arg3: memref<192x1xf32, #tpu.memory_space<vmem>>, %arg4: memref<32x128xbf16, #tpu.memory_space<vmem>>, %arg5: memref<32x1xf32, #tpu.memory_space<vmem>>, %arg6: memref<128x32xbf16, #tpu.memory_space<vmem>>, %arg7: memref<128x1xf32, #tpu.memory_space<vmem>>, %arg8: memref<32x128xbf16, #tpu.memory_space<vmem>>, %arg9: memref<32x1xf32, #tpu.memory_space<vmem>>, %arg10: memref<32x128xf32, #tpu.memory_space<vmem>>, %arg11: memref<128x128xf32, #tpu.memory_space<vmem>>) attributes {dimension_semantics = [#tpu.dimension_semantics<parallel>], iteration_bounds = array<i64: 2>, scalar_prefetch = 0 : i64, scratch_operands = 1 : i64, tpu.core_type = #tpu.core_type<tc>, window_params = [{transform_indices = @transform_0, window_bounds = array<i64: 32, 128>}, {pipeline_mode = #tpu.pipeline_mode<synchronous>, transform_indices = @transform_1, window_bounds = array<i64: 192, 32>}, {pipeline_mode = #tpu.pipeline_mode<synchronous>, transform_indices = @transform_2, window_bounds = array<i64: 192, 1>}, {pipeline_mode = #tpu.pipeline_mode<synchronous>, transform_indices = @transform_3, window_bounds = array<i64: 32, 128>}, {pipeline_mode = #tpu.pipeline_mode<synchronous>, transform_indices = @transform_4, window_bounds = array<i64: 32, 1>}, {pipeline_mode = #tpu.pipeline_mode<synchronous>, transform_indices = @transform_5, window_bounds = array<i64: 128, 32>}, {pipeline_mode = #tpu.pipeline_mode<synchronous>, transform_indices = @transform_6, window_bounds = array<i64: 128, 1>}, {pipeline_mode = #tpu.pipeline_mode<synchronous>, transform_indices = @transform_7, window_bounds = array<i64: 32, 128>}, {pipeline_mode = #tpu.pipeline_mode<synchronous>, transform_indices = @transform_8, window_bounds = array<i64: 32, 1>}, {transform_indices = @transform_9, window_bounds = array<i64: 32, 128>}]} {
    %c0 = arith.constant 0 : index
    %c0_0 = arith.constant 0 : index
    %0 = vector.load %arg1[%c0, %c0_0] : memref<32x128xf32, #tpu.memory_space<vmem>>, vector<32x128xf32>
    %cst = arith.constant 0.000000e+00 : f32
    %cst_1 = arith.constant 8.000000e+00 : f32
    %1 = vector.broadcast %cst : f32 to vector<32x128xf32>
    %2 = arith.maximumf %1, %0 : vector<32x128xf32>
    %3 = vector.broadcast %cst_1 : f32 to vector<32x128xf32>
    %4 = arith.minimumf %3, %2 : vector<32x128xf32>
    %cst_2 = arith.constant 5.000000e-01 : f32
    %5 = vector.broadcast %cst_2 : f32 to vector<32x128xf32>
    %6 = arith.addf %4, %5 : vector<32x128xf32>
    %7 = math.floor %6 : vector<32x128xf32>
    %cst_3 = arith.constant 1.250000e-01 : f32
    %8 = vector.broadcast %cst_3 : f32 to vector<32x128xf32>
    %9 = arith.mulf %7, %8 : vector<32x128xf32>
    %10 = arith.truncf %9 : vector<32x128xf32> to vector<32x128xbf16>
    %c0_4 = arith.constant 0 : index
    %c0_5 = arith.constant 0 : index
    %11 = vector.load %arg2[%c0_4, %c0_5] : memref<192x32xbf16, #tpu.memory_space<vmem>>, vector<192x32xbf16>
    %cst_6 = arith.constant dense<0.000000e+00> : vector<192x128xf32>
    %12 = tpu.matmul %11, %10, %cst_6 {dimension_numbers = #tpu.dot_dimension_numbers<[1], [0], [0], [1], [0, 0, 1, 1], [], []>} : vector<192x32xbf16>, vector<32x128xbf16>, vector<192x128xf32> -> vector<192x128xf32>
    %c0_7 = arith.constant 0 : index
    %c0_8 = arith.constant 0 : index
    %13 = vector.load %arg3[%c0_7, %c0_8] : memref<192x1xf32, #tpu.memory_space<vmem>>, vector<192x1xf32>
    %14 = vector.broadcast %13 : vector<192x1xf32> to vector<192x128xf32>
    %15 = arith.addf %12, %14 : vector<192x128xf32>
    %16 = vector.extract_strided_slice %15 {offsets = [0, 0], sizes = [32, 128], strides = [1, 1]} : vector<192x128xf32> to vector<32x128xf32>
    %cst_9 = arith.constant 0.000000e+00 : f32
    %cst_10 = arith.constant 8.000000e+00 : f32
    %17 = vector.broadcast %cst_9 : f32 to vector<32x128xf32>
    %18 = arith.maximumf %17, %16 : vector<32x128xf32>
    %19 = vector.broadcast %cst_10 : f32 to vector<32x128xf32>
    %20 = arith.minimumf %19, %18 : vector<32x128xf32>
    %cst_11 = arith.constant 5.000000e-01 : f32
    %21 = vector.broadcast %cst_11 : f32 to vector<32x128xf32>
    %22 = arith.addf %20, %21 : vector<32x128xf32>
    %23 = math.floor %22 : vector<32x128xf32>
    %cst_12 = arith.constant 1.250000e-01 : f32
    %24 = vector.broadcast %cst_12 : f32 to vector<32x128xf32>
    %25 = arith.mulf %23, %24 : vector<32x128xf32>
    %26 = vector.extract_strided_slice %15 {offsets = [32, 0], sizes = [32, 128], strides = [1, 1]} : vector<192x128xf32> to vector<32x128xf32>
    %cst_13 = arith.constant 0.000000e+00 : f32
    %cst_14 = arith.constant 8.000000e+00 : f32
    %27 = vector.broadcast %cst_13 : f32 to vector<32x128xf32>
    %28 = arith.maximumf %27, %26 : vector<32x128xf32>
    %29 = vector.broadcast %cst_14 : f32 to vector<32x128xf32>
    %30 = arith.minimumf %29, %28 : vector<32x128xf32>
    %cst_15 = arith.constant 5.000000e-01 : f32
    %31 = vector.broadcast %cst_15 : f32 to vector<32x128xf32>
    %32 = arith.addf %30, %31 : vector<32x128xf32>
    %33 = math.floor %32 : vector<32x128xf32>
    %cst_16 = arith.constant 1.250000e-01 : f32
    %34 = vector.broadcast %cst_16 : f32 to vector<32x128xf32>
    %35 = arith.mulf %33, %34 : vector<32x128xf32>
    %36 = vector.extract_strided_slice %15 {offsets = [64, 0], sizes = [128, 128], strides = [1, 1]} : vector<192x128xf32> to vector<128x128xf32>
    %cst_17 = arith.constant 0.000000e+00 : f32
    %cst_18 = arith.constant 8.000000e+00 : f32
    %37 = vector.broadcast %cst_17 : f32 to vector<128x128xf32>
    %38 = arith.maximumf %37, %36 : vector<128x128xf32>
    %39 = vector.broadcast %cst_18 : f32 to vector<128x128xf32>
    %40 = arith.minimumf %39, %38 : vector<128x128xf32>
    %cst_19 = arith.constant 5.000000e-01 : f32
    %41 = vector.broadcast %cst_19 : f32 to vector<128x128xf32>
    %42 = arith.addf %40, %41 : vector<128x128xf32>
    %43 = math.floor %42 : vector<128x128xf32>
    %cst_20 = arith.constant 1.250000e-01 : f32
    %44 = vector.broadcast %cst_20 : f32 to vector<128x128xf32>
    %45 = arith.mulf %43, %44 : vector<128x128xf32>
    %46 = tpu.transpose %35, [1, 0] : vector<32x128xf32> -> vector<128x32xf32>
    %47 = vector.extract_strided_slice %25 {offsets = [0, 0], sizes = [8, 64], strides = [1, 1]} : vector<32x128xf32> to vector<8x64xf32>
    %48 = arith.truncf %47 : vector<8x64xf32> to vector<8x64xbf16>
    %49 = vector.extract_strided_slice %46 {offsets = [0, 0], sizes = [64, 8], strides = [1, 1]} : vector<128x32xf32> to vector<64x8xf32>
    %50 = arith.truncf %49 : vector<64x8xf32> to vector<64x8xbf16>
    %51 = vector.extract_strided_slice %45 {offsets = [0, 0], sizes = [32, 64], strides = [1, 1]} : vector<128x128xf32> to vector<32x64xf32>
    %52 = arith.truncf %51 : vector<32x64xf32> to vector<32x64xbf16>
    %cst_21 = arith.constant dense<0.000000e+00> : vector<32x8xf32>
    %53 = tpu.matmul %52, %50, %cst_21 {dimension_numbers = #tpu.dot_dimension_numbers<[1], [0], [0], [1], [0, 0, 1, 1], [], []>} : vector<32x64xbf16>, vector<64x8xbf16>, vector<32x8xf32> -> vector<32x8xf32>
    %cst_22 = arith.constant 2.500000e-01 : f32
    %54 = vector.broadcast %cst_22 : f32 to vector<32x8xf32>
    %55 = arith.mulf %53, %54 : vector<32x8xf32>
    %56 = arith.truncf %55 : vector<32x8xf32> to vector<32x8xbf16>
    %cst_23 = arith.constant dense<0.000000e+00> : vector<32x64xf32>
    %57 = tpu.matmul %56, %48, %cst_23 {dimension_numbers = #tpu.dot_dimension_numbers<[1], [0], [0], [1], [0, 0, 1, 1], [], []>} : vector<32x8xbf16>, vector<8x64xbf16>, vector<32x64xf32> -> vector<32x64xf32>
    %c0_24 = arith.constant 0 : index
    %c0_25 = arith.constant 0 : index
    %58 = vector.load %arg11[%c0_24, %c0_25] : memref<128x128xf32, #tpu.memory_space<vmem>>, vector<32x64xf32>
    tpu.vector_store %arg11[%c0_24, %c0_25], %57 {strides = array<i32>} : memref<128x128xf32, #tpu.memory_space<vmem>>, vector<32x64xf32>,
    %59 = vector.extract_strided_slice %25 {offsets = [8, 0], sizes = [8, 64], strides = [1, 1]} : vector<32x128xf32> to vector<8x64xf32>
    %60 = arith.truncf %59 : vector<8x64xf32> to vector<8x64xbf16>
    %61 = vector.extract_strided_slice %46 {offsets = [0, 8], sizes = [64, 8], strides = [1, 1]} : vector<128x32xf32> to vector<64x8xf32>
    %62 = arith.truncf %61 : vector<64x8xf32> to vector<64x8xbf16>
    %63 = vector.extract_strided_slice %45 {offsets = [32, 0], sizes = [32, 64], strides = [1, 1]} : vector<128x128xf32> to vector<32x64xf32>
    %64 = arith.truncf %63 : vector<32x64xf32> to vector<32x64xbf16>
    %cst_26 = arith.constant dense<0.000000e+00> : vector<32x8xf32>
    %65 = tpu.matmul %64, %62, %cst_26 {dimension_numbers = #tpu.dot_dimension_numbers<[1], [0], [0], [1], [0, 0, 1, 1], [], []>} : vector<32x64xbf16>, vector<64x8xbf16>, vector<32x8xf32> -> vector<32x8xf32>
    %cst_27 = arith.constant 2.500000e-01 : f32
    %66 = vector.broadcast %cst_27 : f32 to vector<32x8xf32>
    %67 = arith.mulf %65, %66 : vector<32x8xf32>
    %68 = arith.truncf %67 : vector<32x8xf32> to vector<32x8xbf16>
    %cst_28 = arith.constant dense<0.000000e+00> : vector<32x64xf32>
    %69 = tpu.matmul %68, %60, %cst_28 {dimension_numbers = #tpu.dot_dimension_numbers<[1], [0], [0], [1], [0, 0, 1, 1], [], []>} : vector<32x8xbf16>, vector<8x64xbf16>, vector<32x64xf32> -> vector<32x64xf32>
    %c32 = arith.constant 32 : index
    %c0_29 = arith.constant 0 : index
    %70 = vector.load %arg11[%c32, %c0_29] : memref<128x128xf32, #tpu.memory_space<vmem>>, vector<32x64xf32>
    tpu.vector_store %arg11[%c32, %c0_29], %69 {strides = array<i32>} : memref<128x128xf32, #tpu.memory_space<vmem>>, vector<32x64xf32>,
    %71 = vector.extract_strided_slice %25 {offsets = [16, 0], sizes = [8, 64], strides = [1, 1]} : vector<32x128xf32> to vector<8x64xf32>
    %72 = arith.truncf %71 : vector<8x64xf32> to vector<8x64xbf16>
    %73 = vector.extract_strided_slice %46 {offsets = [0, 16], sizes = [64, 8], strides = [1, 1]} : vector<128x32xf32> to vector<64x8xf32>
    %74 = arith.truncf %73 : vector<64x8xf32> to vector<64x8xbf16>
    %75 = vector.extract_strided_slice %45 {offsets = [64, 0], sizes = [32, 64], strides = [1, 1]} : vector<128x128xf32> to vector<32x64xf32>
    %76 = arith.truncf %75 : vector<32x64xf32> to vector<32x64xbf16>
    %cst_30 = arith.constant dense<0.000000e+00> : vector<32x8xf32>
    %77 = tpu.matmul %76, %74, %cst_30 {dimension_numbers = #tpu.dot_dimension_numbers<[1], [0], [0], [1], [0, 0, 1, 1], [], []>} : vector<32x64xbf16>, vector<64x8xbf16>, vector<32x8xf32> -> vector<32x8xf32>
    %cst_31 = arith.constant 2.500000e-01 : f32
    %78 = vector.broadcast %cst_31 : f32 to vector<32x8xf32>
    %79 = arith.mulf %77, %78 : vector<32x8xf32>
    %80 = arith.truncf %79 : vector<32x8xf32> to vector<32x8xbf16>
    %cst_32 = arith.constant dense<0.000000e+00> : vector<32x64xf32>
    %81 = tpu.matmul %80, %72, %cst_32 {dimension_numbers = #tpu.dot_dimension_numbers<[1], [0], [0], [1], [0, 0, 1, 1], [], []>} : vector<32x8xbf16>, vector<8x64xbf16>, vector<32x64xf32> -> vector<32x64xf32>
    %c64 = arith.constant 64 : index
    %c0_33 = arith.constant 0 : index
    %82 = vector.load %arg11[%c64, %c0_33] : memref<128x128xf32, #tpu.memory_space<vmem>>, vector<32x64xf32>
    tpu.vector_store %arg11[%c64, %c0_33], %81 {strides = array<i32>} : memref<128x128xf32, #tpu.memory_space<vmem>>, vector<32x64xf32>,
    %83 = vector.extract_strided_slice %25 {offsets = [24, 0], sizes = [8, 64], strides = [1, 1]} : vector<32x128xf32> to vector<8x64xf32>
    %84 = arith.truncf %83 : vector<8x64xf32> to vector<8x64xbf16>
    %85 = vector.extract_strided_slice %46 {offsets = [0, 24], sizes = [64, 8], strides = [1, 1]} : vector<128x32xf32> to vector<64x8xf32>
    %86 = arith.truncf %85 : vector<64x8xf32> to vector<64x8xbf16>
    %87 = vector.extract_strided_slice %45 {offsets = [96, 0], sizes = [32, 64], strides = [1, 1]} : vector<128x128xf32> to vector<32x64xf32>
    %88 = arith.truncf %87 : vector<32x64xf32> to vector<32x64xbf16>
    %cst_34 = arith.constant dense<0.000000e+00> : vector<32x8xf32>
    %89 = tpu.matmul %88, %86, %cst_34 {dimension_numbers = #tpu.dot_dimension_numbers<[1], [0], [0], [1], [0, 0, 1, 1], [], []>} : vector<32x64xbf16>, vector<64x8xbf16>, vector<32x8xf32> -> vector<32x8xf32>
    %cst_35 = arith.constant 2.500000e-01 : f32
    %90 = vector.broadcast %cst_35 : f32 to vector<32x8xf32>
    %91 = arith.mulf %89, %90 : vector<32x8xf32>
    %92 = arith.truncf %91 : vector<32x8xf32> to vector<32x8xbf16>
    %cst_36 = arith.constant dense<0.000000e+00> : vector<32x64xf32>
    %93 = tpu.matmul %92, %84, %cst_36 {dimension_numbers = #tpu.dot_dimension_numbers<[1], [0], [0], [1], [0, 0, 1, 1], [], []>} : vector<32x8xbf16>, vector<8x64xbf16>, vector<32x64xf32> -> vector<32x64xf32>
    %c96 = arith.constant 96 : index
    %c0_37 = arith.constant 0 : index
    %94 = vector.load %arg11[%c96, %c0_37] : memref<128x128xf32, #tpu.memory_space<vmem>>, vector<32x64xf32>
    tpu.vector_store %arg11[%c96, %c0_37], %93 {strides = array<i32>} : memref<128x128xf32, #tpu.memory_space<vmem>>, vector<32x64xf32>,
    %95 = vector.extract_strided_slice %25 {offsets = [0, 64], sizes = [8, 64], strides = [1, 1]} : vector<32x128xf32> to vector<8x64xf32>
    %96 = arith.truncf %95 : vector<8x64xf32> to vector<8x64xbf16>
    %97 = vector.extract_strided_slice %46 {offsets = [64, 0], sizes = [64, 8], strides = [1, 1]} : vector<128x32xf32> to vector<64x8xf32>
    %98 = arith.truncf %97 : vector<64x8xf32> to vector<64x8xbf16>
    %99 = vector.extract_strided_slice %45 {offsets = [0, 64], sizes = [32, 64], strides = [1, 1]} : vector<128x128xf32> to vector<32x64xf32>
    %100 = arith.truncf %99 : vector<32x64xf32> to vector<32x64xbf16>
    %cst_38 = arith.constant dense<0.000000e+00> : vector<32x8xf32>
    %101 = tpu.matmul %100, %98, %cst_38 {dimension_numbers = #tpu.dot_dimension_numbers<[1], [0], [0], [1], [0, 0, 1, 1], [], []>} : vector<32x64xbf16>, vector<64x8xbf16>, vector<32x8xf32> -> vector<32x8xf32>
    %cst_39 = arith.constant 2.500000e-01 : f32
    %102 = vector.broadcast %cst_39 : f32 to vector<32x8xf32>
    %103 = arith.mulf %101, %102 : vector<32x8xf32>
    %104 = arith.truncf %103 : vector<32x8xf32> to vector<32x8xbf16>
    %cst_40 = arith.constant dense<0.000000e+00> : vector<32x64xf32>
    %105 = tpu.matmul %104, %96, %cst_40 {dimension_numbers = #tpu.dot_dimension_numbers<[1], [0], [0], [1], [0, 0, 1, 1], [], []>} : vector<32x8xbf16>, vector<8x64xbf16>, vector<32x64xf32> -> vector<32x64xf32>
    %c0_41 = arith.constant 0 : index
    %c64_42 = arith.constant 64 : index
    %106 = vector.load %arg11[%c0_41, %c64_42] : memref<128x128xf32, #tpu.memory_space<vmem>>, vector<32x64xf32>
    tpu.vector_store %arg11[%c0_41, %c64_42], %105 {strides = array<i32>} : memref<128x128xf32, #tpu.memory_space<vmem>>, vector<32x64xf32>,
    %107 = vector.extract_strided_slice %25 {offsets = [8, 64], sizes = [8, 64], strides = [1, 1]} : vector<32x128xf32> to vector<8x64xf32>
    %108 = arith.truncf %107 : vector<8x64xf32> to vector<8x64xbf16>
    %109 = vector.extract_strided_slice %46 {offsets = [64, 8], sizes = [64, 8], strides = [1, 1]} : vector<128x32xf32> to vector<64x8xf32>
    %110 = arith.truncf %109 : vector<64x8xf32> to vector<64x8xbf16>
    %111 = vector.extract_strided_slice %45 {offsets = [32, 64], sizes = [32, 64], strides = [1, 1]} : vector<128x128xf32> to vector<32x64xf32>
    %112 = arith.truncf %111 : vector<32x64xf32> to vector<32x64xbf16>
    %cst_43 = arith.constant dense<0.000000e+00> : vector<32x8xf32>
    %113 = tpu.matmul %112, %110, %cst_43 {dimension_numbers = #tpu.dot_dimension_numbers<[1], [0], [0], [1], [0, 0, 1, 1], [], []>} : vector<32x64xbf16>, vector<64x8xbf16>, vector<32x8xf32> -> vector<32x8xf32>
    %cst_44 = arith.constant 2.500000e-01 : f32
    %114 = vector.broadcast %cst_44 : f32 to vector<32x8xf32>
    %115 = arith.mulf %113, %114 : vector<32x8xf32>
    %116 = arith.truncf %115 : vector<32x8xf32> to vector<32x8xbf16>
    %cst_45 = arith.constant dense<0.000000e+00> : vector<32x64xf32>
    %117 = tpu.matmul %116, %108, %cst_45 {dimension_numbers = #tpu.dot_dimension_numbers<[1], [0], [0], [1], [0, 0, 1, 1], [], []>} : vector<32x8xbf16>, vector<8x64xbf16>, vector<32x64xf32> -> vector<32x64xf32>
    %c32_46 = arith.constant 32 : index
    %c64_47 = arith.constant 64 : index
    %118 = vector.load %arg11[%c32_46, %c64_47] : memref<128x128xf32, #tpu.memory_space<vmem>>, vector<32x64xf32>
    tpu.vector_store %arg11[%c32_46, %c64_47], %117 {strides = array<i32>} : memref<128x128xf32, #tpu.memory_space<vmem>>, vector<32x64xf32>,
    %119 = vector.extract_strided_slice %25 {offsets = [16, 64], sizes = [8, 64], strides = [1, 1]} : vector<32x128xf32> to vector<8x64xf32>
    %120 = arith.truncf %119 : vector<8x64xf32> to vector<8x64xbf16>
    %121 = vector.extract_strided_slice %46 {offsets = [64, 16], sizes = [64, 8], strides = [1, 1]} : vector<128x32xf32> to vector<64x8xf32>
    %122 = arith.truncf %121 : vector<64x8xf32> to vector<64x8xbf16>
    %123 = vector.extract_strided_slice %45 {offsets = [64, 64], sizes = [32, 64], strides = [1, 1]} : vector<128x128xf32> to vector<32x64xf32>
    %124 = arith.truncf %123 : vector<32x64xf32> to vector<32x64xbf16>
    %cst_48 = arith.constant dense<0.000000e+00> : vector<32x8xf32>
    %125 = tpu.matmul %124, %122, %cst_48 {dimension_numbers = #tpu.dot_dimension_numbers<[1], [0], [0], [1], [0, 0, 1, 1], [], []>} : vector<32x64xbf16>, vector<64x8xbf16>, vector<32x8xf32> -> vector<32x8xf32>
    %cst_49 = arith.constant 2.500000e-01 : f32
    %126 = vector.broadcast %cst_49 : f32 to vector<32x8xf32>
    %127 = arith.mulf %125, %126 : vector<32x8xf32>
    %128 = arith.truncf %127 : vector<32x8xf32> to vector<32x8xbf16>
    %cst_50 = arith.constant dense<0.000000e+00> : vector<32x64xf32>
    %129 = tpu.matmul %128, %120, %cst_50 {dimension_numbers = #tpu.dot_dimension_numbers<[1], [0], [0], [1], [0, 0, 1, 1], [], []>} : vector<32x8xbf16>, vector<8x64xbf16>, vector<32x64xf32> -> vector<32x64xf32>
    %c64_51 = arith.constant 64 : index
    %c64_52 = arith.constant 64 : index
    %130 = vector.load %arg11[%c64_51, %c64_52] : memref<128x128xf32, #tpu.memory_space<vmem>>, vector<32x64xf32>
    tpu.vector_store %arg11[%c64_51, %c64_52], %129 {strides = array<i32>} : memref<128x128xf32, #tpu.memory_space<vmem>>, vector<32x64xf32>,
    %131 = vector.extract_strided_slice %25 {offsets = [24, 64], sizes = [8, 64], strides = [1, 1]} : vector<32x128xf32> to vector<8x64xf32>
    %132 = arith.truncf %131 : vector<8x64xf32> to vector<8x64xbf16>
    %133 = vector.extract_strided_slice %46 {offsets = [64, 24], sizes = [64, 8], strides = [1, 1]} : vector<128x32xf32> to vector<64x8xf32>
    %134 = arith.truncf %133 : vector<64x8xf32> to vector<64x8xbf16>
    %135 = vector.extract_strided_slice %45 {offsets = [96, 64], sizes = [32, 64], strides = [1, 1]} : vector<128x128xf32> to vector<32x64xf32>
    %136 = arith.truncf %135 : vector<32x64xf32> to vector<32x64xbf16>
    %cst_53 = arith.constant dense<0.000000e+00> : vector<32x8xf32>
    %137 = tpu.matmul %136, %134, %cst_53 {dimension_numbers = #tpu.dot_dimension_numbers<[1], [0], [0], [1], [0, 0, 1, 1], [], []>} : vector<32x64xbf16>, vector<64x8xbf16>, vector<32x8xf32> -> vector<32x8xf32>
    %cst_54 = arith.constant 2.500000e-01 : f32
    %138 = vector.broadcast %cst_54 : f32 to vector<32x8xf32>
    %139 = arith.mulf %137, %138 : vector<32x8xf32>
    %140 = arith.truncf %139 : vector<32x8xf32> to vector<32x8xbf16>
    %cst_55 = arith.constant dense<0.000000e+00> : vector<32x64xf32>
    %141 = tpu.matmul %140, %132, %cst_55 {dimension_numbers = #tpu.dot_dimension_numbers<[1], [0], [0], [1], [0, 0, 1, 1], [], []>} : vector<32x8xbf16>, vector<8x64xbf16>, vector<32x64xf32> -> vector<32x64xf32>
    %c96_56 = arith.constant 96 : index
    %c64_57 = arith.constant 64 : index
    %142 = vector.load %arg11[%c96_56, %c64_57] : memref<128x128xf32, #tpu.memory_space<vmem>>, vector<32x64xf32>
    tpu.vector_store %arg11[%c96_56, %c64_57], %141 {strides = array<i32>} : memref<128x128xf32, #tpu.memory_space<vmem>>, vector<32x64xf32>,
    %c0_58 = arith.constant 0 : index
    %c0_59 = arith.constant 0 : index
    %143 = vector.load %arg11[%c0_58, %c0_59] : memref<128x128xf32, #tpu.memory_space<vmem>>, vector<128x128xf32>
    %cst_60 = arith.constant 0.000000e+00 : f32
    %cst_61 = arith.constant 8.000000e+00 : f32
    %144 = vector.broadcast %cst_60 : f32 to vector<128x128xf32>
    %145 = arith.maximumf %144, %143 : vector<128x128xf32>
    %146 = vector.broadcast %cst_61 : f32 to vector<128x128xf32>
    %147 = arith.minimumf %146, %145 : vector<128x128xf32>
    %cst_62 = arith.constant 5.000000e-01 : f32
    %148 = vector.broadcast %cst_62 : f32 to vector<128x128xf32>
    %149 = arith.addf %147, %148 : vector<128x128xf32>
    %150 = math.floor %149 : vector<128x128xf32>
    %cst_63 = arith.constant 1.250000e-01 : f32
    %151 = vector.broadcast %cst_63 : f32 to vector<128x128xf32>
    %152 = arith.mulf %150, %151 : vector<128x128xf32>
    %153 = arith.truncf %152 : vector<128x128xf32> to vector<128x128xbf16>
    %c0_64 = arith.constant 0 : index
    %c0_65 = arith.constant 0 : index
    %154 = vector.load %arg4[%c0_64, %c0_65] : memref<32x128xbf16, #tpu.memory_space<vmem>>, vector<32x128xbf16>
    %cst_66 = arith.constant dense<0.000000e+00> : vector<32x128xf32>
    %155 = tpu.matmul %154, %153, %cst_66 {dimension_numbers = #tpu.dot_dimension_numbers<[1], [0], [0], [1], [0, 0, 1, 1], [], []>} : vector<32x128xbf16>, vector<128x128xbf16>, vector<32x128xf32> -> vector<32x128xf32>
    %c0_67 = arith.constant 0 : index
    %c0_68 = arith.constant 0 : index
    %156 = vector.load %arg5[%c0_67, %c0_68] : memref<32x1xf32, #tpu.memory_space<vmem>>, vector<32x1xf32>
    %157 = vector.broadcast %156 : vector<32x1xf32> to vector<32x128xf32>
    %158 = arith.addf %155, %157 : vector<32x128xf32>
    %159 = arith.addf %0, %158 : vector<32x128xf32>
    %cst_69 = arith.constant 0.000000e+00 : f32
    %cst_70 = arith.constant 8.000000e+00 : f32
    %160 = vector.broadcast %cst_69 : f32 to vector<32x128xf32>
    %161 = arith.maximumf %160, %159 : vector<32x128xf32>
    %162 = vector.broadcast %cst_70 : f32 to vector<32x128xf32>
    %163 = arith.minimumf %162, %161 : vector<32x128xf32>
    %cst_71 = arith.constant 5.000000e-01 : f32
    %164 = vector.broadcast %cst_71 : f32 to vector<32x128xf32>
    %165 = arith.addf %163, %164 : vector<32x128xf32>
    %166 = math.floor %165 : vector<32x128xf32>
    %cst_72 = arith.constant 1.250000e-01 : f32
    %167 = vector.broadcast %cst_72 : f32 to vector<32x128xf32>
    %168 = arith.mulf %166, %167 : vector<32x128xf32>
    %169 = arith.truncf %168 : vector<32x128xf32> to vector<32x128xbf16>
    %c0_73 = arith.constant 0 : index
    %c0_74 = arith.constant 0 : index
    %170 = vector.load %arg6[%c0_73, %c0_74] : memref<128x32xbf16, #tpu.memory_space<vmem>>, vector<128x32xbf16>
    %cst_75 = arith.constant dense<0.000000e+00> : vector<128x128xf32>
    %171 = tpu.matmul %170, %169, %cst_75 {dimension_numbers = #tpu.dot_dimension_numbers<[1], [0], [0], [1], [0, 0, 1, 1], [], []>} : vector<128x32xbf16>, vector<32x128xbf16>, vector<128x128xf32> -> vector<128x128xf32>
    %c0_76 = arith.constant 0 : index
    %c0_77 = arith.constant 0 : index
    %172 = vector.load %arg7[%c0_76, %c0_77] : memref<128x1xf32, #tpu.memory_space<vmem>>, vector<128x1xf32>
    %173 = vector.broadcast %172 : vector<128x1xf32> to vector<128x128xf32>
    %174 = arith.addf %171, %173 : vector<128x128xf32>
    %cst_78 = arith.constant 0.000000e+00 : f32
    %cst_79 = arith.constant 8.000000e+00 : f32
    %175 = vector.broadcast %cst_78 : f32 to vector<128x128xf32>
    %176 = arith.maximumf %175, %174 : vector<128x128xf32>
    %177 = vector.broadcast %cst_79 : f32 to vector<128x128xf32>
    %178 = arith.minimumf %177, %176 : vector<128x128xf32>
    %cst_80 = arith.constant 5.000000e-01 : f32
    %179 = vector.broadcast %cst_80 : f32 to vector<128x128xf32>
    %180 = arith.addf %178, %179 : vector<128x128xf32>
    %181 = math.floor %180 : vector<128x128xf32>
    %cst_81 = arith.constant 1.250000e-01 : f32
    %182 = vector.broadcast %cst_81 : f32 to vector<128x128xf32>
    %183 = arith.mulf %181, %182 : vector<128x128xf32>
    %184 = arith.truncf %183 : vector<128x128xf32> to vector<128x128xbf16>
    %c0_82 = arith.constant 0 : index
    %c0_83 = arith.constant 0 : index
    %185 = vector.load %arg8[%c0_82, %c0_83] : memref<32x128xbf16, #tpu.memory_space<vmem>>, vector<32x128xbf16>
    %cst_84 = arith.constant dense<0.000000e+00> : vector<32x128xf32>
    %186 = tpu.matmul %185, %184, %cst_84 {dimension_numbers = #tpu.dot_dimension_numbers<[1], [0], [0], [1], [0, 0, 1, 1], [], []>} : vector<32x128xbf16>, vector<128x128xbf16>, vector<32x128xf32> -> vector<32x128xf32>
    %c0_85 = arith.constant 0 : index
    %c0_86 = arith.constant 0 : index
    %187 = vector.load %arg9[%c0_85, %c0_86] : memref<32x1xf32, #tpu.memory_space<vmem>>, vector<32x1xf32>
    %188 = vector.broadcast %187 : vector<32x1xf32> to vector<32x128xf32>
    %189 = arith.addf %186, %188 : vector<32x128xf32>
    %190 = arith.addf %159, %189 : vector<32x128xf32>
    %c0_87 = arith.constant 0 : index
    %c0_88 = arith.constant 0 : index
    %191 = vector.load %arg10[%c0_87, %c0_88] : memref<32x128xf32, #tpu.memory_space<vmem>>, vector<32x128xf32>
    tpu.vector_store %arg10[%c0_87, %c0_88], %190 {strides = array<i32>} : memref<32x128xf32, #tpu.memory_space<vmem>>, vector<32x128xf32>,
    return
  }
  func.func @transform_0(%arg0: i32) -> (i32, i32) {
    %c0_i32 = arith.constant 0 : i32
    %c0_i32_0 = arith.constant 0 : i32
    return %c0_i32, %arg0 : i32, i32
  }
  func.func @transform_1(%arg0: i32) -> (i32, i32) {
    %c0_i32 = arith.constant 0 : i32
    %c0_i32_0 = arith.constant 0 : i32
    %c0_i32_1 = arith.constant 0 : i32
    return %c0_i32, %c0_i32_0 : i32, i32
  }
  func.func @transform_2(%arg0: i32) -> (i32, i32) {
    %c0_i32 = arith.constant 0 : i32
    %c0_i32_0 = arith.constant 0 : i32
    %c0_i32_1 = arith.constant 0 : i32
    return %c0_i32, %c0_i32_0 : i32, i32
  }
  func.func @transform_3(%arg0: i32) -> (i32, i32) {
    %c0_i32 = arith.constant 0 : i32
    %c0_i32_0 = arith.constant 0 : i32
    %c0_i32_1 = arith.constant 0 : i32
    return %c0_i32, %c0_i32_0 : i32, i32
  }
  func.func @transform_4(%arg0: i32) -> (i32, i32) {
    %c0_i32 = arith.constant 0 : i32
    %c0_i32_0 = arith.constant 0 : i32
    %c0_i32_1 = arith.constant 0 : i32
    return %c0_i32, %c0_i32_0 : i32, i32
  }
  func.func @transform_5(%arg0: i32) -> (i32, i32) {
    %c0_i32 = arith.constant 0 : i32
    %c0_i32_0 = arith.constant 0 : i32
    %c0_i32_1 = arith.constant 0 : i32
    return %c0_i32, %c0_i32_0 : i32, i32
  }
  func.func @transform_6(%arg0: i32) -> (i32, i32) {
    %c0_i32 = arith.constant 0 : i32
    %c0_i32_0 = arith.constant 0 : i32
    %c0_i32_1 = arith.constant 0 : i32
    return %c0_i32, %c0_i32_0 : i32, i32
  }
  func.func @transform_7(%arg0: i32) -> (i32, i32) {
    %c0_i32 = arith.constant 0 : i32
    %c0_i32_0 = arith.constant 0 : i32
    %c0_i32_1 = arith.constant 0 : i32
    return %c0_i32, %c0_i32_0 : i32, i32
  }
  func.func @transform_8(%arg0: i32) -> (i32, i32) {
    %c0_i32 = arith.constant 0 : i32
    %c0_i32_0 = arith.constant 0 : i32
    %c0_i32_1 = arith.constant 0 : i32
    return %c0_i32, %c0_i32_0 : i32, i32
  }
  func.func @transform_9(%arg0: i32) -> (i32, i32) {
    %c0_i32 = arith.constant 0 : i32
    %c0_i32_0 = arith.constant 0 : i32
    return %c0_i32, %arg0 : i32, i32
  }
}

</mosaic_0001>

<llo_original>
// kernel: _ms_block_lanes.1
$region0: #{_ms_block_lanes.1}
  #allocation0 [shape = 'u32[]', space=smem, size = 0x4, offset = 0x4, fixed_abs, tag = 'smem constant byte address 0x4 - core index']
  #allocation1 [shape = 'u32[144,128]{1,0:T(1,128)}', space=vmem, size = 0x12000, scoped, tag = 'internal scratch']
  #allocation2 [shape = 'f32[128,128]{1,0:T(8,128)}', space=vmem, size = 0x10000, scoped, tag = 'scratch operand']
  %s0 = inlined_call_operand.vmem [shape: f32[32,256], index: 0, kind: input, shape index: {}]
  %s1 = inlined_call_operand.vmem [shape: bf16[192,32], index: 1, kind: input, shape index: {}]
  %s2 = inlined_call_operand.vmem [shape: f32[192,1], index: 2, kind: input, shape index: {}]
  %s3 = inlined_call_operand.vmem [shape: bf16[32,128], index: 3, kind: input, shape index: {}]
  %s4 = inlined_call_operand.vmem [shape: f32[32,1], index: 4, kind: input, shape index: {}]
  %s5 = inlined_call_operand.vmem [shape: bf16[128,32], index: 5, kind: input, shape index: {}]
  %s6 = inlined_call_operand.vmem [shape: f32[128,1], index: 6, kind: input, shape index: {}]
  %s7 = inlined_call_operand.vmem [shape: bf16[32,128], index: 7, kind: input, shape index: {}]
  %s8 = inlined_call_operand.vmem [shape: f32[32,1], index: 8, kind: input, shape index: {}]
  %s9 = inlined_call_operand.hbm [shape: f32[32,256], index: 9, kind: output, shape index: {}]
  %s10 = sld [smem:[#allocation0]]
  $region107: #{_ms_block_lanes.1} parent=0
    _
  %s12 = ssub.s32 1, %s10
  %s13 = scalar_select 0, %s12, %s10
  $region1: #{_ms_block_lanes.1} parent=0
    #allocation3 [shape = 'u8[32768]{0}', space=vmem, size = 0x8000, scoped, tag = 'input window, operand 0']
    #allocation4 [shape = 'u8[32768]{0}', space=vmem, size = 0x8000, scoped, tag = 'output window, operand 0']
    #allocation5 [shape = 's32[2]{0}', space=sflag, size = 0x8, scoped, tag = 'scoped memory for _ms_block_lanes.1']
    %14 = vsyncpa [#allocation5], 0
    %s15 = scalar_lea.sflag [#allocation5], 1
    %16 = vsyncpa %s15, 0
    loop: start=0, step=1, limit=4
    $region2: #{_ms_block_lanes.1} parent=1 // loop_pre_header
      _
    $region3: #{_ms_block_lanes.1} parent=1 // loop_header
      %s18 = sphi 0, %s22
      %p19 = scmp.ge.s32.totalorder %s18, 4
      %s28 = sphi 0, %s30
      %s31 = sphi 0, %s28
      %s32 = sphi 0, %s31
      %s48 = sphi 0, %s32
      %s52 = sphi 0, %s52
      %s54 = sphi 0, %s52
      %s55 = sphi 0, %s54
      %s69 = sphi 0, %s55
      %s73 = sphi 0, %s73
      %s75 = sphi 0, %s73
      %s76 = sphi 0, %s75
      %s90 = sphi 0, %s76
      %s94 = sphi 0, %s94
      %s96 = sphi 0, %s94
      %s97 = sphi 0, %s96
      %s111 = sphi 0, %s97
      %s115 = sphi 0, %s115
      %s117 = sphi 0, %s115
      %s118 = sphi 0, %s117
      %s132 = sphi 0, %s118
      %s136 = sphi 0, %s136
      %s138 = sphi 0, %s136
      %s139 = sphi 0, %s138
      %s153 = sphi 0, %s139
      %s157 = sphi 0, %s157
      %s159 = sphi 0, %s157
      %s160 = sphi 0, %s159
      %s174 = sphi 0, %s160
      %s178 = sphi 0, %s178
      %s180 = sphi 0, %s178
      %s181 = sphi 0, %s180
      %s195 = sphi 0, %s181
      %s199 = sphi 0, %s199
      %s201 = sphi 0, %s199
      %s202 = sphi 0, %s201
      %s216 = sphi 0, %s202
      %s222 = sphi 0, %s224
      %s225 = sphi 0, %s222
      %s226 = sphi 0, %s225
      %s242 = sphi 0, %s226
    $region4: #{_ms_block_lanes.1} parent=1 // loop_header_branch
      %21 = sbr.rel (%p19) target = $region8
    $region5: #{_ms_block_lanes.1} parent=1 // loop_body
      %s23 = ssub.s32 %s18, 1
      %s24 = ssub.s32 %s18, 2
      %s25 = sadd.s32 %s18, 1
      %s26 = ssub.s32 %s18, %s25
      %p27 = scmp.eq.s32.totalorder %s26, 0
      %s29 = sadd.s32 %s28, 1
      %s30 = scalar_select %p27, %s28, %s29
      %p33 = pneg %p27
      %p34 = scmp.eq.s32.totalorder %s18, 1
      %p35 = por %p33, %p34
      %p36 = scmp.ne.s32.totalorder %s28, %s31
      %p37 = scmp.eq.s32.totalorder %s18, 0
      %p38 = por %p36, %p37
      %p39 = scmp.ne.s32.totalorder %s28, %s31
      %p40 = scmp.eq.s32.totalorder %s23, 1
      %p41 = por %p39, %p40
      %p42 = scmp.ne.s32.totalorder %s31, %s32
      %p43 = scmp.eq.s32.totalorder %s23, 0
      %p44 = por %p42, %p43
      %p45 = scmp.ne.s32.totalorder %s31, %s32
      %p46 = scmp.eq.s32.totalorder %s24, 1
      %p47 = por %p45, %p46
      %p49 = scmp.ne.s32.totalorder %s32, %s48
      %p50 = scmp.eq.s32.totalorder %s24, 0
      %p51 = por %p49, %p50
      %s53 = sadd.s32 %s52, 1
      %p56 = scmp.eq.s32.totalorder %s18, 1
      %p57 = scmp.ne.s32.totalorder %s52, %s54
      %p58 = scmp.eq.s32.totalorder %s18, 0
      %p59 = por %p57, %p58
      %p60 = scmp.ne.s32.totalorder %s52, %s54
      %p61 = scmp.eq.s32.totalorder %s23, 1
      %p62 = por %p60, %p61
      %p63 = scmp.ne.s32.totalorder %s54, %s55
      %p64 = scmp.eq.s32.totalorder %s23, 0
      %p65 = por %p63, %p64
      %p66 = scmp.ne.s32.totalorder %s54, %s55
      %p67 = scmp.eq.s32.totalorder %s24, 1
      %p68 = por %p66, %p67
      %p70 = scmp.ne.s32.totalorder %s55, %s69
      %p71 = scmp.eq.s32.totalorder %s24, 0
      %p72 = por %p70, %p71
      %s74 = sadd.s32 %s73, 1
      %p77 = scmp.eq.s32.totalorder %s18, 1
      %p78 = scmp.ne.s32.totalorder %s73, %s75
      %p79 = scmp.eq.s32.totalorder %s18, 0
      %p80 = por %p78, %p79
      %p81 = scmp.ne.s32.totalorder %s73, %s75
      %p82 = scmp.eq.s32.totalorder %s23, 1
      %p83 = por %p81, %p82
      %p84 = scmp.ne.s32.totalorder %s75, %s76
      %p85 = scmp.eq.s32.totalorder %s23, 0
      %p86 = por %p84, %p85
      %p87 = scmp.ne.s32.totalorder %s75, %s76
      %p88 = scmp.eq.s32.totalorder %s24, 1
      %p89 = por %p87, %p88
      %p91 = scmp.ne.s32.totalorder %s76, %s90
      %p92 = scmp.eq.s32.totalorder %s24, 0
      %p93 = por %p91, %p92
      %s95 = sadd.s32 %s94, 1
      %p98 = scmp.eq.s32.totalorder %s18, 1
      %p99 = scmp.ne.s32.totalorder %s94, %s96
      %p100 = scmp.eq.s32.totalorder %s18, 0
      %p101 = por %p99, %p100
      %p102 = scmp.ne.s32.totalorder %s94, %s96
      %p103 = scmp.eq.s32.totalorder %s23, 1
      %p104 = por %p102, %p103
      %p105 = scmp.ne.s32.totalorder %s96, %s97
      %p106 = scmp.eq.s32.totalorder %s23, 0
      %p107 = por %p105, %p106
      %p108 = scmp.ne.s32.totalorder %s96, %s97
      %p109 = scmp.eq.s32.totalorder %s24, 1
      %p110 = por %p108, %p109
      %p112 = scmp.ne.s32.totalorder %s97, %s111
      %p113 = scmp.eq.s32.totalorder %s24, 0
      %p114 = por %p112, %p113
      %s116 = sadd.s32 %s115, 1
      %p119 = scmp.eq.s32.totalorder %s18, 1
      %p120 = scmp.ne.s32.totalorder %s115, %s117
      %p121 = scmp.eq.s32.totalorder %s18, 0
      %p122 = por %p120, %p121
      %p123 = scmp.ne.s32.totalorder %s115, %s117
      %p124 = scmp.eq.s32.totalorder %s23, 1
      %p125 = por %p123, %p124
      %p126 = scmp.ne.s32.totalorder %s117, %s118
      %p127 = scmp.eq.s32.totalorder %s23, 0
      %p128 = por %p126, %p127
      %p129 = scmp.ne.s32.totalorder %s117, %s118
      %p130 = scmp.eq.s32.totalorder %s24, 1
      %p131 = por %p129, %p130
      %p133 = scmp.ne.s32.totalorder %s118, %s132
      %p134 = scmp.eq.s32.totalorder %s24, 0
      %p135 = por %p133, %p134
      %s137 = sadd.s32 %s136, 1
      %p140 = scmp.eq.s32.totalorder %s18, 1
      %p141 = scmp.ne.s32.totalorder %s136, %s138
      %p142 = scmp.eq.s32.totalorder %s18, 0
      %p143 = por %p141, %p142
      %p144 = scmp.ne.s32.totalorder %s136, %s138
      %p145 = scmp.eq.s32.totalorder %s23, 1
      %p146 = por %p144, %p145
      %p147 = scmp.ne.s32.totalorder %s138, %s139
      %p148 = scmp.eq.s32.totalorder %s23, 0
      %p149 = por %p147, %p148
      %p150 = scmp.ne.s32.totalorder %s138, %s139
      %p151 = scmp.eq.s32.totalorder %s24, 1
      %p152 = por %p150, %p151
      %p154 = scmp.ne.s32.totalorder %s139, %s153
      %p155 = scmp.eq.s32.totalorder %s24, 0
      %p156 = por %p154, %p155
      %s158 = sadd.s32 %s157, 1
      %p161 = scmp.eq.s32.totalorder %s18, 1
      %p162 = scmp.ne.s32.totalorder %s157, %s159
      %p163 = scmp.eq.s32.totalorder %s18, 0
      %p164 = por %p162, %p163
      %p165 = scmp.ne.s32.totalorder %s157, %s159
      %p166 = scmp.eq.s32.totalorder %s23, 1
      %p167 = por %p165, %p166
      %p168 = scmp.ne.s32.totalorder %s159, %s160
      %p169 = scmp.eq.s32.totalorder %s23, 0
      %p170 = por %p168, %p169
      %p171 = scmp.ne.s32.totalorder %s159, %s160
      %p172 = scmp.eq.s32.totalorder %s24, 1
      %p173 = por %p171, %p172
      %p175 = scmp.ne.s32.totalorder %s160, %s174
      %p176 = scmp.eq.s32.totalorder %s24, 0
      %p177 = por %p175, %p176
      %s179 = sadd.s32 %s178, 1
      %p182 = scmp.eq.s32.totalorder %s18, 1
      %p183 = scmp.ne.s32.totalorder %s178, %s180
      %p184 = scmp.eq.s32.totalorder %s18, 0
      %p185 = por %p183, %p184
      %p186 = scmp.ne.s32.totalorder %s178, %s180
      %p187 = scmp.eq.s32.totalorder %s23, 1
      %p188 = por %p186, %p187
      %p189 = scmp.ne.s32.totalorder %s180, %s181
      %p190 = scmp.eq.s32.totalorder %s23, 0
      %p191 = por %p189, %p190
      %p192 = scmp.ne.s32.totalorder %s180, %s181
      %p193 = scmp.eq.s32.totalorder %s24, 1
      %p194 = por %p192, %p193
      %p196 = scmp.ne.s32.totalorder %s181, %s195
      %p197 = scmp.eq.s32.totalorder %s24, 0
      %p198 = por %p196, %p197
      %s200 = sadd.s32 %s199, 1
      %p203 = scmp.eq.s32.totalorder %s18, 1
      %p204 = scmp.ne.s32.totalorder %s199, %s201
      %p205 = scmp.eq.s32.totalorder %s18, 0
      %p206 = por %p204, %p205
      %p207 = scmp.ne.s32.totalorder %s199, %s201
      %p208 = scmp.eq.s32.totalorder %s23, 1
      %p209 = por %p207, %p208
      %p210 = scmp.ne.s32.totalorder %s201, %s202
      %p211 = scmp.eq.s32.totalorder %s23, 0
      %p212 = por %p210, %p211
      %p213 = scmp.ne.s32.totalorder %s201, %s202
      %p214 = scmp.eq.s32.totalorder %s24, 1
      %p215 = por %p213, %p214
      %p217 = scmp.ne.s32.totalorder %s202, %s216
      %p218 = scmp.eq.s32.totalorder %s24, 0
      %p219 = por %p217, %p218
      %s220 = ssub.s32 %s18, %s25
      %p221 = scmp.eq.s32.totalorder %s220, 0
      %s223 = sadd.s32 %s222, 1
      %s224 = scalar_select %p221, %s222, %s223
      %p227 = pneg %p221
      %p228 = scmp.eq.s32.totalorder %s18, 1
      %p229 = por %p227, %p228
      %p230 = scmp.ne.s32.totalorder %s222, %s225
      %p231 = scmp.eq.s32.totalorder %s18, 0
      %p232 = por %p230, %p231
      %p233 = scmp.ne.s32.totalorder %s222, %s225
      %p234 = scmp.eq.s32.totalorder %s23, 1
      %p235 = por %p233, %p234
      %p236 = scmp.ne.s32.totalorder %s225, %s226
      %p237 = scmp.eq.s32.totalorder %s23, 0
      %p238 = por %p236, %p237
      %p239 = scmp.ne.s32.totalorder %s225, %s226
      %p240 = scmp.eq.s32.totalorder %s24, 1
      %p241 = por %p239, %p240
      %p243 = scmp.ne.s32.totalorder %s226, %s242
      %p244 = scmp.eq.s32.totalorder %s24, 0
      %p245 = por %p243, %p244
      %p246 = scmp.le.s32.totalorder 1, %s18
      %p247 = scmp.lt.s32.totalorder %s18, 3
      %p248 = pnand %p246, %p247
      %p249 = pneg %p248
      // Predicated region
      $region9: #{_ms_block_lanes.1} parent=5 // pred_check
        _
      $region10: #{_ms_block_lanes.1} parent=5 // pred_check_branch
        %251 = sbr.rel (%p248) target = $region12
      $region11: #{_ms_block_lanes.1} parent=5 // pred_region
        %s252 = ssub.s32 %s18, 1
        // Predicated region
        $region13: #{_ms_block_lanes.1} parent=11 // pred_check
          %p253 = pneg %p65
        $region14: #{_ms_block_lanes.1} parent=11 // pred_check_branch
          %255 = sbr.rel (%p253) target = $region16
        $region15: #{_ms_block_lanes.1} parent=11 // pred_region
          _
        $region16: #{_ms_block_lanes.1} parent=11 // pred_fallthru
          _
        // Predicated region
        $region17: #{_ms_block_lanes.1} parent=11 // pred_check
          %p256 = pneg %p86
        $region18: #{_ms_block_lanes.1} parent=11 // pred_check_branch
          %258 = sbr.rel (%p256) target = $region20
        $region19: #{_ms_block_lanes.1} parent=11 // pred_region
          _
        $region20: #{_ms_block_lanes.1} parent=11 // pred_fallthru
          _
        // Predicated region
        $region21: #{_ms_block_lanes.1} parent=11 // pred_check
          %p259 = pneg %p107
        $region22: #{_ms_block_lanes.1} parent=11 // pred_check_branch
          %261 = sbr.rel (%p259) target = $region24
        $region23: #{_ms_block_lanes.1} parent=11 // pred_region
          _
        $region24: #{_ms_block_lanes.1} parent=11 // pred_fallthru
          _
        // Predicated region
        $region25: #{_ms_block_lanes.1} parent=11 // pred_check
          %p262 = pneg %p128
        $region26: #{_ms_block_lanes.1} parent=11 // pred_check_branch
          %264 = sbr.rel (%p262) target = $region28
        $region27: #{_ms_block_lanes.1} parent=11 // pred_region
          _
        $region28: #{_ms_block_lanes.1} parent=11 // pred_fallthru
          _
        // Predicated region
        $region29: #{_ms_block_lanes.1} parent=11 // pred_check
          %p265 = pneg %p149
        $region30: #{_ms_block_lanes.1} parent=11 // pred_check_branch
          %267 = sbr.rel (%p265) target = $region32
        $region31: #{_ms_block_lanes.1} parent=11 // pred_region
          _
        $region32: #{_ms_block_lanes.1} parent=11 // pred_fallthru
          _
        // Predicated region
        $region33: #{_ms_block_lanes.1} parent=11 // pred_check
          %p268 = pneg %p170
        $region34: #{_ms_block_lanes.1} parent=11 // pred_check_branch
          %270 = sbr.rel (%p268) target = $region36
        $region35: #{_ms_block_lanes.1} parent=11 // pred_region
          _
        $region36: #{_ms_block_lanes.1} parent=11 // pred_fallthru
          _
        // Predicated region
        $region37: #{_ms_block_lanes.1} parent=11 // pred_check
          %p271 = pneg %p191
        $region38: #{_ms_block_lanes.1} parent=11 // pred_check_branch
          %273 = sbr.rel (%p271) target = $region40
        $region39: #{_ms_block_lanes.1} parent=11 // pred_region
          _
        $region40: #{_ms_block_lanes.1} parent=11 // pred_fallthru
          _
        // Predicated region
        $region41: #{_ms_block_lanes.1} parent=11 // pred_check
          %p274 = pneg %p212
        $region42: #{_ms_block_lanes.1} parent=11 // pred_check_branch
          %276 = sbr.rel (%p274) target = $region44
        $region43: #{_ms_block_lanes.1} parent=11 // pred_region
          _
        $region44: #{_ms_block_lanes.1} parent=11 // pred_fallthru
          _
      $region12: #{_ms_block_lanes.1} parent=5 // pred_fallthru
        _
      %p277 = scmp.lt.s32.totalorder %s18, 2
      // Predicated region
      $region45: #{_ms_block_lanes.1} parent=5 // pred_check
        %p278 = pneg %p277
      $region46: #{_ms_block_lanes.1} parent=5 // pred_check_branch
        %280 = sbr.rel (%p278) target = $region48
      $region47: #{_ms_block_lanes.1} parent=5 // pred_region
        // Predicated region
        $region49: #{_ms_block_lanes.1} parent=47 // pred_check
          %p281 = pneg %p38
        $region50: #{_ms_block_lanes.1} parent=47 // pred_check_branch
          %283 = sbr.rel (%p281) target = $region52
        $region51: #{_ms_block_lanes.1} parent=47 // pred_region
          %s284 = sand.u32 %s28, 1
          %s285 = sand.u32 %s28, 1
          %s286 = smul.addr %s285, 32
          %s287 = scalar_lea.vmem [#allocation3], %s286
          %s288 = smul.addr %s18, 8
          %s289 = scalar_lea.vmem %s0, %s288
          // Predicated region
          $region53: #{_ms_block_lanes.1} parent=51 // pred_check
            _
          $region54: #{_ms_block_lanes.1} parent=51 // pred_check_branch
            %291 = sbr.rel (0) target = $region56
          $region55: #{_ms_block_lanes.1} parent=51 // pred_region
            // Predicated region
            $region57: #{_ms_block_lanes.1} parent=55 // pred_check
              _
            $region58: #{_ms_block_lanes.1} parent=55 // pred_check_branch
              %293 = sbr.rel (0) target = $region60
            $region59: #{_ms_block_lanes.1} parent=55 // pred_region
              // Predicated region
              $region72: #{_ms_block_lanes.1} parent=59 // pred_check
                _
              $region73: #{_ms_block_lanes.1} parent=59 // pred_check_branch
                %315 = sbr.rel (0) target = $region75
              $region74: #{_ms_block_lanes.1} parent=59 // pred_region
                loop: start=0, step=1, limit=1
                $region76: #{_ms_block_lanes.1} parent=74 // loop_pre_header
                  _
                $region77: #{_ms_block_lanes.1} parent=74 // loop_header
                  %s317 = sphi 0, %s321
                  %p318 = scmp.ge.s32.totalorder %s317, 1
                  %s322 = sphi %s289, %s289
                  %s323 = sphi %s287, %s287
                $region78: #{_ms_block_lanes.1} parent=74 // loop_header_branch
                  %320 = sbr.rel (%p318) target = $region82
                $region79: #{_ms_block_lanes.1} parent=74 // loop_body
                  %v324 = vld [vmem:[%s322] sm:$0xff]
                  %325 = vst [vmem:[%s323] sm:$0xff] %v324
                  %v326 = vld [vmem:[%s322 + $0x10] sm:$0xff]
                  %327 = vst [vmem:[%s323 + $0x8] sm:$0xff] %v326
                  %v328 = vld [vmem:[%s322 + $0x20] sm:$0xff]
                  %329 = vst [vmem:[%s323 + $0x10] sm:$0xff] %v328
                  %v330 = vld [vmem:[%s322 + $0x30] sm:$0xff]
                  %331 = vst [vmem:[%s323 + $0x18] sm:$0xff] %v330
                $region80: #{_ms_block_lanes.1} parent=74 // loop_footer
                  %s321 = sadd.s32 1, %s317
                $region81: #{_ms_block_lanes.1} parent=74 // loop_footer_branch
                  %316 = sbr.rel target = $region77
                $region82: #{_ms_block_lanes.1} parent=74 // loop_exit
                  _
              $region75: #{_ms_block_lanes.1} parent=59 // pred_fallthru
                _
              // Predicated region
              $region83: #{_ms_block_lanes.1} parent=59 // pred_check
                _
              $region84: #{_ms_block_lanes.1} parent=59 // pred_check_branch
                %333 = sbr.rel target = $region86
              $region85: #{_ms_block_lanes.1} parent=59 // pred_region
                _
              $region86: #{_ms_block_lanes.1} parent=59 // pred_fallthru
                _
            $region60: #{_ms_block_lanes.1} parent=55 // pred_fallthru
              _
            // Predicated region
            $region61: #{_ms_block_lanes.1} parent=55 // pred_check
              _
            $region62: #{_ms_block_lanes.1} parent=55 // pred_check_branch
              %295 = sbr.rel target = $region64
            $region63: #{_ms_block_lanes.1} parent=55 // pred_region
              %s297 = ssub.s32 256, 1
              loop: start=0, step=1, limit=1
              $region65: #{_ms_block_lanes.1} parent=63 // loop_pre_header
                _
              $region66: #{_ms_block_lanes.1} parent=63 // loop_header
                %s299 = sphi 0, %s303
                %p300 = scmp.ge.s32.totalorder %s299, 1
                %s304 = sphi %s289, %s289
                %s305 = sphi %s287, %s287
              $region67: #{_ms_block_lanes.1} parent=63 // loop_header_branch
                %302 = sbr.rel (%p300) target = $region71
              $region68: #{_ms_block_lanes.1} parent=63 // loop_body
                %v306 = vld [vmem:[%s304] sm:%s297]
                %307 = vst [vmem:[%s305] sm:%s297] %v306
                %v308 = vld [vmem:[%s304 + $0x10] sm:%s297]
                %309 = vst [vmem:[%s305 + $0x8] sm:%s297] %v308
                %v310 = vld [vmem:[%s304 + $0x20] sm:%s297]
                %311 = vst [vmem:[%s305 + $0x10] sm:%s297] %v310
                %v312 = vld [vmem:[%s304 + $0x30] sm:%s297]
                %313 = vst [vmem:[%s305 + $0x18] sm:%s297] %v312
              $region69: #{_ms_block_lanes.1} parent=63 // loop_footer
                %s303 = sadd.s32 1, %s299
              $region70: #{_ms_block_lanes.1} parent=63 // loop_footer_branch
                %298 = sbr.rel target = $region66
              $region71: #{_ms_block_lanes.1} parent=63 // loop_exit
                _
            $region64: #{_ms_block_lanes.1} parent=55 // pred_fallthru
              _
          $region56: #{_ms_block_lanes.1} parent=51 // pred_fallthru
            _
          %334 = vnop
        $region52: #{_ms_block_lanes.1} parent=47 // pred_fallthru
          _
      $region48: #{_ms_block_lanes.1} parent=5 // pred_fallthru
        _
      %p335 = scmp.le.s32.totalorder 1, %s18
      %p336 = scmp.lt.s32.totalorder %s18, 3
      %p337 = pnand %p335, %p336
      %p338 = pneg %p337
      // Predicated region
      $region87: #{_ms_block_lanes.1} parent=5 // pred_check
        _
      $region88: #{_ms_block_lanes.1} parent=5 // pred_check_branch
        %340 = sbr.rel (%p337) target = $region90
      $region89: #{_ms_block_lanes.1} parent=5 // pred_region
        %s341 = ssub.s32 %s18, 1
        %s342 = sand.u32 %s31, 1
        %s343 = sand.u32 %s31, 1
        %s344 = smul.addr %s343, 32
        %s345 = scalar_lea.vmem [#allocation3], %s344
        // Predicated region
        $region91: #{_ms_block_lanes.1} parent=89 // pred_check
          %p346 = pneg %p44
        $region92: #{_ms_block_lanes.1} parent=89 // pred_check_branch
          %348 = sbr.rel (%p346) target = $region94
        $region93: #{_ms_block_lanes.1} parent=89 // pred_region
          _
        $region94: #{_ms_block_lanes.1} parent=89 // pred_fallthru
          _
        %s349 = sand.u32 %s31, 1
        %s350 = sand.u32 %s31, 1
        %s351 = smul.addr %s350, 32
        %s352 = scalar_lea.vmem [#allocation3], %s351
        %p353 = pneg %p44
        %p354 = pneg %p41
        %p355 = pneg %p65
        %p356 = pneg %p62
        %p357 = pneg %p86
        %p358 = pneg %p83
        %p359 = pneg %p107
        %p360 = pneg %p104
        %p361 = pneg %p128
        %p362 = pneg %p125
        %p363 = pneg %p149
        %p364 = pneg %p146
        %p365 = pneg %p170
        %p366 = pneg %p167
        %p367 = pneg %p191
        %p368 = pneg %p188
        %p369 = pneg %p212
        %p370 = pneg %p209
        %p371 = pneg %p238
        %p372 = pneg %p235
        %s373 = sand.u32 %s225, 1
        %s374 = scalar_lea.sflag [#allocation5], %s373
        %s375 = sand.u32 %s225, 1
        %s376 = smul.addr %s375, 32
        %s377 = scalar_lea.vmem [#allocation4], %s376
        %v379 = vld [vmem:[%s345] sm:$0xff]
        %v380 = vld [vmem:[%s345 + $0x8] sm:$0xff]
        %v381 = vld [vmem:[%s345 + $0x10] sm:$0xff]
        %v382 = vld [vmem:[%s345 + $0x18] sm:$0xff]
        %v383 = vmax.f32 %v379, 0.0
        %v384 = vmax.f32 %v380, 0.0
        %v385 = vmax.f32 %v381, 0.0
        %v386 = vmax.f32 %v382, 0.0
        %v387 = vmin.f32 %v383, 8.0
        %v388 = vmin.f32 %v384, 8.0
        %v389 = vmin.f32 %v385, 8.0
        %v390 = vmin.f32 %v386, 8.0
        %v391 = vadd.f32 %v387, 0.5
        %v392 = vadd.f32 %v388, 0.5
        %v393 = vadd.f32 %v389, 0.5
        %v394 = vadd.f32 %v390, 0.5
        %v395 = vfloor.f32 %v391
        %v396 = vfloor.f32 %v392
        %v397 = vfloor.f32 %v393
        %v398 = vfloor.f32 %v394
        %v399 = vmul.f32 %v395, 0.125
        %v400 = vmul.f32 %v396, 0.125
        %v401 = vmul.f32 %v397, 0.125
        %v402 = vmul.f32 %v398, 0.125
        %v403 = vpack.c.bf16 %v400, %v399
        %v404 = vpack.c.bf16 %v402, %v401
        %v405 = vld [vmem:[%s1] sm:$0xf]
        %v406 = vld [vmem:[%s1 + $0x4] sm:$0xf]
        %v407 = vld [vmem:[%s1 + $0x8] sm:$0xf]
        %v408 = vld [vmem:[%s1 + $0xc] sm:$0xf]
        %v409 = vld [vmem:[%s1 + $0x10] sm:$0xf]
        %v410 = vld [vmem:[%s1 + $0x14] sm:$0xf]
        %v411 = vld [vmem:[%s1 + $0x18] sm:$0xf]
        %v412 = vld [vmem:[%s1 + $0x1c] sm:$0xf]
        %v413 = vld [vmem:[%s1 + $0x20] sm:$0xf]
        %v414 = vld [vmem:[%s1 + $0x24] sm:$0xf]
        %v415 = vld [vmem:[%s1 + $0x28] sm:$0xf]
        %v416 = vld [vmem:[%s1 + $0x2c] sm:$0xf]
        %v417 = vld [vmem:[%s1 + $0x30] sm:$0xf]
        %v418 = vld [vmem:[%s1 + $0x34] sm:$0xf]
        %v419 = vld [vmem:[%s1 + $0x38] sm:$0xf]
        %v420 = vld [vmem:[%s1 + $0x3c] sm:$0xf]
        %v421 = vld [vmem:[%s1 + $0x40] sm:$0xf]
        %v422 = vld [vmem:[%s1 + $0x44] sm:$0xf]
        %v423 = vld [vmem:[%s1 + $0x48] sm:$0xf]
        %v424 = vld [vmem:[%s1 + $0x4c] sm:$0xf]
        %v425 = vld [vmem:[%s1 + $0x50] sm:$0xf]
        %v426 = vld [vmem:[%s1 + $0x54] sm:$0xf]
        %v427 = vld [vmem:[%s1 + $0x58] sm:$0xf]
        %v428 = vld [vmem:[%s1 + $0x5c] sm:$0xf]
        %v429 = vld [vmem:[%s2] sm:$0xff]
        %v430 = vld [vmem:[%s2 + $0x8] sm:$0xff]
        %v431 = vld [vmem:[%s2 + $0x10] sm:$0xff]
        %v432 = vld [vmem:[%s2 + $0x18] sm:$0xff]
        %v433 = vld [vmem:[%s2 + $0x20] sm:$0xff]
        %v434 = vld [vmem:[%s2 + $0x28] sm:$0xff]
        %v435 = vld [vmem:[%s2 + $0x30] sm:$0xff]
        %v436 = vld [vmem:[%s2 + $0x38] sm:$0xff]
        %v437 = vld [vmem:[%s2 + $0x40] sm:$0xff]
        %v438 = vld [vmem:[%s2 + $0x48] sm:$0xff]
        %v439 = vld [vmem:[%s2 + $0x50] sm:$0xff]
        %v440 = vld [vmem:[%s2 + $0x58] sm:$0xff]
        %v441 = vld [vmem:[%s2 + $0x60] sm:$0xff]
        %v442 = vld [vmem:[%s2 + $0x68] sm:$0xff]
        %v443 = vld [vmem:[%s2 + $0x70] sm:$0xff]
        %v444 = vld [vmem:[%s2 + $0x78] sm:$0xff]
        %v445 = vld [vmem:[%s2 + $0x80] sm:$0xff]
        %v446 = vld [vmem:[%s2 + $0x88] sm:$0xff]
        %v447 = vld [vmem:[%s2 + $0x90] sm:$0xff]
        %v448 = vld [vmem:[%s2 + $0x98] sm:$0xff]
        %v449 = vld [vmem:[%s2 + $0xa0] sm:$0xff]
        %v450 = vld [vmem:[%s2 + $0xa8] sm:$0xff]
        %v451 = vld [vmem:[%s2 + $0xb0] sm:$0xff]
        %v452 = vld [vmem:[%s2 + $0xb8] sm:$0xff]
        %454 = vset.pattern.permute.xlu0 0
        %455 = vperm.xlu0 %454, %v429
        %v456 = vpop.permute.xlu0 %455
        %459 = vset.pattern.permute.xlu0 0
        %460 = vperm.xlu0 %459, %v430
        %v461 = vpop.permute.xlu0 %460
        %464 = vset.pattern.permute.xlu0 0
        %465 = vperm.xlu0 %464, %v431
        %v466 = vpop.permute.xlu0 %465
        %469 = vset.pattern.permute.xlu0 0
        %470 = vperm.xlu0 %469, %v432
        %v471 = vpop.permute.xlu0 %470
        %474 = vset.pattern.permute.xlu0 0
        %475 = vperm.xlu0 %474, %v433
        %v476 = vpop.permute.xlu0 %475
        %479 = vset.pattern.permute.xlu0 0
        %480 = vperm.xlu0 %479, %v434
        %v481 = vpop.permute.xlu0 %480
        %484 = vset.pattern.permute.xlu0 0
        %485 = vperm.xlu0 %484, %v435
        %v486 = vpop.permute.xlu0 %485
        %489 = vset.pattern.permute.xlu0 0
        %490 = vperm.xlu0 %489, %v436
        %v491 = vpop.permute.xlu0 %490
        %494 = vset.pattern.permute.xlu0 0
        %495 = vperm.xlu0 %494, %v437
        %v496 = vpop.permute.xlu0 %495
        %499 = vset.pattern.permute.xlu0 0
        %500 = vperm.xlu0 %499, %v438
        %v501 = vpop.permute.xlu0 %500
        %504 = vset.pattern.permute.xlu0 0
        %505 = vperm.xlu0 %504, %v439
        %v506 = vpop.permute.xlu0 %505
        %509 = vset.pattern.permute.xlu0 0
        %510 = vperm.xlu0 %509, %v440
        %v511 = vpop.permute.xlu0 %510
        %514 = vset.pattern.permute.xlu0 0
        %515 = vperm.xlu0 %514, %v441
        %v516 = vpop.permute.xlu0 %515
        %519 = vset.pattern.permute.xlu0 0
        %520 = vperm.xlu0 %519, %v442
        %v521 = vpop.permute.xlu0 %520
        %524 = vset.pattern.permute.xlu0 0
        %525 = vperm.xlu0 %524, %v443
        %v526 = vpop.permute.xlu0 %525
        %529 = vset.pattern.permute.xlu0 0
        %530 = vperm.xlu0 %529, %v444
        %v531 = vpop.permute.xlu0 %530
        %534 = vset.pattern.permute.xlu0 0
        %535 = vperm.xlu0 %534, %v445
        %v536 = vpop.permute.xlu0 %535
        %539 = vset.pattern.permute.xlu0 0
        %540 = vperm.xlu0 %539, %v446
        %v541 = vpop.permute.xlu0 %540
        %544 = vset.pattern.permute.xlu0 0
        %545 = vperm.xlu0 %544, %v447
        %v546 = vpop.permute.xlu0 %545
        %549 = vset.pattern.permute.xlu0 0
        %550 = vperm.xlu0 %549, %v448
        %v551 = vpop.permute.xlu0 %550
        %554 = vset.pattern.permute.xlu0 0
        %555 = vperm.xlu0 %554, %v449
        %v556 = vpop.permute.xlu0 %555
        %559 = vset.pattern.permute.xlu0 0
        %560 = vperm.xlu0 %559, %v450
        %v561 = vpop.permute.xlu0 %560
        %564 = vset.pattern.permute.xlu0 0
        %565 = vperm.xlu0 %564, %v451
        %v566 = vpop.permute.xlu0 %565
        %569 = vset.pattern.permute.xlu0 0
        %570 = vperm.xlu0 %569, %v452
        %v571 = vpop.permute.xlu0 %570
        %v597 = vunpack.c.l.b16 %v405
        %v598 = vunpack.c.l.b16 %v406
        %v599 = vunpack.c.l.b16 %v407
        %v600 = vunpack.c.l.b16 %v408
        %v601 = vunpack.c.l.b16 %v409
        %v602 = vunpack.c.l.b16 %v410
        %v603 = vunpack.c.l.b16 %v411
        %v604 = vunpack.c.l.b16 %v412
        %v605 = vunpack.c.l.b16 %v413
        %v606 = vunpack.c.l.b16 %v414
        %v607 = vunpack.c.l.b16 %v415
        %v608 = vunpack.c.l.b16 %v416
        %v609 = vunpack.c.l.b16 %v417
        %v610 = vunpack.c.l.b16 %v418
        %v611 = vunpack.c.l.b16 %v419
        %v612 = vunpack.c.l.b16 %v420
        %v613 = vunpack.c.l.b16 %v421
        %v614 = vunpack.c.l.b16 %v422
        %v615 = vunpack.c.l.b16 %v423
        %v616 = vunpack.c.l.b16 %v424
        %v617 = vunpack.c.l.b16 %v425
        %v618 = vunpack.c.l.b16 %v426
        %v619 = vunpack.c.l.b16 %v427
        %v620 = vunpack.c.l.b16 %v428
        %v621 = vpack.c.b16 %v598, %v597
        %v622 = vpack.c.b16 %v600, %v599
        %v623 = vpack.c.b16 %v602, %v601
        %v624 = vpack.c.b16 %v604, %v603
        %v625 = vpack.c.b16 %v606, %v605
        %v626 = vpack.c.b16 %v608, %v607
        %v627 = vpack.c.b16 %v610, %v609
        %v628 = vpack.c.b16 %v612, %v611
        %v629 = vpack.c.b16 %v614, %v613
        %v630 = vpack.c.b16 %v616, %v615
        %v631 = vpack.c.b16 %v618, %v617
        %v632 = vpack.c.b16 %v620, %v619
        %vm633 = vcmask 261120
        %v635 = vsel %vm633, %v621, 0
        %v638 = vsel %vm633, %v622, 0
        %v641 = vsel %vm633, %v623, 0
        %v644 = vsel %vm633, %v624, 0
        %v647 = vsel %vm633, %v625, 0
        %v650 = vsel %vm633, %v626, 0
        %v653 = vsel %vm633, %v627, 0
        %v656 = vsel %vm633, %v628, 0
        %v659 = vsel %vm633, %v629, 0
        %v662 = vsel %vm633, %v630, 0
        %v665 = vsel %vm633, %v631, 0
        %v668 = vsel %vm633, %v632, 0
        %670 = vmatprep.subr.bf16.mxu0 0
        %671 = vmatpush1.bf16.msra.mxu0 0
        %672 = vmatprep.subr.bf16.mxu0 0
        %673 = vmatpush1.bf16.msra.mxu0 0
        %674 = vmatprep.subr.bf16.mxu0 0
        %675 = vmatpush1.bf16.msra.mxu0 0
        %676 = vmatprep.subr.bf16.mxu0 0
        %677 = vmatpush1.bf16.msra.mxu0 0
        %678 = vmatprep.subr.bf16.mxu0 0
        %679 = vmatpush1.bf16.msra.mxu0 0
        %680 = vmatprep.subr.bf16.mxu0 0
        %681 = vmatpush1.bf16.msra.mxu0 0
        %682 = vmatprep.subr.bf16.mxu0 0
        %683 = vmatpush1.bf16.msra.mxu0 %v404
        %684 = vmatprep.subr.bf16.mxu0 0
        %685 = vmatpush1.bf16.msra.mxu0 %v403
        %686 = vmatprep.subr.bf16.mxu0 0
        %687 = vmatpush2.bf16.msra.mxu0 0
        %688 = vmatprep.subr.bf16.mxu0 0
        %689 = vmatpush2.bf16.msra.mxu0 0
        %690 = vmatprep.subr.bf16.mxu0 0
        %691 = vmatpush2.bf16.msra.mxu0 0
        %692 = vmatprep.subr.bf16.mxu0 0
        %693 = vmatpush2.bf16.msra.mxu0 0
        %694 = vmatprep.subr.bf16.mxu0 0
        %695 = vmatpush2.bf16.msra.mxu0 0
        %696 = vmatprep.subr.bf16.mxu0 0
        %697 = vmatpush2.bf16.msra.mxu0 0
        %698 = vmatprep.subr.bf16.mxu0 0
        %699 = vmatpush2.bf16.msra.mxu0 0
        %700 = vmatprep.subr.bf16.mxu0 0
        %701 = vmatpush2.bf16.msra.mxu0 0
        %702 = vmatprep.mubr.bf16.mxu0 0
        %703 = vmatmul.mubr.bf16.gmra.mxu0 %v635
        %v704 = vpop.f32.mrf.mxu0
        %v705 = vadd.f32 %v456, %v704
        %v706 = vpop.f32.mrf.mxu0
        %v707 = vpop.f32.mrf.mxu0
        %v708 = vadd.f32 %v461, %v707
        %v709 = vpop.f32.mrf.mxu0
        %710 = vmatprep.mubr.bf16.mxu0 0
        %711 = vmatmul.mubr.bf16.gmra.mxu0 %v638
        %v712 = vpop.f32.mrf.mxu0
        %v713 = vadd.f32 %v466, %v712
        %v714 = vpop.f32.mrf.mxu0
        %v715 = vpop.f32.mrf.mxu0
        %v716 = vadd.f32 %v471, %v715
        %v717 = vpop.f32.mrf.mxu0
        %718 = vmatprep.mubr.bf16.mxu0 0
        %719 = vmatmul.mubr.bf16.gmra.mxu0 %v641
        %v720 = vpop.f32.mrf.mxu0
        %v721 = vadd.f32 %v476, %v720
        %v722 = vpop.f32.mrf.mxu0
        %v723 = vpop.f32.mrf.mxu0
        %v724 = vadd.f32 %v481, %v723
        %v725 = vpop.f32.mrf.mxu0
        %726 = vmatprep.mubr.bf16.mxu0 0
        %727 = vmatmul.mubr.bf16.gmra.mxu0 %v644
        %v728 = vpop.f32.mrf.mxu0
        %v729 = vadd.f32 %v486, %v728
        %v730 = vpop.f32.mrf.mxu0
        %v731 = vpop.f32.mrf.mxu0
        %v732 = vadd.f32 %v491, %v731
        %v733 = vpop.f32.mrf.mxu0
        %734 = vmatprep.mubr.bf16.mxu0 0
        %735 = vmatmul.mubr.bf16.gmra.mxu0 %v647
        %v736 = vpop.f32.mrf.mxu0
        %v737 = vadd.f32 %v496, %v736
        %v738 = vpop.f32.mrf.mxu0
        %v739 = vpop.f32.mrf.mxu0
        %v740 = vadd.f32 %v501, %v739
        %v741 = vpop.f32.mrf.mxu0
        %742 = vmatprep.mubr.bf16.mxu0 0
        %743 = vmatmul.mubr.bf16.gmra.mxu0 %v650
        %v744 = vpop.f32.mrf.mxu0
        %v745 = vadd.f32 %v506, %v744
        %v746 = vpop.f32.mrf.mxu0
        %v747 = vpop.f32.mrf.mxu0
        %v748 = vadd.f32 %v511, %v747
        %v749 = vpop.f32.mrf.mxu0
        %750 = vmatprep.mubr.bf16.mxu0 0
        %751 = vmatmul.mubr.bf16.gmra.mxu0 %v653
        %v752 = vpop.f32.mrf.mxu0
        %v753 = vadd.f32 %v516, %v752
        %v754 = vpop.f32.mrf.mxu0
        %v755 = vpop.f32.mrf.mxu0
        %v756 = vadd.f32 %v521, %v755
        %v757 = vpop.f32.mrf.mxu0
        %758 = vmatprep.mubr.bf16.mxu0 0
        %759 = vmatmul.mubr.bf16.gmra.mxu0 %v656
        %v760 = vpop.f32.mrf.mxu0
        %v761 = vadd.f32 %v526, %v760
        %v762 = vpop.f32.mrf.mxu0
        %v763 = vpop.f32.mrf.mxu0
        %v764 = vadd.f32 %v531, %v763
        %v765 = vpop.f32.mrf.mxu0
        %766 = vmatprep.mubr.bf16.mxu0 0
        %767 = vmatmul.mubr.bf16.gmra.mxu0 %v659
        %v768 = vpop.f32.mrf.mxu0
        %v769 = vadd.f32 %v536, %v768
        %v770 = vpop.f32.mrf.mxu0
        %v771 = vpop.f32.mrf.mxu0
        %v772 = vadd.f32 %v541, %v771
        %v773 = vpop.f32.mrf.mxu0
        %774 = vmatprep.mubr.bf16.mxu0 0
        %775 = vmatmul.mubr.bf16.gmra.mxu0 %v662
        %v776 = vpop.f32.mrf.mxu0
        %v777 = vadd.f32 %v546, %v776
        %v778 = vpop.f32.mrf.mxu0
        %v779 = vpop.f32.mrf.mxu0
        %v780 = vadd.f32 %v551, %v779
        %v781 = vpop.f32.mrf.mxu0
        %782 = vmatprep.mubr.bf16.mxu0 0
        %783 = vmatmul.mubr.bf16.gmra.mxu0 %v665
        %v784 = vpop.f32.mrf.mxu0
        %v785 = vadd.f32 %v556, %v784
        %v786 = vpop.f32.mrf.mxu0
        %v787 = vpop.f32.mrf.mxu0
        %v788 = vadd.f32 %v561, %v787
        %v789 = vpop.f32.mrf.mxu0
        %790 = vmatprep.mubr.bf16.mxu0 0
        %791 = vmatmul.mubr.bf16.gmra.mxu0 %v668
        %v792 = vpop.f32.mrf.mxu0
        %v793 = vadd.f32 %v566, %v792
        %v794 = vpop.f32.mrf.mxu0
        %v795 = vpop.f32.mrf.mxu0
        %v796 = vadd.f32 %v571, %v795
        %v797 = vpop.f32.mrf.mxu0
        %798 = vdwg.mxu0
        %v799 = vmax.f32 %v705, 0.0
        %v800 = vmax.f32 %v708, 0.0
        %v801 = vmax.f32 %v713, 0.0
        %v802 = vmax.f32 %v716, 0.0
        %v803 = vmin.f32 %v799, 8.0
        %v804 = vmin.f32 %v800, 8.0
        %v805 = vmin.f32 %v801, 8.0
        %v806 = vmin.f32 %v802, 8.0
        %v807 = vadd.f32 %v803, 0.5
        %v808 = vadd.f32 %v804, 0.5
        %v809 = vadd.f32 %v805, 0.5
        %v810 = vadd.f32 %v806, 0.5
        %v811 = vfloor.f32 %v807
        %v812 = vfloor.f32 %v808
        %v813 = vfloor.f32 %v809
        %v814 = vfloor.f32 %v810
        %v815 = vmul.f32 %v811, 0.125
        %v816 = vmul.f32 %v812, 0.125
        %v817 = vmul.f32 %v813, 0.125
        %v818 = vmul.f32 %v814, 0.125
        %v819 = vmax.f32 %v721, 0.0
        %v820 = vmax.f32 %v724, 0.0
        %v821 = vmax.f32 %v729, 0.0
        %v822 = vmax.f32 %v732, 0.0
        %v823 = vmin.f32 %v819, 8.0
        %v824 = vmin.f32 %v820, 8.0
        %v825 = vmin.f32 %v821, 8.0
        %v826 = vmin.f32 %v822, 8.0
        %v827 = vadd.f32 %v823, 0.5
        %v828 = vadd.f32 %v824, 0.5
        %v829 = vadd.f32 %v825, 0.5
        %v830 = vadd.f32 %v826, 0.5
        %v831 = vfloor.f32 %v827
        %v832 = vfloor.f32 %v828
        %v833 = vfloor.f32 %v829
        %v834 = vfloor.f32 %v830
        %v835 = vmul.f32 %v831, 0.125
        %v836 = vmul.f32 %v832, 0.125
        %v837 = vmul.f32 %v833, 0.125
        %v838 = vmul.f32 %v834, 0.125
        %v839 = vmax.f32 %v737, 0.0
        %v840 = vmax.f32 %v740, 0.0
        %v841 = vmax.f32 %v745, 0.0
        %v842 = vmax.f32 %v748, 0.0
        %v843 = vmax.f32 %v753, 0.0
        %v844 = vmax.f32 %v756, 0.0
        %v845 = vmax.f32 %v761, 0.0
        %v846 = vmax.f32 %v764, 0.0
        %v847 = vmax.f32 %v769, 0.0
        %v848 = vmax.f32 %v772, 0.0
        %v849 = vmax.f32 %v777, 0.0
        %v850 = vmax.f32 %v780, 0.0
        %v851 = vmax.f32 %v785, 0.0
        %v852 = vmax.f32 %v788, 0.0
        %v853 = vmax.f32 %v793, 0.0
        %v854 = vmax.f32 %v796, 0.0
        %v855 = vmin.f32 %v839, 8.0
        %v856 = vmin.f32 %v840, 8.0
        %v857 = vmin.f32 %v841, 8.0
        %v858 = vmin.f32 %v842, 8.0
        %v859 = vmin.f32 %v843, 8.0
        %v860 = vmin.f32 %v844, 8.0
        %v861 = vmin.f32 %v845, 8.0
        %v862 = vmin.f32 %v846, 8.0
        %v863 = vmin.f32 %v847, 8.0
        %v864 = vmin.f32 %v848, 8.0
        %v865 = vmin.f32 %v849, 8.0
        %v866 = vmin.f32 %v850, 8.0
        %v867 = vmin.f32 %v851, 8.0
        %v868 = vmin.f32 %v852, 8.0
        %v869 = vmin.f32 %v853, 8.0
        %v870 = vmin.f32 %v854, 8.0
        %v871 = vadd.f32 %v855, 0.5
        %v872 = vadd.f32 %v856, 0.5
        %v873 = vadd.f32 %v857, 0.5
        %v874 = vadd.f32 %v858, 0.5
        %v875 = vadd.f32 %v859, 0.5
        %v876 = vadd.f32 %v860, 0.5
        %v877 = vadd.f32 %v861, 0.5
        %v878 = vadd.f32 %v862, 0.5
        %v879 = vadd.f32 %v863, 0.5
        %v880 = vadd.f32 %v864, 0.5
        %v881 = vadd.f32 %v865, 0.5
        %v882 = vadd.f32 %v866, 0.5
        %v883 = vadd.f32 %v867, 0.5
        %v884 = vadd.f32 %v868, 0.5
        %v885 = vadd.f32 %v869, 0.5
        %v886 = vadd.f32 %v870, 0.5
        %v887 = vfloor.f32 %v871
        %v888 = vfloor.f32 %v872
        %v889 = vfloor.f32 %v873
        %v890 = vfloor.f32 %v874
        %v891 = vfloor.f32 %v875
        %v892 = vfloor.f32 %v876
        %v893 = vfloor.f32 %v877
        %v894 = vfloor.f32 %v878
        %v895 = vfloor.f32 %v879
        %v896 = vfloor.f32 %v880
        %v897 = vfloor.f32 %v881
        %v898 = vfloor.f32 %v882
        %v899 = vfloor.f32 %v883
        %v900 = vfloor.f32 %v884
        %v901 = vfloor.f32 %v885
        %v902 = vfloor.f32 %v886
        %v903 = vmul.f32 %v887, 0.125
        %v904 = vmul.f32 %v888, 0.125
        %v905 = vmul.f32 %v889, 0.125
        %v906 = vmul.f32 %v890, 0.125
        %v907 = vmul.f32 %v891, 0.125
        %v908 = vmul.f32 %v892, 0.125
        %v909 = vmul.f32 %v893, 0.125
        %v910 = vmul.f32 %v894, 0.125
        %v911 = vmul.f32 %v895, 0.125
        %v912 = vmul.f32 %v896, 0.125
        %v913 = vmul.f32 %v897, 0.125
        %v914 = vmul.f32 %v898, 0.125
        %v915 = vmul.f32 %v899, 0.125
        %v916 = vmul.f32 %v900, 0.125
        %v917 = vmul.f32 %v901, 0.125
        %v918 = vmul.f32 %v902, 0.125
        %919 = vxpose.xlu0.b32.start [1/16] %v835, 128
        %920 = vxpose.xlu0.b32.cont [2/16] %v836, 128
        %921 = vxpose.xlu0.b32.cont [3/16] %v837, 128
        %922 = vxpose.xlu0.b32.cont [4/16] %v838, 128
        %923 = vxpose.xlu0.b32.cont [5/16] 0.0, 128
        %924 = vxpose.xlu0.b32.cont [6/16] 0.0, 128
        %925 = vxpose.xlu0.b32.cont [7/16] 0.0, 128
        %926 = vxpose.xlu0.b32.cont [8/16] 0.0, 128
        %927 = vxpose.xlu0.b32.cont [9/16] 0.0, 128
        %928 = vxpose.xlu0.b32.cont [10/16] 0.0, 128
        %929 = vxpose.xlu0.b32.cont [11/16] 0.0, 128
        %930 = vxpose.xlu0.b32.cont [12/16] 0.0, 128
        %931 = vxpose.xlu0.b32.cont [13/16] 0.0, 128
        %932 = vxpose.xlu0.b32.cont [14/16] 0.0, 128
        %933 = vxpose.xlu0.b32.cont [15/16] 0.0, 128
        %934 = vxpose.xlu0.b32.end [16/16] 0.0, 128
        %v935 = vpop.trf.xlu0
        %v936 = vpop.trf.xlu0
        %v937 = vpop.trf.xlu0
        %v938 = vpop.trf.xlu0
        %v939 = vpop.trf.xlu0
        %v940 = vpop.trf.xlu0
        %v941 = vpop.trf.xlu0
        %v942 = vpop.trf.xlu0
        %v943 = vpop.trf.xlu0
        %v944 = vpop.trf.xlu0
        %v945 = vpop.trf.xlu0
        %v946 = vpop.trf.xlu0
        %v947 = vpop.trf.xlu0
        %v948 = vpop.trf.xlu0
        %v949 = vpop.trf.xlu0
        %v950 = vpop.trf.xlu0
        %v951 = vpack.c.bf16 %v815, %v815
        %v952 = vpack.c.bf16 %v936, %v935
        %v953 = vpack.c.bf16 %v938, %v937
        %v954 = vpack.c.bf16 %v940, %v939
        %v955 = vpack.c.bf16 %v942, %v941
        %v956 = vpack.c.bf16 %v904, %v903
        %v957 = vpack.c.bf16 %v906, %v905
        %vm958 = vcmask 523264
        %v960 = vsel %vm958, %v956, 0
        %v963 = vsel %vm958, %v957, 0
        %965 = vmatprep.subr.bf16.mxu0 0
        %966 = vmatpush1.bf16.msra.mxu0 0
        %967 = vmatprep.subr.bf16.mxu0 0
        %968 = vmatpush1.bf16.msra.mxu0 0
        %969 = vmatprep.subr.bf16.mxu0 0
        %970 = vmatpush1.bf16.msra.mxu0 0
        %971 = vmatprep.subr.bf16.mxu0 0
        %972 = vmatpush1.bf16.msra.mxu0 0
        %973 = vmatprep.subr.bf16.mxu0 0
        %974 = vmatpush1.bf16.msra.mxu0 %v955
        %975 = vmatprep.subr.bf16.mxu0 0
        %976 = vmatpush1.bf16.msra.mxu0 %v954
        %977 = vmatprep.subr.bf16.mxu0 0
        %978 = vmatpush1.bf16.msra.mxu0 %v953
        %979 = vmatprep.subr.bf16.mxu0 0
        %980 = vmatpush1.bf16.msra.mxu0 %v952
        %981 = vmatprep.subr.bf16.mxu0 0
        %982 = vmatpush2.bf16.msra.mxu0 0
        %983 = vmatprep.subr.bf16.mxu0 0
        %984 = vmatpush2.bf16.msra.mxu0 0
        %985 = vmatprep.subr.bf16.mxu0 0
        %986 = vmatpush2.bf16.msra.mxu0 0
        %987 = vmatprep.subr.bf16.mxu0 0
        %988 = vmatpush2.bf16.msra.mxu0 0
        %989 = vmatprep.subr.bf16.mxu0 0
        %990 = vmatpush2.bf16.msra.mxu0 0
        %991 = vmatprep.subr.bf16.mxu0 0
        %992 = vmatpush2.bf16.msra.mxu0 0
        %993 = vmatprep.subr.bf16.mxu0 0
        %994 = vmatpush2.bf16.msra.mxu0 0
        %995 = vmatprep.subr.bf16.mxu0 0
        %996 = vmatpush2.bf16.msra.mxu0 0
        %997 = vmatprep.mubr.bf16.mxu0 0
        %998 = vmatmul.mubr.bf16.gmra.mxu0 %v960
        %v999 = vpop.f32.mrf.mxu0
        %v1000 = vadd.f32 0.0, %v999
        %v1001 = vpop.f32.mrf.mxu0
        %v1002 = vpop.f32.mrf.mxu0
        %v1003 = vadd.f32 0.0, %v1002
        %v1004 = vpop.f32.mrf.mxu0
        %1005 = vmatprep.mubr.bf16.mxu0 0
        %1006 = vmatmul.mubr.bf16.gmra.mxu0 %v963
        %v1007 = vpop.f32.mrf.mxu0
        %v1008 = vadd.f32 0.0, %v1007
        %v1009 = vpop.f32.mrf.mxu0
        %v1010 = vpop.f32.mrf.mxu0
        %v1011 = vadd.f32 0.0, %v1010
        %v1012 = vpop.f32.mrf.mxu0
        %1013 = vdwg.mxu0
        %v1014 = vmul.f32 %v1000, 0.25
        %v1015 = vmul.f32 %v1003, 0.25
        %v1016 = vmul.f32 %v1008, 0.25
        %v1017 = vmul.f32 %v1011, 0.25
        %v1018 = vpack.c.bf16 %v1015, %v1014
        %v1019 = vpack.c.bf16 %v1017, %v1016
        %vm1020 = vcmask 64512
        %v1022 = vsel %vm1020, %v1018, 0
        %v1025 = vsel %vm1020, %v1019, 0
        %vm1027 = vcmask 1043456
        %v1029 = vsel %vm1027, %v951, 0
        %1031 = vmatprep.subr.bf16.mxu0 0
        %1032 = vmatpush1.bf16.msra.mxu0 0
        %1033 = vmatprep.subr.bf16.mxu0 0
        %1034 = vmatpush1.bf16.msra.mxu0 0
        %1035 = vmatprep.subr.bf16.mxu0 0
        %1036 = vmatpush1.bf16.msra.mxu0 0
        %1037 = vmatprep.subr.bf16.mxu0 0
        %1038 = vmatpush1.bf16.msra.mxu0 0
        %1039 = vmatprep.subr.bf16.mxu0 0
        %1040 = vmatpush1.bf16.msra.mxu0 0
        %1041 = vmatprep.subr.bf16.mxu0 0
        %1042 = vmatpush1.bf16.msra.mxu0 0
        %1043 = vmatprep.subr.bf16.mxu0 0
        %1044 = vmatpush1.bf16.msra.mxu0 0
        %1045 = vmatprep.subr.bf16.mxu0 0
        %1046 = vmatpush1.bf16.msra.mxu0 %v1029
        %1047 = vmatprep.subr.bf16.mxu0 0
        %1048 = vmatpush2.bf16.msra.mxu0 0
        %1049 = vmatprep.subr.bf16.mxu0 0
        %1050 = vmatpush2.bf16.msra.mxu0 0
        %1051 = vmatprep.subr.bf16.mxu0 0
        %1052 = vmatpush2.bf16.msra.mxu0 0
        %1053 = vmatprep.subr.bf16.mxu0 0
        %1054 = vmatpush2.bf16.msra.mxu0 0
        %1055 = vmatprep.subr.bf16.mxu0 0
        %1056 = vmatpush2.bf16.msra.mxu0 0
        %1057 = vmatprep.subr.bf16.mxu0 0
        %1058 = vmatpush2.bf16.msra.mxu0 0
        %1059 = vmatprep.subr.bf16.mxu0 0
        %1060 = vmatpush2.bf16.msra.mxu0 0
        %1061 = vmatprep.subr.bf16.mxu0 0
        %1062 = vmatpush2.bf16.msra.mxu0 0
        %1063 = vmatprep.mubr.bf16.mxu0 0
        %1064 = vmatmul.mubr.bf16.gmra.mxu0 %v1022
        %v1065 = vpop.f32.mrf.mxu0
        %v1066 = vadd.f32 0.0, %v1065
        %v1067 = vpop.f32.mrf.mxu0
        %v1068 = vpop.f32.mrf.mxu0
        %v1069 = vadd.f32 0.0, %v1068
        %v1070 = vpop.f32.mrf.mxu0
        %1071 = vmatprep.mubr.bf16.mxu0 0
        %1072 = vmatmul.mubr.bf16.gmra.mxu0 %v1025
        %v1073 = vpop.f32.mrf.mxu0
        %v1074 = vadd.f32 0.0, %v1073
        %v1075 = vpop.f32.mrf.mxu0
        %v1076 = vpop.f32.mrf.mxu0
        %v1077 = vadd.f32 0.0, %v1076
        %v1078 = vpop.f32.mrf.mxu0
        %1079 = vdwg.mxu0
        %1080 = vst.msk [vmem:[#allocation2] sm:$0xff] %vm958, %v1066
        %1081 = vst.msk [vmem:[#allocation2 + $0x8] sm:$0xff] %vm958, %v1069
        %1082 = vst.msk [vmem:[#allocation2 + $0x10] sm:$0xff] %vm958, %v1074
        %1083 = vst.msk [vmem:[#allocation2 + $0x18] sm:$0xff] %vm958, %v1077
        %v1084 = vpack.c.bf16 %v816, %v816
        %v1085 = vpack.c.bf16 %v908, %v907
        %v1086 = vpack.c.bf16 %v910, %v909
        %1091 = vrot.lane.b32.xlu0 %v952, 120
        %v1092 = vpop.permute.xlu0 %1091
        %1093 = vrot.lane.b32.xlu0 %v953, 120
        %v1094 = vpop.permute.xlu0 %1093
        %1095 = vrot.lane.b32.xlu0 %v954, 120
        %v1096 = vpop.permute.xlu0 %1095
        %1097 = vrot.lane.b32.xlu0 %v955, 120
        %v1098 = vpop.permute.xlu0 %1097
        %v1104 = vsel %vm958, %v1085, 0
        %v1107 = vsel %vm958, %v1086, 0
        %1109 = vmatprep.subr.bf16.mxu0 0
        %1110 = vmatpush1.bf16.msra.mxu0 0
        %1111 = vmatprep.subr.bf16.mxu0 0
        %1112 = vmatpush1.bf16.msra.mxu0 0
        %1113 = vmatprep.subr.bf16.mxu0 0
        %1114 = vmatpush1.bf16.msra.mxu0 0
        %1115 = vmatprep.subr.bf16.mxu0 0
        %1116 = vmatpush1.bf16.msra.mxu0 0
        %1117 = vmatprep.subr.bf16.mxu0 0
        %1118 = vmatpush1.bf16.msra.mxu0 %v1098
        %1119 = vmatprep.subr.bf16.mxu0 0
        %1120 = vmatpush1.bf16.msra.mxu0 %v1096
        %1121 = vmatprep.subr.bf16.mxu0 0
        %1122 = vmatpush1.bf16.msra.mxu0 %v1094
        %1123 = vmatprep.subr.bf16.mxu0 0
        %1124 = vmatpush1.bf16.msra.mxu0 %v1092
        %1125 = vmatprep.subr.bf16.mxu0 0
        %1126 = vmatpush2.bf16.msra.mxu0 0
        %1127 = vmatprep.subr.bf16.mxu0 0
        %1128 = vmatpush2.bf16.msra.mxu0 0
        %1129 = vmatprep.subr.bf16.mxu0 0
        %1130 = vmatpush2.bf16.msra.mxu0 0
        %1131 = vmatprep.subr.bf16.mxu0 0
        %1132 = vmatpush2.bf16.msra.mxu0 0
        %1133 = vmatprep.subr.bf16.mxu0 0
        %1134 = vmatpush2.bf16.msra.mxu0 0
        %1135 = vmatprep.subr.bf16.mxu0 0
        %1136 = vmatpush2.bf16.msra.mxu0 0
        %1137 = vmatprep.subr.bf16.mxu0 0
        %1138 = vmatpush2.bf16.msra.mxu0 0
        %1139 = vmatprep.subr.bf16.mxu0 0
        %1140 = vmatpush2.bf16.msra.mxu0 0
        %1141 = vmatprep.mubr.bf16.mxu0 0
        %1142 = vmatmul.mubr.bf16.gmra.mxu0 %v1104
        %v1143 = vpop.f32.mrf.mxu0
        %v1144 = vadd.f32 0.0, %v1143
        %v1145 = vpop.f32.mrf.mxu0
        %v1146 = vpop.f32.mrf.mxu0
        %v1147 = vadd.f32 0.0, %v1146
        %v1148 = vpop.f32.mrf.mxu0
        %1149 = vmatprep.mubr.bf16.mxu0 0
        %1150 = vmatmul.mubr.bf16.gmra.mxu0 %v1107
        %v1151 = vpop.f32.mrf.mxu0
        %v1152 = vadd.f32 0.0, %v1151
        %v1153 = vpop.f32.mrf.mxu0
        %v1154 = vpop.f32.mrf.mxu0
        %v1155 = vadd.f32 0.0, %v1154
        %v1156 = vpop.f32.mrf.mxu0
        %1157 = vdwg.mxu0
        %v1158 = vmul.f32 %v1144, 0.25
        %v1159 = vmul.f32 %v1147, 0.25
        %v1160 = vmul.f32 %v1152, 0.25
        %v1161 = vmul.f32 %v1155, 0.25
        %v1162 = vpack.c.bf16 %v1159, %v1158
        %v1163 = vpack.c.bf16 %v1161, %v1160
        %v1165 = vsel %vm1020, %v1162, 0
        %v1168 = vsel %vm1020, %v1163, 0
        %v1171 = vsel %vm1027, %v1084, 0
        %1173 = vmatprep.subr.bf16.mxu0 0
        %1174 = vmatpush1.bf16.msra.mxu0 0
        %1175 = vmatprep.subr.bf16.mxu0 0
        %1176 = vmatpush1.bf16.msra.mxu0 0
        %1177 = vmatprep.subr.bf16.mxu0 0
        %1178 = vmatpush1.bf16.msra.mxu0 0
        %1179 = vmatprep.subr.bf16.mxu0 0
        %1180 = vmatpush1.bf16.msra.mxu0 0
        %1181 = vmatprep.subr.bf16.mxu0 0
        %1182 = vmatpush1.bf16.msra.mxu0 0
        %1183 = vmatprep.subr.bf16.mxu0 0
        %1184 = vmatpush1.bf16.msra.mxu0 0
        %1185 = vmatprep.subr.bf16.mxu0 0
        %1186 = vmatpush1.bf16.msra.mxu0 0
        %1187 = vmatprep.subr.bf16.mxu0 0
        %1188 = vmatpush1.bf16.msra.mxu0 %v1171
        %1189 = vmatprep.subr.bf16.mxu0 0
        %1190 = vmatpush2.bf16.msra.mxu0 0
        %1191 = vmatprep.subr.bf16.mxu0 0
        %1192 = vmatpush2.bf16.msra.mxu0 0
        %1193 = vmatprep.subr.bf16.mxu0 0
        %1194 = vmatpush2.bf16.msra.mxu0 0
        %1195 = vmatprep.subr.bf16.mxu0 0
        %1196 = vmatpush2.bf16.msra.mxu0 0
        %1197 = vmatprep.subr.bf16.mxu0 0
        %1198 = vmatpush2.bf16.msra.mxu0 0
        %1199 = vmatprep.subr.bf16.mxu0 0
        %1200 = vmatpush2.bf16.msra.mxu0 0
        %1201 = vmatprep.subr.bf16.mxu0 0
        %1202 = vmatpush2.bf16.msra.mxu0 0
        %1203 = vmatprep.subr.bf16.mxu0 0
        %1204 = vmatpush2.bf16.msra.mxu0 0
        %1205 = vmatprep.mubr.bf16.mxu0 0
        %1206 = vmatmul.mubr.bf16.gmra.mxu0 %v1165
        %v1207 = vpop.f32.mrf.mxu0
        %v1208 = vadd.f32 0.0, %v1207
        %v1209 = vpop.f32.mrf.mxu0
        %v1210 = vpop.f32.mrf.mxu0
        %v1211 = vadd.f32 0.0, %v1210
        %v1212 = vpop.f32.mrf.mxu0
        %1213 = vmatprep.mubr.bf16.mxu0 0
        %1214 = vmatmul.mubr.bf16.gmra.mxu0 %v1168
        %v1215 = vpop.f32.mrf.mxu0
        %v1216 = vadd.f32 0.0, %v1215
        %v1217 = vpop.f32.mrf.mxu0
        %v1218 = vpop.f32.mrf.mxu0
        %v1219 = vadd.f32 0.0, %v1218
        %v1220 = vpop.f32.mrf.mxu0
        %1221 = vdwg.mxu0
        %1222 = vst.msk [vmem:[#allocation2 + $0x20] sm:$0xff] %vm958, %v1208
        %1223 = vst.msk [vmem:[#allocation2 + $0x28] sm:$0xff] %vm958, %v1211
        %1224 = vst.msk [vmem:[#allocation2 + $0x30] sm:$0xff] %vm958, %v1216
        %1225 = vst.msk [vmem:[#allocation2 + $0x38] sm:$0xff] %vm958, %v1219
        %v1226 = vpack.c.bf16 %v817, %v817
        %v1227 = vpack.c.bf16 %v912, %v911
        %v1228 = vpack.c.bf16 %v914, %v913
        %1229 = vrot.lane.b32.xlu0 %v952, 112
        %v1230 = vpop.permute.xlu0 %1229
        %1231 = vrot.lane.b32.xlu0 %v953, 112
        %v1232 = vpop.permute.xlu0 %1231
        %1233 = vrot.lane.b32.xlu0 %v954, 112
        %v1234 = vpop.permute.xlu0 %1233
        %1235 = vrot.lane.b32.xlu0 %v955, 112
        %v1236 = vpop.permute.xlu0 %1235
        %v1242 = vsel %vm958, %v1227, 0
        %v1245 = vsel %vm958, %v1228, 0
        %1247 = vmatprep.subr.bf16.mxu0 0
        %1248 = vmatpush1.bf16.msra.mxu0 0
        %1249 = vmatprep.subr.bf16.mxu0 0
        %1250 = vmatpush1.bf16.msra.mxu0 0
        %1251 = vmatprep.subr.bf16.mxu0 0
        %1252 = vmatpush1.bf16.msra.mxu0 0
        %1253 = vmatprep.subr.bf16.mxu0 0
        %1254 = vmatpush1.bf16.msra.mxu0 0
        %1255 = vmatprep.subr.bf16.mxu0 0
        %1256 = vmatpush1.bf16.msra.mxu0 %v1236
        %1257 = vmatprep.subr.bf16.mxu0 0
        %1258 = vmatpush1.bf16.msra.mxu0 %v1234
        %1259 = vmatprep.subr.bf16.mxu0 0
        %1260 = vmatpush1.bf16.msra.mxu0 %v1232
        %1261 = vmatprep.subr.bf16.mxu0 0
        %1262 = vmatpush1.bf16.msra.mxu0 %v1230
        %1263 = vmatprep.subr.bf16.mxu0 0
        %1264 = vmatpush2.bf16.msra.mxu0 0
        %1265 = vmatprep.subr.bf16.mxu0 0
        %1266 = vmatpush2.bf16.msra.mxu0 0
        %1267 = vmatprep.subr.bf16.mxu0 0
        %1268 = vmatpush2.bf16.msra.mxu0 0
        %1269 = vmatprep.subr.bf16.mxu0 0
        %1270 = vmatpush2.bf16.msra.mxu0 0
        %1271 = vmatprep.subr.bf16.mxu0 0
        %1272 = vmatpush2.bf16.msra.mxu0 0
        %1273 = vmatprep.subr.bf16.mxu0 0
        %1274 = vmatpush2.bf16.msra.mxu0 0
        %1275 = vmatprep.subr.bf16.mxu0 0
        %1276 = vmatpush2.bf16.msra.mxu0 0
        %1277 = vmatprep.subr.bf16.mxu0 0
        %1278 = vmatpush2.bf16.msra.mxu0 0
        %1279 = vmatprep.mubr.bf16.mxu0 0
        %1280 = vmatmul.mubr.bf16.gmra.mxu0 %v1242
        %v1281 = vpop.f32.mrf.mxu0
        %v1282 = vadd.f32 0.0, %v1281
        %v1283 = vpop.f32.mrf.mxu0
        %v1284 = vpop.f32.mrf.mxu0
        %v1285 = vadd.f32 0.0, %v1284
        %v1286 = vpop.f32.mrf.mxu0
        %1287 = vmatprep.mubr.bf16.mxu0 0
        %1288 = vmatmul.mubr.bf16.gmra.mxu0 %v1245
        %v1289 = vpop.f32.mrf.mxu0
        %v1290 = vadd.f32 0.0, %v1289
        %v1291 = vpop.f32.mrf.mxu0
        %v1292 = vpop.f32.mrf.mxu0
        %v1293 = vadd.f32 0.0, %v1292
        %v1294 = vpop.f32.mrf.mxu0
        %1295 = vdwg.mxu0
        %v1296 = vmul.f32 %v1282, 0.25
        %v1297 = vmul.f32 %v1285, 0.25
        %v1298 = vmul.f32 %v1290, 0.25
        %v1299 = vmul.f32 %v1293, 0.25
        %v1300 = vpack.c.bf16 %v1297, %v1296
        %v1301 = vpack.c.bf16 %v1299, %v1298
        %v1303 = vsel %vm1020, %v1300, 0
        %v1306 = vsel %vm1020, %v1301, 0
        %v1309 = vsel %vm1027, %v1226, 0
        %1311 = vmatprep.subr.bf16.mxu0 0
        %1312 = vmatpush1.bf16.msra.mxu0 0
        %1313 = vmatprep.subr.bf16.mxu0 0
        %1314 = vmatpush1.bf16.msra.mxu0 0
        %1315 = vmatprep.subr.bf16.mxu0 0
        %1316 = vmatpush1.bf16.msra.mxu0 0
        %1317 = vmatprep.subr.bf16.mxu0 0
        %1318 = vmatpush1.bf16.msra.mxu0 0
        %1319 = vmatprep.subr.bf16.mxu0 0
        %1320 = vmatpush1.bf16.msra.mxu0 0
        %1321 = vmatprep.subr.bf16.mxu0 0
        %1322 = vmatpush1.bf16.msra.mxu0 0
        %1323 = vmatprep.subr.bf16.mxu0 0
        %1324 = vmatpush1.bf16.msra.mxu0 0
        %1325 = vmatprep.subr.bf16.mxu0 0
        %1326 = vmatpush1.bf16.msra.mxu0 %v1309
        %1327 = vmatprep.subr.bf16.mxu0 0
        %1328 = vmatpush2.bf16.msra.mxu0 0
        %1329 = vmatprep.subr.bf16.mxu0 0
        %1330 = vmatpush2.bf16.msra.mxu0 0
        %1331 = vmatprep.subr.bf16.mxu0 0
        %1332 = vmatpush2.bf16.msra.mxu0 0
        %1333 = vmatprep.subr.bf16.mxu0 0
        %1334 = vmatpush2.bf16.msra.mxu0 0
        %1335 = vmatprep.subr.bf16.mxu0 0
        %1336 = vmatpush2.bf16.msra.mxu0 0
        %1337 = vmatprep.subr.bf16.mxu0 0
        %1338 = vmatpush2.bf16.msra.mxu0 0
        %1339 = vmatprep.subr.bf16.mxu0 0
        %1340 = vmatpush2.bf16.msra.mxu0 0
        %1341 = vmatprep.subr.bf16.mxu0 0
        %1342 = vmatpush2.bf16.msra.mxu0 0
        %1343 = vmatprep.mubr.bf16.mxu0 0
        %1344 = vmatmul.mubr.bf16.gmra.mxu0 %v1303
        %v1345 = vpop.f32.mrf.mxu0
        %v1346 = vadd.f32 0.0, %v1345
        %v1347 = vpop.f32.mrf.mxu0
        %v1348 = vpop.f32.mrf.mxu0
        %v1349 = vadd.f32 0.0, %v1348
        %v1350 = vpop.f32.mrf.mxu0
        %1351 = vmatprep.mubr.bf16.mxu0 0
        %1352 = vmatmul.mubr.bf16.gmra.mxu0 %v1306
        %v1353 = vpop.f32.mrf.mxu0
        %v1354 = vadd.f32 0.0, %v1353
        %v1355 = vpop.f32.mrf.mxu0
        %v1356 = vpop.f32.mrf.mxu0
        %v1357 = vadd.f32 0.0, %v1356
        %v1358 = vpop.f32.mrf.mxu0
        %1359 = vdwg.mxu0
        %1360 = vst.msk [vmem:[#allocation2 + $0x40] sm:$0xff] %vm958, %v1346
        %1361 = vst.msk [vmem:[#allocation2 + $0x48] sm:$0xff] %vm958, %v1349
        %1362 = vst.msk [vmem:[#allocation2 + $0x50] sm:$0xff] %vm958, %v1354
        %1363 = vst.msk [vmem:[#allocation2 + $0x58] sm:$0xff] %vm958, %v1357
        %v1364 = vpack.c.bf16 %v818, %v818
        %v1365 = vpack.c.bf16 %v916, %v915
        %v1366 = vpack.c.bf16 %v918, %v917
        %1367 = vrot.lane.b32.xlu0 %v952, 104
        %v1368 = vpop.permute.xlu0 %1367
        %1369 = vrot.lane.b32.xlu0 %v953, 104
        %v1370 = vpop.permute.xlu0 %1369
        %1371 = vrot.lane.b32.xlu0 %v954, 104
        %v1372 = vpop.permute.xlu0 %1371
        %1373 = vrot.lane.b32.xlu0 %v955, 104
        %v1374 = vpop.permute.xlu0 %1373
        %v1380 = vsel %vm958, %v1365, 0
        %v1383 = vsel %vm958, %v1366, 0
        %1385 = vmatprep.subr.bf16.mxu0 0
        %1386 = vmatpush1.bf16.msra.mxu0 0
        %1387 = vmatprep.subr.bf16.mxu0 0
        %1388 = vmatpush1.bf16.msra.mxu0 0
        %1389 = vmatprep.subr.bf16.mxu0 0
        %1390 = vmatpush1.bf16.msra.mxu0 0
        %1391 = vmatprep.subr.bf16.mxu0 0
        %1392 = vmatpush1.bf16.msra.mxu0 0
        %1393 = vmatprep.subr.bf16.mxu0 0
        %1394 = vmatpush1.bf16.msra.mxu0 %v1374
        %1395 = vmatprep.subr.bf16.mxu0 0
        %1396 = vmatpush1.bf16.msra.mxu0 %v1372
        %1397 = vmatprep.subr.bf16.mxu0 0
        %1398 = vmatpush1.bf16.msra.mxu0 %v1370
        %1399 = vmatprep.subr.bf16.mxu0 0
        %1400 = vmatpush1.bf16.msra.mxu0 %v1368
        %1401 = vmatprep.subr.bf16.mxu0 0
        %1402 = vmatpush2.bf16.msra.mxu0 0
        %1403 = vmatprep.subr.bf16.mxu0 0
        %1404 = vmatpush2.bf16.msra.mxu0 0
        %1405 = vmatprep.subr.bf16.mxu0 0
        %1406 = vmatpush2.bf16.msra.mxu0 0
        %1407 = vmatprep.subr.bf16.mxu0 0
        %1408 = vmatpush2.bf16.msra.mxu0 0
        %1409 = vmatprep.subr.bf16.mxu0 0
        %1410 = vmatpush2.bf16.msra.mxu0 0
        %1411 = vmatprep.subr.bf16.mxu0 0
        %1412 = vmatpush2.bf16.msra.mxu0 0
        %1413 = vmatprep.subr.bf16.mxu0 0
        %1414 = vmatpush2.bf16.msra.mxu0 0
        %1415 = vmatprep.subr.bf16.mxu0 0
        %1416 = vmatpush2.bf16.msra.mxu0 0
        %1417 = vmatprep.mubr.bf16.mxu0 0
        %1418 = vmatmul.mubr.bf16.gmra.mxu0 %v1380
        %v1419 = vpop.f32.mrf.mxu0
        %v1420 = vadd.f32 0.0, %v1419
        %v1421 = vpop.f32.mrf.mxu0
        %v1422 = vpop.f32.mrf.mxu0
        %v1423 = vadd.f32 0.0, %v1422
        %v1424 = vpop.f32.mrf.mxu0
        %1425 = vmatprep.mubr.bf16.mxu0 0
        %1426 = vmatmul.mubr.bf16.gmra.mxu0 %v1383
        %v1427 = vpop.f32.mrf.mxu0
        %v1428 = vadd.f32 0.0, %v1427
        %v1429 = vpop.f32.mrf.mxu0
        %v1430 = vpop.f32.mrf.mxu0
        %v1431 = vadd.f32 0.0, %v1430
        %v1432 = vpop.f32.mrf.mxu0
        %1433 = vdwg.mxu0
        %v1434 = vmul.f32 %v1420, 0.25
        %v1435 = vmul.f32 %v1423, 0.25
        %v1436 = vmul.f32 %v1428, 0.25
        %v1437 = vmul.f32 %v1431, 0.25
        %v1438 = vpack.c.bf16 %v1435, %v1434
        %v1439 = vpack.c.bf16 %v1437, %v1436
        %v1441 = vsel %vm1020, %v1438, 0
        %v1444 = vsel %vm1020, %v1439, 0
        %v1447 = vsel %vm1027, %v1364, 0
        %1449 = vmatprep.subr.bf16.mxu0 0
        %1450 = vmatpush1.bf16.msra.mxu0 0
        %1451 = vmatprep.subr.bf16.mxu0 0
        %1452 = vmatpush1.bf16.msra.mxu0 0
        %1453 = vmatprep.subr.bf16.mxu0 0
        %1454 = vmatpush1.bf16.msra.mxu0 0
        %1455 = vmatprep.subr.bf16.mxu0 0
        %1456 = vmatpush1.bf16.msra.mxu0 0
        %1457 = vmatprep.subr.bf16.mxu0 0
        %1458 = vmatpush1.bf16.msra.mxu0 0
        %1459 = vmatprep.subr.bf16.mxu0 0
        %1460 = vmatpush1.bf16.msra.mxu0 0
        %1461 = vmatprep.subr.bf16.mxu0 0
        %1462 = vmatpush1.bf16.msra.mxu0 0
        %1463 = vmatprep.subr.bf16.mxu0 0
        %1464 = vmatpush1.bf16.msra.mxu0 %v1447
        %1465 = vmatprep.subr.bf16.mxu0 0
        %1466 = vmatpush2.bf16.msra.mxu0 0
        %1467 = vmatprep.subr.bf16.mxu0 0
        %1468 = vmatpush2.bf16.msra.mxu0 0
        %1469 = vmatprep.subr.bf16.mxu0 0
        %1470 = vmatpush2.bf16.msra.mxu0 0
        %1471 = vmatprep.subr.bf16.mxu0 0
        %1472 = vmatpush2.bf16.msra.mxu0 0
        %1473 = vmatprep.subr.bf16.mxu0 0
        %1474 = vmatpush2.bf16.msra.mxu0 0
        %1475 = vmatprep.subr.bf16.mxu0 0
        %1476 = vmatpush2.bf16.msra.mxu0 0
        %1477 = vmatprep.subr.bf16.mxu0 0
        %1478 = vmatpush2.bf16.msra.mxu0 0
        %1479 = vmatprep.subr.bf16.mxu0 0
        %1480 = vmatpush2.bf16.msra.mxu0 0
        %1481 = vmatprep.mubr.bf16.mxu0 0
        %1482 = vmatmul.mubr.bf16.gmra.mxu0 %v1441
        %v1483 = vpop.f32.mrf.mxu0
        %v1484 = vadd.f32 0.0, %v1483
        %v1485 = vpop.f32.mrf.mxu0
        %v1486 = vpop.f32.mrf.mxu0
        %v1487 = vadd.f32 0.0, %v1486
        %v1488 = vpop.f32.mrf.mxu0
        %1489 = vmatprep.mubr.bf16.mxu0 0
        %1490 = vmatmul.mubr.bf16.gmra.mxu0 %v1444
        %v1491 = vpop.f32.mrf.mxu0
        %v1492 = vadd.f32 0.0, %v1491
        %v1493 = vpop.f32.mrf.mxu0
        %v1494 = vpop.f32.mrf.mxu0
        %v1495 = vadd.f32 0.0, %v1494
        %v1496 = vpop.f32.mrf.mxu0
        %1497 = vdwg.mxu0
        %1498 = vst.msk [vmem:[#allocation2 + $0x60] sm:$0xff] %vm958, %v1484
        %1499 = vst.msk [vmem:[#allocation2 + $0x68] sm:$0xff] %vm958, %v1487
        %1500 = vst.msk [vmem:[#allocation2 + $0x70] sm:$0xff] %vm958, %v1492
        %1501 = vst.msk [vmem:[#allocation2 + $0x78] sm:$0xff] %vm958, %v1495
        %v1502 = vpack.c.bf16 %v944, %v943
        %v1503 = vpack.c.bf16 %v946, %v945
        %v1504 = vpack.c.bf16 %v948, %v947
        %v1505 = vpack.c.bf16 %v950, %v949
        %1508 = vrot.lane.b32.xlu0 %v956, 64
        %v1509 = vpop.permute.xlu0 %1508
        %1510 = vrot.lane.b32.xlu0 %v957, 64
        %v1511 = vpop.permute.xlu0 %1510
        %v1513 = vsel %vm958, %v1509, 0
        %v1516 = vsel %vm958, %v1511, 0
        %1518 = vmatprep.subr.bf16.mxu0 0
        %1519 = vmatpush1.bf16.msra.mxu0 0
        %1520 = vmatprep.subr.bf16.mxu0 0
        %1521 = vmatpush1.bf16.msra.mxu0 0
        %1522 = vmatprep.subr.bf16.mxu0 0
        %1523 = vmatpush1.bf16.msra.mxu0 0
        %1524 = vmatprep.subr.bf16.mxu0 0
        %1525 = vmatpush1.bf16.msra.mxu0 0
        %1526 = vmatprep.subr.bf16.mxu0 0
        %1527 = vmatpush1.bf16.msra.mxu0 %v1505
        %1528 = vmatprep.subr.bf16.mxu0 0
        %1529 = vmatpush1.bf16.msra.mxu0 %v1504
        %1530 = vmatprep.subr.bf16.mxu0 0
        %1531 = vmatpush1.bf16.msra.mxu0 %v1503
        %1532 = vmatprep.subr.bf16.mxu0 0
        %1533 = vmatpush1.bf16.msra.mxu0 %v1502
        %1534 = vmatprep.subr.bf16.mxu0 0
        %1535 = vmatpush2.bf16.msra.mxu0 0
        %1536 = vmatprep.subr.bf16.mxu0 0
        %1537 = vmatpush2.bf16.msra.mxu0 0
        %1538 = vmatprep.subr.bf16.mxu0 0
        %1539 = vmatpush2.bf16.msra.mxu0 0
        %1540 = vmatprep.subr.bf16.mxu0 0
        %1541 = vmatpush2.bf16.msra.mxu0 0
        %1542 = vmatprep.subr.bf16.mxu0 0
        %1543 = vmatpush2.bf16.msra.mxu0 0
        %1544 = vmatprep.subr.bf16.mxu0 0
        %1545 = vmatpush2.bf16.msra.mxu0 0
        %1546 = vmatprep.subr.bf16.mxu0 0
        %1547 = vmatpush2.bf16.msra.mxu0 0
        %1548 = vmatprep.subr.bf16.mxu0 0
        %1549 = vmatpush2.bf16.msra.mxu0 0
        %1550 = vmatprep.mubr.bf16.mxu0 0
        %1551 = vmatmul.mubr.bf16.gmra.mxu0 %v1513
        %v1552 = vpop.f32.mrf.mxu0
        %v1553 = vadd.f32 0.0, %v1552
        %v1554 = vpop.f32.mrf.mxu0
        %v1555 = vpop.f32.mrf.mxu0
        %v1556 = vadd.f32 0.0, %v1555
        %v1557 = vpop.f32.mrf.mxu0
        %1558 = vmatprep.mubr.bf16.mxu0 0
        %1559 = vmatmul.mubr.bf16.gmra.mxu0 %v1516
        %v1560 = vpop.f32.mrf.mxu0
        %v1561 = vadd.f32 0.0, %v1560
        %v1562 = vpop.f32.mrf.mxu0
        %v1563 = vpop.f32.mrf.mxu0
        %v1564 = vadd.f32 0.0, %v1563
        %v1565 = vpop.f32.mrf.mxu0
        %1566 = vdwg.mxu0
        %v1567 = vmul.f32 %v1553, 0.25
        %v1568 = vmul.f32 %v1556, 0.25
        %v1569 = vmul.f32 %v1561, 0.25
        %v1570 = vmul.f32 %v1564, 0.25
        %v1571 = vpack.c.bf16 %v1568, %v1567
        %v1572 = vpack.c.bf16 %v1570, %v1569
        %1574 = vrot.lane.b32.xlu0 %v951, 64
        %v1575 = vpop.permute.xlu0 %1574
        %v1577 = vsel %vm1020, %v1571, 0
        %v1580 = vsel %vm1020, %v1572, 0
        %v1583 = vsel %vm1027, %v1575, 0
        %1585 = vmatprep.subr.bf16.mxu0 0
        %1586 = vmatpush1.bf16.msra.mxu0 0
        %1587 = vmatprep.subr.bf16.mxu0 0
        %1588 = vmatpush1.bf16.msra.mxu0 0
        %1589 = vmatprep.subr.bf16.mxu0 0
        %1590 = vmatpush1.bf16.msra.mxu0 0
        %1591 = vmatprep.subr.bf16.mxu0 0
        %1592 = vmatpush1.bf16.msra.mxu0 0
        %1593 = vmatprep.subr.bf16.mxu0 0
        %1594 = vmatpush1.bf16.msra.mxu0 0
        %1595 = vmatprep.subr.bf16.mxu0 0
        %1596 = vmatpush1.bf16.msra.mxu0 0
        %1597 = vmatprep.subr.bf16.mxu0 0
        %1598 = vmatpush1.bf16.msra.mxu0 0
        %1599 = vmatprep.subr.bf16.mxu0 0
        %1600 = vmatpush1.bf16.msra.mxu0 %v1583
        %1601 = vmatprep.subr.bf16.mxu0 0
        %1602 = vmatpush2.bf16.msra.mxu0 0
        %1603 = vmatprep.subr.bf16.mxu0 0
        %1604 = vmatpush2.bf16.msra.mxu0 0
        %1605 = vmatprep.subr.bf16.mxu0 0
        %1606 = vmatpush2.bf16.msra.mxu0 0
        %1607 = vmatprep.subr.bf16.mxu0 0
        %1608 = vmatpush2.bf16.msra.mxu0 0
        %1609 = vmatprep.subr.bf16.mxu0 0
        %1610 = vmatpush2.bf16.msra.mxu0 0
        %1611 = vmatprep.subr.bf16.mxu0 0
        %1612 = vmatpush2.bf16.msra.mxu0 0
        %1613 = vmatprep.subr.bf16.mxu0 0
        %1614 = vmatpush2.bf16.msra.mxu0 0
        %1615 = vmatprep.subr.bf16.mxu0 0
        %1616 = vmatpush2.bf16.msra.mxu0 0
        %1617 = vmatprep.mubr.bf16.mxu0 0
        %1618 = vmatmul.mubr.bf16.gmra.mxu0 %v1577
        %v1619 = vpop.f32.mrf.mxu0
        %v1620 = vadd.f32 0.0, %v1619
        %v1621 = vpop.f32.mrf.mxu0
        %v1622 = vpop.f32.mrf.mxu0
        %v1623 = vadd.f32 0.0, %v1622
        %v1624 = vpop.f32.mrf.mxu0
        %1625 = vmatprep.mubr.bf16.mxu0 0
        %1626 = vmatmul.mubr.bf16.gmra.mxu0 %v1580
        %v1627 = vpop.f32.mrf.mxu0
        %v1628 = vadd.f32 0.0, %v1627
        %v1629 = vpop.f32.mrf.mxu0
        %v1630 = vpop.f32.mrf.mxu0
        %v1631 = vadd.f32 0.0, %v1630
        %v1632 = vpop.f32.mrf.mxu0
        %1633 = vdwg.mxu0
        %1638 = vrot.lane.b32.xlu0 %v1620, 64
        %v1639 = vpop.permute.xlu0 %1638
        %1640 = vrot.lane.b32.xlu0 %v1623, 64
        %v1641 = vpop.permute.xlu0 %1640
        %1642 = vrot.lane.b32.xlu0 %v1628, 64
        %v1643 = vpop.permute.xlu0 %1642
        %1644 = vrot.lane.b32.xlu0 %v1631, 64
        %v1645 = vpop.permute.xlu0 %1644
        %vm1650 = vcmask 1048064
        %1651 = vst.msk [vmem:[#allocation2] sm:$0xff] %vm1650, %v1639
        %1652 = vst.msk [vmem:[#allocation2 + $0x8] sm:$0xff] %vm1650, %v1641
        %1653 = vst.msk [vmem:[#allocation2 + $0x10] sm:$0xff] %vm1650, %v1643
        %1654 = vst.msk [vmem:[#allocation2 + $0x18] sm:$0xff] %vm1650, %v1645
        %1657 = vrot.lane.b32.xlu0 %v1085, 64
        %v1658 = vpop.permute.xlu0 %1657
        %1659 = vrot.lane.b32.xlu0 %v1086, 64
        %v1660 = vpop.permute.xlu0 %1659
        %1665 = vrot.lane.b32.xlu0 %v1502, 120
        %v1666 = vpop.permute.xlu0 %1665
        %1667 = vrot.lane.b32.xlu0 %v1503, 120
        %v1668 = vpop.permute.xlu0 %1667
        %1669 = vrot.lane.b32.xlu0 %v1504, 120
        %v1670 = vpop.permute.xlu0 %1669
        %1671 = vrot.lane.b32.xlu0 %v1505, 120
        %v1672 = vpop.permute.xlu0 %1671
        %v1678 = vsel %vm958, %v1658, 0
        %v1681 = vsel %vm958, %v1660, 0
        %1683 = vmatprep.subr.bf16.mxu0 0
        %1684 = vmatpush1.bf16.msra.mxu0 0
        %1685 = vmatprep.subr.bf16.mxu0 0
        %1686 = vmatpush1.bf16.msra.mxu0 0
        %1687 = vmatprep.subr.bf16.mxu0 0
        %1688 = vmatpush1.bf16.msra.mxu0 0
        %1689 = vmatprep.subr.bf16.mxu0 0
        %1690 = vmatpush1.bf16.msra.mxu0 0
        %1691 = vmatprep.subr.bf16.mxu0 0
        %1692 = vmatpush1.bf16.msra.mxu0 %v1672
        %1693 = vmatprep.subr.bf16.mxu0 0
        %1694 = vmatpush1.bf16.msra.mxu0 %v1670
        %1695 = vmatprep.subr.bf16.mxu0 0
        %1696 = vmatpush1.bf16.msra.mxu0 %v1668
        %1697 = vmatprep.subr.bf16.mxu0 0
        %1698 = vmatpush1.bf16.msra.mxu0 %v1666
        %1699 = vmatprep.subr.bf16.mxu0 0
        %1700 = vmatpush2.bf16.msra.mxu0 0
        %1701 = vmatprep.subr.bf16.mxu0 0
        %1702 = vmatpush2.bf16.msra.mxu0 0
        %1703 = vmatprep.subr.bf16.mxu0 0
        %1704 = vmatpush2.bf16.msra.mxu0 0
        %1705 = vmatprep.subr.bf16.mxu0 0
        %1706 = vmatpush2.bf16.msra.mxu0 0
        %1707 = vmatprep.subr.bf16.mxu0 0
        %1708 = vmatpush2.bf16.msra.mxu0 0
        %1709 = vmatprep.subr.bf16.mxu0 0
        %1710 = vmatpush2.bf16.msra.mxu0 0
        %1711 = vmatprep.subr.bf16.mxu0 0
        %1712 = vmatpush2.bf16.msra.mxu0 0
        %1713 = vmatprep.subr.bf16.mxu0 0
        %1714 = vmatpush2.bf16.msra.mxu0 0
        %1715 = vmatprep.mubr.bf16.mxu0 0
        %1716 = vmatmul.mubr.bf16.gmra.mxu0 %v1678
        %v1717 = vpop.f32.mrf.mxu0
        %v1718 = vadd.f32 0.0, %v1717
        %v1719 = vpop.f32.mrf.mxu0
        %v1720 = vpop.f32.mrf.mxu0
        %v1721 = vadd.f32 0.0, %v1720
        %v1722 = vpop.f32.mrf.mxu0
        %1723 = vmatprep.mubr.bf16.mxu0 0
        %1724 = vmatmul.mubr.bf16.gmra.mxu0 %v1681
        %v1725 = vpop.f32.mrf.mxu0
        %v1726 = vadd.f32 0.0, %v1725
        %v1727 = vpop.f32.mrf.mxu0
        %v1728 = vpop.f32.mrf.mxu0
        %v1729 = vadd.f32 0.0, %v1728
        %v1730 = vpop.f32.mrf.mxu0
        %1731 = vdwg.mxu0
        %v1732 = vmul.f32 %v1718, 0.25
        %v1733 = vmul.f32 %v1721, 0.25
        %v1734 = vmul.f32 %v1726, 0.25
        %v1735 = vmul.f32 %v1729, 0.25
        %v1736 = vpack.c.bf16 %v1733, %v1732
        %v1737 = vpack.c.bf16 %v1735, %v1734
        %1739 = vrot.lane.b32.xlu0 %v1084, 64
        %v1740 = vpop.permute.xlu0 %1739
        %v1742 = vsel %vm1020, %v1736, 0
        %v1745 = vsel %vm1020, %v1737, 0
        %v1748 = vsel %vm1027, %v1740, 0
        %1750 = vmatprep.subr.bf16.mxu0 0
        %1751 = vmatpush1.bf16.msra.mxu0 0
        %1752 = vmatprep.subr.bf16.mxu0 0
        %1753 = vmatpush1.bf16.msra.mxu0 0
        %1754 = vmatprep.subr.bf16.mxu0 0
        %1755 = vmatpush1.bf16.msra.mxu0 0
        %1756 = vmatprep.subr.bf16.mxu0 0
        %1757 = vmatpush1.bf16.msra.mxu0 0
        %1758 = vmatprep.subr.bf16.mxu0 0
        %1759 = vmatpush1.bf16.msra.mxu0 0
        %1760 = vmatprep.subr.bf16.mxu0 0
        %1761 = vmatpush1.bf16.msra.mxu0 0
        %1762 = vmatprep.subr.bf16.mxu0 0
        %1763 = vmatpush1.bf16.msra.mxu0 0
        %1764 = vmatprep.subr.bf16.mxu0 0
        %1765 = vmatpush1.bf16.msra.mxu0 %v1748
        %1766 = vmatprep.subr.bf16.mxu0 0
        %1767 = vmatpush2.bf16.msra.mxu0 0
        %1768 = vmatprep.subr.bf16.mxu0 0
        %1769 = vmatpush2.bf16.msra.mxu0 0
        %1770 = vmatprep.subr.bf16.mxu0 0
        %1771 = vmatpush2.bf16.msra.mxu0 0
        %1772 = vmatprep.subr.bf16.mxu0 0
        %1773 = vmatpush2.bf16.msra.mxu0 0
        %1774 = vmatprep.subr.bf16.mxu0 0
        %1775 = vmatpush2.bf16.msra.mxu0 0
        %1776 = vmatprep.subr.bf16.mxu0 0
        %1777 = vmatpush2.bf16.msra.mxu0 0
        %1778 = vmatprep.subr.bf16.mxu0 0
        %1779 = vmatpush2.bf16.msra.mxu0 0
        %1780 = vmatprep.subr.bf16.mxu0 0
        %1781 = vmatpush2.bf16.msra.mxu0 0
        %1782 = vmatprep.mubr.bf16.mxu0 0
        %1783 = vmatmul.mubr.bf16.gmra.mxu0 %v1742
        %v1784 = vpop.f32.mrf.mxu0
        %v1785 = vadd.f32 0.0, %v1784
        %v1786 = vpop.f32.mrf.mxu0
        %v1787 = vpop.f32.mrf.mxu0
        %v1788 = vadd.f32 0.0, %v1787
        %v1789 = vpop.f32.mrf.mxu0
        %1790 = vmatprep.mubr.bf16.mxu0 0
        %1791 = vmatmul.mubr.bf16.gmra.mxu0 %v1745
        %v1792 = vpop.f32.mrf.mxu0
        %v1793 = vadd.f32 0.0, %v1792
        %v1794 = vpop.f32.mrf.mxu0
        %v1795 = vpop.f32.mrf.mxu0
        %v1796 = vadd.f32 0.0, %v1795
        %v1797 = vpop.f32.mrf.mxu0
        %1798 = vdwg.mxu0
        %1803 = vrot.lane.b32.xlu0 %v1785, 64
        %v1804 = vpop.permute.xlu0 %1803
        %1805 = vrot.lane.b32.xlu0 %v1788, 64
        %v1806 = vpop.permute.xlu0 %1805
        %1807 = vrot.lane.b32.xlu0 %v1793, 64
        %v1808 = vpop.permute.xlu0 %1807
        %1809 = vrot.lane.b32.xlu0 %v1796, 64
        %v1810 = vpop.permute.xlu0 %1809
        %1815 = vst.msk [vmem:[#allocation2 + $0x20] sm:$0xff] %vm1650, %v1804
        %1816 = vst.msk [vmem:[#allocation2 + $0x28] sm:$0xff] %vm1650, %v1806
        %1817 = vst.msk [vmem:[#allocation2 + $0x30] sm:$0xff] %vm1650, %v1808
        %1818 = vst.msk [vmem:[#allocation2 + $0x38] sm:$0xff] %vm1650, %v1810
        %1821 = vrot.lane.b32.xlu0 %v1227, 64
        %v1822 = vpop.permute.xlu0 %1821
        %1823 = vrot.lane.b32.xlu0 %v1228, 64
        %v1824 = vpop.permute.xlu0 %1823
        %1825 = vrot.lane.b32.xlu0 %v1502, 112
        %v1826 = vpop.permute.xlu0 %1825
        %1827 = vrot.lane.b32.xlu0 %v1503, 112
        %v1828 = vpop.permute.xlu0 %1827
        %1829 = vrot.lane.b32.xlu0 %v1504, 112
        %v1830 = vpop.permute.xlu0 %1829
        %1831 = vrot.lane.b32.xlu0 %v1505, 112
        %v1832 = vpop.permute.xlu0 %1831
        %v1838 = vsel %vm958, %v1822, 0
        %v1841 = vsel %vm958, %v1824, 0
        %1843 = vmatprep.subr.bf16.mxu0 0
        %1844 = vmatpush1.bf16.msra.mxu0 0
        %1845 = vmatprep.subr.bf16.mxu0 0
        %1846 = vmatpush1.bf16.msra.mxu0 0
        %1847 = vmatprep.subr.bf16.mxu0 0
        %1848 = vmatpush1.bf16.msra.mxu0 0
        %1849 = vmatprep.subr.bf16.mxu0 0
        %1850 = vmatpush1.bf16.msra.mxu0 0
        %1851 = vmatprep.subr.bf16.mxu0 0
        %1852 = vmatpush1.bf16.msra.mxu0 %v1832
        %1853 = vmatprep.subr.bf16.mxu0 0
        %1854 = vmatpush1.bf16.msra.mxu0 %v1830
        %1855 = vmatprep.subr.bf16.mxu0 0
        %1856 = vmatpush1.bf16.msra.mxu0 %v1828
        %1857 = vmatprep.subr.bf16.mxu0 0
        %1858 = vmatpush1.bf16.msra.mxu0 %v1826
        %1859 = vmatprep.subr.bf16.mxu0 0
        %1860 = vmatpush2.bf16.msra.mxu0 0
        %1861 = vmatprep.subr.bf16.mxu0 0
        %1862 = vmatpush2.bf16.msra.mxu0 0
        %1863 = vmatprep.subr.bf16.mxu0 0
        %1864 = vmatpush2.bf16.msra.mxu0 0
        %1865 = vmatprep.subr.bf16.mxu0 0
        %1866 = vmatpush2.bf16.msra.mxu0 0
        %1867 = vmatprep.subr.bf16.mxu0 0
        %1868 = vmatpush2.bf16.msra.mxu0 0
        %1869 = vmatprep.subr.bf16.mxu0 0
        %1870 = vmatpush2.bf16.msra.mxu0 0
        %1871 = vmatprep.subr.bf16.mxu0 0
        %1872 = vmatpush2.bf16.msra.mxu0 0
        %1873 = vmatprep.subr.bf16.mxu0 0
        %1874 = vmatpush2.bf16.msra.mxu0 0
        %1875 = vmatprep.mubr.bf16.mxu0 0
        %1876 = vmatmul.mubr.bf16.gmra.mxu0 %v1838
        %v1877 = vpop.f32.mrf.mxu0
        %v1878 = vadd.f32 0.0, %v1877
        %v1879 = vpop.f32.mrf.mxu0
        %v1880 = vpop.f32.mrf.mxu0
        %v1881 = vadd.f32 0.0, %v1880
        %v1882 = vpop.f32.mrf.mxu0
        %1883 = vmatprep.mubr.bf16.mxu0 0
        %1884 = vmatmul.mubr.bf16.gmra.mxu0 %v1841
        %v1885 = vpop.f32.mrf.mxu0
        %v1886 = vadd.f32 0.0, %v1885
        %v1887 = vpop.f32.mrf.mxu0
        %v1888 = vpop.f32.mrf.mxu0
        %v1889 = vadd.f32 0.0, %v1888
        %v1890 = vpop.f32.mrf.mxu0
        %1891 = vdwg.mxu0
        %v1892 = vmul.f32 %v1878, 0.25
        %v1893 = vmul.f32 %v1881, 0.25
        %v1894 = vmul.f32 %v1886, 0.25
        %v1895 = vmul.f32 %v1889, 0.25
        %v1896 = vpack.c.bf16 %v1893, %v1892
        %v1897 = vpack.c.bf16 %v1895, %v1894
        %1899 = vrot.lane.b32.xlu0 %v1226, 64
        %v1900 = vpop.permute.xlu0 %1899
        %v1902 = vsel %vm1020, %v1896, 0
        %v1905 = vsel %vm1020, %v1897, 0
        %v1908 = vsel %vm1027, %v1900, 0
        %1910 = vmatprep.subr.bf16.mxu0 0
        %1911 = vmatpush1.bf16.msra.mxu0 0
        %1912 = vmatprep.subr.bf16.mxu0 0
        %1913 = vmatpush1.bf16.msra.mxu0 0
        %1914 = vmatprep.subr.bf16.mxu0 0
        %1915 = vmatpush1.bf16.msra.mxu0 0
        %1916 = vmatprep.subr.bf16.mxu0 0
        %1917 = vmatpush1.bf16.msra.mxu0 0
        %1918 = vmatprep.subr.bf16.mxu0 0
        %1919 = vmatpush1.bf16.msra.mxu0 0
        %1920 = vmatprep.subr.bf16.mxu0 0
        %1921 = vmatpush1.bf16.msra.mxu0 0
        %1922 = vmatprep.subr.bf16.mxu0 0
        %1923 = vmatpush1.bf16.msra.mxu0 0
        %1924 = vmatprep.subr.bf16.mxu0 0
        %1925 = vmatpush1.bf16.msra.mxu0 %v1908
        %1926 = vmatprep.subr.bf16.mxu0 0
        %1927 = vmatpush2.bf16.msra.mxu0 0
        %1928 = vmatprep.subr.bf16.mxu0 0
        %1929 = vmatpush2.bf16.msra.mxu0 0
        %1930 = vmatprep.subr.bf16.mxu0 0
        %1931 = vmatpush2.bf16.msra.mxu0 0
        %1932 = vmatprep.subr.bf16.mxu0 0
        %1933 = vmatpush2.bf16.msra.mxu0 0
        %1934 = vmatprep.subr.bf16.mxu0 0
        %1935 = vmatpush2.bf16.msra.mxu0 0
        %1936 = vmatprep.subr.bf16.mxu0 0
        %1937 = vmatpush2.bf16.msra.mxu0 0
        %1938 = vmatprep.subr.bf16.mxu0 0
        %1939 = vmatpush2.bf16.msra.mxu0 0
        %1940 = vmatprep.subr.bf16.mxu0 0
        %1941 = vmatpush2.bf16.msra.mxu0 0
        %1942 = vmatprep.mubr.bf16.mxu0 0
        %1943 = vmatmul.mubr.bf16.gmra.mxu0 %v1902
        %v1944 = vpop.f32.mrf.mxu0
        %v1945 = vadd.f32 0.0, %v1944
        %v1946 = vpop.f32.mrf.mxu0
        %v1947 = vpop.f32.mrf.mxu0
        %v1948 = vadd.f32 0.0, %v1947
        %v1949 = vpop.f32.mrf.mxu0
        %1950 = vmatprep.mubr.bf16.mxu0 0
        %1951 = vmatmul.mubr.bf16.gmra.mxu0 %v1905
        %v1952 = vpop.f32.mrf.mxu0
        %v1953 = vadd.f32 0.0, %v1952
        %v1954 = vpop.f32.mrf.mxu0
        %v1955 = vpop.f32.mrf.mxu0
        %v1956 = vadd.f32 0.0, %v1955
        %v1957 = vpop.f32.mrf.mxu0
        %1958 = vdwg.mxu0
        %1963 = vrot.lane.b32.xlu0 %v1945, 64
        %v1964 = vpop.permute.xlu0 %1963
        %1965 = vrot.lane.b32.xlu0 %v1948, 64
        %v1966 = vpop.permute.xlu0 %1965
        %1967 = vrot.lane.b32.xlu0 %v1953, 64
        %v1968 = vpop.permute.xlu0 %1967
        %1969 = vrot.lane.b32.xlu0 %v1956, 64
        %v1970 = vpop.permute.xlu0 %1969
        %1975 = vst.msk [vmem:[#allocation2 + $0x40] sm:$0xff] %vm1650, %v1964
        %1976 = vst.msk [vmem:[#allocation2 + $0x48] sm:$0xff] %vm1650, %v1966
        %1977 = vst.msk [vmem:[#allocation2 + $0x50] sm:$0xff] %vm1650, %v1968
        %1978 = vst.msk [vmem:[#allocation2 + $0x58] sm:$0xff] %vm1650, %v1970
        %1981 = vrot.lane.b32.xlu0 %v1365, 64
        %v1982 = vpop.permute.xlu0 %1981
        %1983 = vrot.lane.b32.xlu0 %v1366, 64
        %v1984 = vpop.permute.xlu0 %1983
        %1985 = vrot.lane.b32.xlu0 %v1502, 104
        %v1986 = vpop.permute.xlu0 %1985
        %1987 = vrot.lane.b32.xlu0 %v1503, 104
        %v1988 = vpop.permute.xlu0 %1987
        %1989 = vrot.lane.b32.xlu0 %v1504, 104
        %v1990 = vpop.permute.xlu0 %1989
        %1991 = vrot.lane.b32.xlu0 %v1505, 104
        %v1992 = vpop.permute.xlu0 %1991
        %v1998 = vsel %vm958, %v1982, 0
        %v2001 = vsel %vm958, %v1984, 0
        %2003 = vmatprep.subr.bf16.mxu0 0
        %2004 = vmatpush1.bf16.msra.mxu0 0
        %2005 = vmatprep.subr.bf16.mxu0 0
        %2006 = vmatpush1.bf16.msra.mxu0 0
        %2007 = vmatprep.subr.bf16.mxu0 0
        %2008 = vmatpush1.bf16.msra.mxu0 0
        %2009 = vmatprep.subr.bf16.mxu0 0
        %2010 = vmatpush1.bf16.msra.mxu0 0
        %2011 = vmatprep.subr.bf16.mxu0 0
        %2012 = vmatpush1.bf16.msra.mxu0 %v1992
        %2013 = vmatprep.subr.bf16.mxu0 0
        %2014 = vmatpush1.bf16.msra.mxu0 %v1990
        %2015 = vmatprep.subr.bf16.mxu0 0
        %2016 = vmatpush1.bf16.msra.mxu0 %v1988
        %2017 = vmatprep.subr.bf16.mxu0 0
        %2018 = vmatpush1.bf16.msra.mxu0 %v1986
        %2019 = vmatprep.subr.bf16.mxu0 0
        %2020 = vmatpush2.bf16.msra.mxu0 0
        %2021 = vmatprep.subr.bf16.mxu0 0
        %2022 = vmatpush2.bf16.msra.mxu0 0
        %2023 = vmatprep.subr.bf16.mxu0 0
        %2024 = vmatpush2.bf16.msra.mxu0 0
        %2025 = vmatprep.subr.bf16.mxu0 0
        %2026 = vmatpush2.bf16.msra.mxu0 0
        %2027 = vmatprep.subr.bf16.mxu0 0
        %2028 = vmatpush2.bf16.msra.mxu0 0
        %2029 = vmatprep.subr.bf16.mxu0 0
        %2030 = vmatpush2.bf16.msra.mxu0 0
        %2031 = vmatprep.subr.bf16.mxu0 0
        %2032 = vmatpush2.bf16.msra.mxu0 0
        %2033 = vmatprep.subr.bf16.mxu0 0
        %2034 = vmatpush2.bf16.msra.mxu0 0
        %2035 = vmatprep.mubr.bf16.mxu0 0
        %2036 = vmatmul.mubr.bf16.gmra.mxu0 %v1998
        %v2037 = vpop.f32.mrf.mxu0
        %v2038 = vadd.f32 0.0, %v2037
        %v2039 = vpop.f32.mrf.mxu0
        %v2040 = vpop.f32.mrf.mxu0
        %v2041 = vadd.f32 0.0, %v2040
        %v2042 = vpop.f32.mrf.mxu0
        %2043 = vmatprep.mubr.bf16.mxu0 0
        %2044 = vmatmul.mubr.bf16.gmra.mxu0 %v2001
        %v2045 = vpop.f32.mrf.mxu0
        %v2046 = vadd.f32 0.0, %v2045
        %v2047 = vpop.f32.mrf.mxu0
        %v2048 = vpop.f32.mrf.mxu0
        %v2049 = vadd.f32 0.0, %v2048
        %v2050 = vpop.f32.mrf.mxu0
        %2051 = vdwg.mxu0
        %v2052 = vmul.f32 %v2038, 0.25
        %v2053 = vmul.f32 %v2041, 0.25
        %v2054 = vmul.f32 %v2046, 0.25
        %v2055 = vmul.f32 %v2049, 0.25
        %v2056 = vpack.c.bf16 %v2053, %v2052
        %v2057 = vpack.c.bf16 %v2055, %v2054
        %2059 = vrot.lane.b32.xlu0 %v1364, 64
        %v2060 = vpop.permute.xlu0 %2059
        %v2062 = vsel %vm1020, %v2056, 0
        %v2065 = vsel %vm1020, %v2057, 0
        %v2068 = vsel %vm1027, %v2060, 0
        %2070 = vmatprep.subr.bf16.mxu0 0
        %2071 = vmatpush1.bf16.msra.mxu0 0
        %2072 = vmatprep.subr.bf16.mxu0 0
        %2073 = vmatpush1.bf16.msra.mxu0 0
        %2074 = vmatprep.subr.bf16.mxu0 0
        %2075 = vmatpush1.bf16.msra.mxu0 0
        %2076 = vmatprep.subr.bf16.mxu0 0
        %2077 = vmatpush1.bf16.msra.mxu0 0
        %2078 = vmatprep.subr.bf16.mxu0 0
        %2079 = vmatpush1.bf16.msra.mxu0 0
        %2080 = vmatprep.subr.bf16.mxu0 0
        %2081 = vmatpush1.bf16.msra.mxu0 0
        %2082 = vmatprep.subr.bf16.mxu0 0
        %2083 = vmatpush1.bf16.msra.mxu0 0
        %2084 = vmatprep.subr.bf16.mxu0 0
        %2085 = vmatpush1.bf16.msra.mxu0 %v2068
        %2086 = vmatprep.subr.bf16.mxu0 0
        %2087 = vmatpush2.bf16.msra.mxu0 0
        %2088 = vmatprep.subr.bf16.mxu0 0
        %2089 = vmatpush2.bf16.msra.mxu0 0
        %2090 = vmatprep.subr.bf16.mxu0 0
        %2091 = vmatpush2.bf16.msra.mxu0 0
        %2092 = vmatprep.subr.bf16.mxu0 0
        %2093 = vmatpush2.bf16.msra.mxu0 0
        %2094 = vmatprep.subr.bf16.mxu0 0
        %2095 = vmatpush2.bf16.msra.mxu0 0
        %2096 = vmatprep.subr.bf16.mxu0 0
        %2097 = vmatpush2.bf16.msra.mxu0 0
        %2098 = vmatprep.subr.bf16.mxu0 0
        %2099 = vmatpush2.bf16.msra.mxu0 0
        %2100 = vmatprep.subr.bf16.mxu0 0
        %2101 = vmatpush2.bf16.msra.mxu0 0
        %2102 = vmatprep.mubr.bf16.mxu0 0
        %2103 = vmatmul.mubr.bf16.gmra.mxu0 %v2062
        %v2104 = vpop.f32.mrf.mxu0
        %v2105 = vadd.f32 0.0, %v2104
        %v2106 = vpop.f32.mrf.mxu0
        %v2107 = vpop.f32.mrf.mxu0
        %v2108 = vadd.f32 0.0, %v2107
        %v2109 = vpop.f32.mrf.mxu0
        %2110 = vmatprep.mubr.bf16.mxu0 0
        %2111 = vmatmul.mubr.bf16.gmra.mxu0 %v2065
        %v2112 = vpop.f32.mrf.mxu0
        %v2113 = vadd.f32 0.0, %v2112
        %v2114 = vpop.f32.mrf.mxu0
        %v2115 = vpop.f32.mrf.mxu0
        %v2116 = vadd.f32 0.0, %v2115
        %v2117 = vpop.f32.mrf.mxu0
        %2118 = vdwg.mxu0
        %2123 = vrot.lane.b32.xlu0 %v2105, 64
        %v2124 = vpop.permute.xlu0 %2123
        %2125 = vrot.lane.b32.xlu0 %v2108, 64
        %v2126 = vpop.permute.xlu0 %2125
        %2127 = vrot.lane.b32.xlu0 %v2113, 64
        %v2128 = vpop.permute.xlu0 %2127
        %2129 = vrot.lane.b32.xlu0 %v2116, 64
        %v2130 = vpop.permute.xlu0 %2129
        %2135 = vst.msk [vmem:[#allocation2 + $0x60] sm:$0xff] %vm1650, %v2124
        %2136 = vst.msk [vmem:[#allocation2 + $0x68] sm:$0xff] %vm1650, %v2126
        %2137 = vst.msk [vmem:[#allocation2 + $0x70] sm:$0xff] %vm1650, %v2128
        %2138 = vst.msk [vmem:[#allocation2 + $0x78] sm:$0xff] %vm1650, %v2130
        %v2139 = vld [vmem:[#allocation2] sm:$0xff]
        %v2140 = vld [vmem:[#allocation2 + $0x8] sm:$0xff]
        %v2141 = vld [vmem:[#allocation2 + $0x10] sm:$0xff]
        %v2142 = vld [vmem:[#allocation2 + $0x18] sm:$0xff]
        %v2143 = vld [vmem:[#allocation2 + $0x20] sm:$0xff]
        %v2144 = vld [vmem:[#allocation2 + $0x28] sm:$0xff]
        %v2145 = vld [vmem:[#allocation2 + $0x30] sm:$0xff]
        %v2146 = vld [vmem:[#allocation2 + $0x38] sm:$0xff]
        %v2147 = vld [vmem:[#allocation2 + $0x40] sm:$0xff]
        %v2148 = vld [vmem:[#allocation2 + $0x48] sm:$0xff]
        %v2149 = vld [vmem:[#allocation2 + $0x50] sm:$0xff]
        %v2150 = vld [vmem:[#allocation2 + $0x58] sm:$0xff]
        %v2151 = vld [vmem:[#allocation2 + $0x60] sm:$0xff]
        %v2152 = vld [vmem:[#allocation2 + $0x68] sm:$0xff]
        %v2153 = vld [vmem:[#allocation2 + $0x70] sm:$0xff]
        %v2154 = vld [vmem:[#allocation2 + $0x78] sm:$0xff]
        %v2155 = vmax.f32 %v2139, 0.0
        %v2156 = vmax.f32 %v2140, 0.0
        %v2157 = vmax.f32 %v2141, 0.0
        %v2158 = vmax.f32 %v2142, 0.0
        %v2159 = vmax.f32 %v2143, 0.0
        %v2160 = vmax.f32 %v2144, 0.0
        %v2161 = vmax.f32 %v2145, 0.0
        %v2162 = vmax.f32 %v2146, 0.0
        %v2163 = vmax.f32 %v2147, 0.0
        %v2164 = vmax.f32 %v2148, 0.0
        %v2165 = vmax.f32 %v2149, 0.0
        %v2166 = vmax.f32 %v2150, 0.0
        %v2167 = vmax.f32 %v2151, 0.0
        %v2168 = vmax.f32 %v2152, 0.0
        %v2169 = vmax.f32 %v2153, 0.0
        %v2170 = vmax.f32 %v2154, 0.0
        %v2171 = vmin.f32 %v2155, 8.0
        %v2172 = vmin.f32 %v2156, 8.0
        %v2173 = vmin.f32 %v2157, 8.0
        %v2174 = vmin.f32 %v2158, 8.0
        %v2175 = vmin.f32 %v2159, 8.0
        %v2176 = vmin.f32 %v2160, 8.0
        %v2177 = vmin.f32 %v2161, 8.0
        %v2178 = vmin.f32 %v2162, 8.0
        %v2179 = vmin.f32 %v2163, 8.0
        %v2180 = vmin.f32 %v2164, 8.0
        %v2181 = vmin.f32 %v2165, 8.0
        %v2182 = vmin.f32 %v2166, 8.0
        %v2183 = vmin.f32 %v2167, 8.0
        %v2184 = vmin.f32 %v2168, 8.0
        %v2185 = vmin.f32 %v2169, 8.0
        %v2186 = vmin.f32 %v2170, 8.0
        %v2187 = vadd.f32 %v2171, 0.5
        %v2188 = vadd.f32 %v2172, 0.5
        %v2189 = vadd.f32 %v2173, 0.5
        %v2190 = vadd.f32 %v2174, 0.5
        %v2191 = vadd.f32 %v2175, 0.5
        %v2192 = vadd.f32 %v2176, 0.5
        %v2193 = vadd.f32 %v2177, 0.5
        %v2194 = vadd.f32 %v2178, 0.5
        %v2195 = vadd.f32 %v2179, 0.5
        %v2196 = vadd.f32 %v2180, 0.5
        %v2197 = vadd.f32 %v2181, 0.5
        %v2198 = vadd.f32 %v2182, 0.5
        %v2199 = vadd.f32 %v2183, 0.5
        %v2200 = vadd.f32 %v2184, 0.5
        %v2201 = vadd.f32 %v2185, 0.5
        %v2202 = vadd.f32 %v2186, 0.5
        %v2203 = vfloor.f32 %v2187
        %v2204 = vfloor.f32 %v2188
        %v2205 = vfloor.f32 %v2189
        %v2206 = vfloor.f32 %v2190
        %v2207 = vfloor.f32 %v2191
        %v2208 = vfloor.f32 %v2192
        %v2209 = vfloor.f32 %v2193
        %v2210 = vfloor.f32 %v2194
        %v2211 = vfloor.f32 %v2195
        %v2212 = vfloor.f32 %v2196
        %v2213 = vfloor.f32 %v2197
        %v2214 = vfloor.f32 %v2198
        %v2215 = vfloor.f32 %v2199
        %v2216 = vfloor.f32 %v2200
        %v2217 = vfloor.f32 %v2201
        %v2218 = vfloor.f32 %v2202
        %v2219 = vmul.f32 %v2203, 0.125
        %v2220 = vmul.f32 %v2204, 0.125
        %v2221 = vmul.f32 %v2205, 0.125
        %v2222 = vmul.f32 %v2206, 0.125
        %v2223 = vmul.f32 %v2207, 0.125
        %v2224 = vmul.f32 %v2208, 0.125
        %v2225 = vmul.f32 %v2209, 0.125
        %v2226 = vmul.f32 %v2210, 0.125
        %v2227 = vmul.f32 %v2211, 0.125
        %v2228 = vmul.f32 %v2212, 0.125
        %v2229 = vmul.f32 %v2213, 0.125
        %v2230 = vmul.f32 %v2214, 0.125
        %v2231 = vmul.f32 %v2215, 0.125
        %v2232 = vmul.f32 %v2216, 0.125
        %v2233 = vmul.f32 %v2217, 0.125
        %v2234 = vmul.f32 %v2218, 0.125
        %v2235 = vpack.c.bf16 %v2220, %v2219
        %v2236 = vpack.c.bf16 %v2222, %v2221
        %v2237 = vpack.c.bf16 %v2224, %v2223
        %v2238 = vpack.c.bf16 %v2226, %v2225
        %v2239 = vpack.c.bf16 %v2228, %v2227
        %v2240 = vpack.c.bf16 %v2230, %v2229
        %v2241 = vpack.c.bf16 %v2232, %v2231
        %v2242 = vpack.c.bf16 %v2234, %v2233
        %v2243 = vld [vmem:[%s3] sm:$0xf]
        %v2244 = vld [vmem:[%s3 + $0x4] sm:$0xf]
        %v2245 = vld [vmem:[%s3 + $0x8] sm:$0xf]
        %v2246 = vld [vmem:[%s3 + $0xc] sm:$0xf]
        %v2247 = vld [vmem:[%s4] sm:$0xff]
        %v2248 = vld [vmem:[%s4 + $0x8] sm:$0xff]
        %v2249 = vld [vmem:[%s4 + $0x10] sm:$0xff]
        %v2250 = vld [vmem:[%s4 + $0x18] sm:$0xff]
        %2252 = vset.pattern.permute.xlu0 0
        %2253 = vperm.xlu0 %2252, %v2247
        %v2254 = vpop.permute.xlu0 %2253
        %2257 = vset.pattern.permute.xlu0 0
        %2258 = vperm.xlu0 %2257, %v2248
        %v2259 = vpop.permute.xlu0 %2258
        %2262 = vset.pattern.permute.xlu0 0
        %2263 = vperm.xlu0 %2262, %v2249
        %v2264 = vpop.permute.xlu0 %2263
        %2267 = vset.pattern.permute.xlu0 0
        %2268 = vperm.xlu0 %2267, %v2250
        %v2269 = vpop.permute.xlu0 %2268
        %v2275 = vunpack.c.l.b16 %v2243
        %v2276 = vunpack.c.l.b16 %v2244
        %v2277 = vunpack.c.l.b16 %v2245
        %v2278 = vunpack.c.l.b16 %v2246
        %v2279 = vpack.c.b16 %v2276, %v2275
        %v2280 = vpack.c.b16 %v2278, %v2277
        %2283 = vmatprep.subr.bf16.mxu0 0
        %2284 = vmatpush1.bf16.msra.mxu0 %v2242
        %2285 = vmatprep.subr.bf16.mxu0 0
        %2286 = vmatpush1.bf16.msra.mxu0 %v2241
        %2287 = vmatprep.subr.bf16.mxu0 0
        %2288 = vmatpush1.bf16.msra.mxu0 %v2240
        %2289 = vmatprep.subr.bf16.mxu0 0
        %2290 = vmatpush1.bf16.msra.mxu0 %v2239
        %2291 = vmatprep.subr.bf16.mxu0 0
        %2292 = vmatpush1.bf16.msra.mxu0 %v2238
        %2293 = vmatprep.subr.bf16.mxu0 0
        %2294 = vmatpush1.bf16.msra.mxu0 %v2237
        %2295 = vmatprep.subr.bf16.mxu0 0
        %2296 = vmatpush1.bf16.msra.mxu0 %v2236
        %2297 = vmatprep.subr.bf16.mxu0 0
        %2298 = vmatpush1.bf16.msra.mxu0 %v2235
        %2299 = vmatprep.subr.bf16.mxu0 0
        %2300 = vmatpush2.bf16.msra.mxu0 0
        %2301 = vmatprep.subr.bf16.mxu0 0
        %2302 = vmatpush2.bf16.msra.mxu0 0
        %2303 = vmatprep.subr.bf16.mxu0 0
        %2304 = vmatpush2.bf16.msra.mxu0 0
        %2305 = vmatprep.subr.bf16.mxu0 0
        %2306 = vmatpush2.bf16.msra.mxu0 0
        %2307 = vmatprep.subr.bf16.mxu0 0
        %2308 = vmatpush2.bf16.msra.mxu0 0
        %2309 = vmatprep.subr.bf16.mxu0 0
        %2310 = vmatpush2.bf16.msra.mxu0 0
        %2311 = vmatprep.subr.bf16.mxu0 0
        %2312 = vmatpush2.bf16.msra.mxu0 0
        %2313 = vmatprep.subr.bf16.mxu0 0
        %2314 = vmatpush2.bf16.msra.mxu0 0
        %2315 = vmatprep.mubr.bf16.mxu0 0
        %2316 = vmatmul.mubr.bf16.gmra.mxu0 %v2279
        %v2317 = vpop.f32.mrf.mxu0
        %v2318 = vadd.f32 %v2254, %v2317
        %v2319 = vpop.f32.mrf.mxu0
        %v2320 = vpop.f32.mrf.mxu0
        %v2321 = vadd.f32 %v2259, %v2320
        %v2322 = vpop.f32.mrf.mxu0
        %2323 = vmatprep.mubr.bf16.mxu0 0
        %2324 = vmatmul.mubr.bf16.gmra.mxu0 %v2280
        %v2325 = vpop.f32.mrf.mxu0
        %v2326 = vadd.f32 %v2264, %v2325
        %v2327 = vpop.f32.mrf.mxu0
        %v2328 = vpop.f32.mrf.mxu0
        %v2329 = vadd.f32 %v2269, %v2328
        %v2330 = vpop.f32.mrf.mxu0
        %2331 = vdwg.mxu0
        %v2332 = vadd.f32 %v379, %v2318
        %v2333 = vadd.f32 %v380, %v2321
        %v2334 = vadd.f32 %v381, %v2326
        %v2335 = vadd.f32 %v382, %v2329
        %v2336 = vmax.f32 %v2332, 0.0
        %v2337 = vmax.f32 %v2333, 0.0
        %v2338 = vmax.f32 %v2334, 0.0
        %v2339 = vmax.f32 %v2335, 0.0
        %v2340 = vmin.f32 %v2336, 8.0
        %v2341 = vmin.f32 %v2337, 8.0
        %v2342 = vmin.f32 %v2338, 8.0
        %v2343 = vmin.f32 %v2339, 8.0
        %v2344 = vadd.f32 %v2340, 0.5
        %v2345 = vadd.f32 %v2341, 0.5
        %v2346 = vadd.f32 %v2342, 0.5
        %v2347 = vadd.f32 %v2343, 0.5
        %v2348 = vfloor.f32 %v2344
        %v2349 = vfloor.f32 %v2345
        %v2350 = vfloor.f32 %v2346
        %v2351 = vfloor.f32 %v2347
        %v2352 = vmul.f32 %v2348, 0.125
        %v2353 = vmul.f32 %v2349, 0.125
        %v2354 = vmul.f32 %v2350, 0.125
        %v2355 = vmul.f32 %v2351, 0.125
        %v2356 = vpack.c.bf16 %v2353, %v2352
        %v2357 = vpack.c.bf16 %v2355, %v2354
        %v2358 = vld [vmem:[%s5] sm:$0xf]
        %v2359 = vld [vmem:[%s5 + $0x4] sm:$0xf]
        %v2360 = vld [vmem:[%s5 + $0x8] sm:$0xf]
        %v2361 = vld [vmem:[%s5 + $0xc] sm:$0xf]
        %v2362 = vld [vmem:[%s5 + $0x10] sm:$0xf]
        %v2363 = vld [vmem:[%s5 + $0x14] sm:$0xf]
        %v2364 = vld [vmem:[%s5 + $0x18] sm:$0xf]
        %v2365 = vld [vmem:[%s5 + $0x1c] sm:$0xf]
        %v2366 = vld [vmem:[%s5 + $0x20] sm:$0xf]
        %v2367 = vld [vmem:[%s5 + $0x24] sm:$0xf]
        %v2368 = vld [vmem:[%s5 + $0x28] sm:$0xf]
        %v2369 = vld [vmem:[%s5 + $0x2c] sm:$0xf]
        %v2370 = vld [vmem:[%s5 + $0x30] sm:$0xf]
        %v2371 = vld [vmem:[%s5 + $0x34] sm:$0xf]
        %v2372 = vld [vmem:[%s5 + $0x38] sm:$0xf]
        %v2373 = vld [vmem:[%s5 + $0x3c] sm:$0xf]
        %v2374 = vld [vmem:[%s6] sm:$0xff]
        %v2375 = vld [vmem:[%s6 + $0x8] sm:$0xff]
        %v2376 = vld [vmem:[%s6 + $0x10] sm:$0xff]
        %v2377 = vld [vmem:[%s6 + $0x18] sm:$0xff]
        %v2378 = vld [vmem:[%s6 + $0x20] sm:$0xff]
        %v2379 = vld [vmem:[%s6 + $0x28] sm:$0xff]
        %v2380 = vld [vmem:[%s6 + $0x30] sm:$0xff]
        %v2381 = vld [vmem:[%s6 + $0x38] sm:$0xff]
        %v2382 = vld [vmem:[%s6 + $0x40] sm:$0xff]
        %v2383 = vld [vmem:[%s6 + $0x48] sm:$0xff]
        %v2384 = vld [vmem:[%s6 + $0x50] sm:$0xff]
        %v2385 = vld [vmem:[%s6 + $0x58] sm:$0xff]
        %v2386 = vld [vmem:[%s6 + $0x60] sm:$0xff]
        %v2387 = vld [vmem:[%s6 + $0x68] sm:$0xff]
        %v2388 = vld [vmem:[%s6 + $0x70] sm:$0xff]
        %v2389 = vld [vmem:[%s6 + $0x78] sm:$0xff]
        %2391 = vset.pattern.permute.xlu0 0
        %2392 = vperm.xlu0 %2391, %v2374
        %v2393 = vpop.permute.xlu0 %2392
        %2396 = vset.pattern.permute.xlu0 0
        %2397 = vperm.xlu0 %2396, %v2375
        %v2398 = vpop.permute.xlu0 %2397
        %2401 = vset.pattern.permute.xlu0 0
        %2402 = vperm.xlu0 %2401, %v2376
        %v2403 = vpop.permute.xlu0 %2402
        %2406 = vset.pattern.permute.xlu0 0
        %2407 = vperm.xlu0 %2406, %v2377
        %v2408 = vpop.permute.xlu0 %2407
        %2411 = vset.pattern.permute.xlu0 0
        %2412 = vperm.xlu0 %2411, %v2378
        %v2413 = vpop.permute.xlu0 %2412
        %2416 = vset.pattern.permute.xlu0 0
        %2417 = vperm.xlu0 %2416, %v2379
        %v2418 = vpop.permute.xlu0 %2417
        %2421 = vset.pattern.permute.xlu0 0
        %2422 = vperm.xlu0 %2421, %v2380
        %v2423 = vpop.permute.xlu0 %2422
        %2426 = vset.pattern.permute.xlu0 0
        %2427 = vperm.xlu0 %2426, %v2381
        %v2428 = vpop.permute.xlu0 %2427
        %2431 = vset.pattern.permute.xlu0 0
        %2432 = vperm.xlu0 %2431, %v2382
        %v2433 = vpop.permute.xlu0 %2432
        %2436 = vset.pattern.permute.xlu0 0
        %2437 = vperm.xlu0 %2436, %v2383
        %v2438 = vpop.permute.xlu0 %2437
        %2441 = vset.pattern.permute.xlu0 0
        %2442 = vperm.xlu0 %2441, %v2384
        %v2443 = vpop.permute.xlu0 %2442
        %2446 = vset.pattern.permute.xlu0 0
        %2447 = vperm.xlu0 %2446, %v2385
        %v2448 = vpop.permute.xlu0 %2447
        %2451 = vset.pattern.permute.xlu0 0
        %2452 = vperm.xlu0 %2451, %v2386
        %v2453 = vpop.permute.xlu0 %2452
        %2456 = vset.pattern.permute.xlu0 0
        %2457 = vperm.xlu0 %2456, %v2387
        %v2458 = vpop.permute.xlu0 %2457
        %2461 = vset.pattern.permute.xlu0 0
        %2462 = vperm.xlu0 %2461, %v2388
        %v2463 = vpop.permute.xlu0 %2462
        %2466 = vset.pattern.permute.xlu0 0
        %2467 = vperm.xlu0 %2466, %v2389
        %v2468 = vpop.permute.xlu0 %2467
        %v2486 = vunpack.c.l.b16 %v2358
        %v2487 = vunpack.c.l.b16 %v2359
        %v2488 = vunpack.c.l.b16 %v2360
        %v2489 = vunpack.c.l.b16 %v2361
        %v2490 = vunpack.c.l.b16 %v2362
        %v2491 = vunpack.c.l.b16 %v2363
        %v2492 = vunpack.c.l.b16 %v2364
        %v2493 = vunpack.c.l.b16 %v2365
        %v2494 = vunpack.c.l.b16 %v2366
        %v2495 = vunpack.c.l.b16 %v2367
        %v2496 = vunpack.c.l.b16 %v2368
        %v2497 = vunpack.c.l.b16 %v2369
        %v2498 = vunpack.c.l.b16 %v2370
        %v2499 = vunpack.c.l.b16 %v2371
        %v2500 = vunpack.c.l.b16 %v2372
        %v2501 = vunpack.c.l.b16 %v2373
        %v2502 = vpack.c.b16 %v2487, %v2486
        %v2503 = vpack.c.b16 %v2489, %v2488
        %v2504 = vpack.c.b16 %v2491, %v2490
        %v2505 = vpack.c.b16 %v2493, %v2492
        %v2506 = vpack.c.b16 %v2495, %v2494
        %v2507 = vpack.c.b16 %v2497, %v2496
        %v2508 = vpack.c.b16 %v2499, %v2498
        %v2509 = vpack.c.b16 %v2501, %v2500
        %v2511 = vsel %vm633, %v2502, 0
        %v2514 = vsel %vm633, %v2503, 0
        %v2517 = vsel %vm633, %v2504, 0
        %v2520 = vsel %vm633, %v2505, 0
        %v2523 = vsel %vm633, %v2506, 0
        %v2526 = vsel %vm633, %v2507, 0
        %v2529 = vsel %vm633, %v2508, 0
        %v2532 = vsel %vm633, %v2509, 0
        %2534 = vmatprep.subr.bf16.mxu0 0
        %2535 = vmatpush1.bf16.msra.mxu0 0
        %2536 = vmatprep.subr.bf16.mxu0 0
        %2537 = vmatpush1.bf16.msra.mxu0 0
        %2538 = vmatprep.subr.bf16.mxu0 0
        %2539 = vmatpush1.bf16.msra.mxu0 0
        %2540 = vmatprep.subr.bf16.mxu0 0
        %2541 = vmatpush1.bf16.msra.mxu0 0
        %2542 = vmatprep.subr.bf16.mxu0 0
        %2543 = vmatpush1.bf16.msra.mxu0 0
        %2544 = vmatprep.subr.bf16.mxu0 0
        %2545 = vmatpush1.bf16.msra.mxu0 0
        %2546 = vmatprep.subr.bf16.mxu0 0
        %2547 = vmatpush1.bf16.msra.mxu0 %v2357
        %2548 = vmatprep.subr.bf16.mxu0 0
        %2549 = vmatpush1.bf16.msra.mxu0 %v2356
        %2550 = vmatprep.subr.bf16.mxu0 0
        %2551 = vmatpush2.bf16.msra.mxu0 0
        %2552 = vmatprep.subr.bf16.mxu0 0
        %2553 = vmatpush2.bf16.msra.mxu0 0
        %2554 = vmatprep.subr.bf16.mxu0 0
        %2555 = vmatpush2.bf16.msra.mxu0 0
        %2556 = vmatprep.subr.bf16.mxu0 0
        %2557 = vmatpush2.bf16.msra.mxu0 0
        %2558 = vmatprep.subr.bf16.mxu0 0
        %2559 = vmatpush2.bf16.msra.mxu0 0
        %2560 = vmatprep.subr.bf16.mxu0 0
        %2561 = vmatpush2.bf16.msra.mxu0 0
        %2562 = vmatprep.subr.bf16.mxu0 0
        %2563 = vmatpush2.bf16.msra.mxu0 0
        %2564 = vmatprep.subr.bf16.mxu0 0
        %2565 = vmatpush2.bf16.msra.mxu0 0
        %2566 = vmatprep.mubr.bf16.mxu0 0
        %2567 = vmatmul.mubr.bf16.gmra.mxu0 %v2511
        %v2568 = vpop.f32.mrf.mxu0
        %v2569 = vadd.f32 %v2393, %v2568
        %v2570 = vpop.f32.mrf.mxu0
        %v2571 = vpop.f32.mrf.mxu0
        %v2572 = vadd.f32 %v2398, %v2571
        %v2573 = vpop.f32.mrf.mxu0
        %2574 = vmatprep.mubr.bf16.mxu0 0
        %2575 = vmatmul.mubr.bf16.gmra.mxu0 %v2514
        %v2576 = vpop.f32.mrf.mxu0
        %v2577 = vadd.f32 %v2403, %v2576
        %v2578 = vpop.f32.mrf.mxu0
        %v2579 = vpop.f32.mrf.mxu0
        %v2580 = vadd.f32 %v2408, %v2579
        %v2581 = vpop.f32.mrf.mxu0
        %2582 = vmatprep.mubr.bf16.mxu0 0
        %2583 = vmatmul.mubr.bf16.gmra.mxu0 %v2517
        %v2584 = vpop.f32.mrf.mxu0
        %v2585 = vadd.f32 %v2413, %v2584
        %v2586 = vpop.f32.mrf.mxu0
        %v2587 = vpop.f32.mrf.mxu0
        %v2588 = vadd.f32 %v2418, %v2587
        %v2589 = vpop.f32.mrf.mxu0
        %2590 = vmatprep.mubr.bf16.mxu0 0
        %2591 = vmatmul.mubr.bf16.gmra.mxu0 %v2520
        %v2592 = vpop.f32.mrf.mxu0
        %v2593 = vadd.f32 %v2423, %v2592
        %v2594 = vpop.f32.mrf.mxu0
        %v2595 = vpop.f32.mrf.mxu0
        %v2596 = vadd.f32 %v2428, %v2595
        %v2597 = vpop.f32.mrf.mxu0
        %2598 = vmatprep.mubr.bf16.mxu0 0
        %2599 = vmatmul.mubr.bf16.gmra.mxu0 %v2523
        %v2600 = vpop.f32.mrf.mxu0
        %v2601 = vadd.f32 %v2433, %v2600
        %v2602 = vpop.f32.mrf.mxu0
        %v2603 = vpop.f32.mrf.mxu0
        %v2604 = vadd.f32 %v2438, %v2603
        %v2605 = vpop.f32.mrf.mxu0
        %2606 = vmatprep.mubr.bf16.mxu0 0
        %2607 = vmatmul.mubr.bf16.gmra.mxu0 %v2526
        %v2608 = vpop.f32.mrf.mxu0
        %v2609 = vadd.f32 %v2443, %v2608
        %v2610 = vpop.f32.mrf.mxu0
        %v2611 = vpop.f32.mrf.mxu0
        %v2612 = vadd.f32 %v2448, %v2611
        %v2613 = vpop.f32.mrf.mxu0
        %2614 = vmatprep.mubr.bf16.mxu0 0
        %2615 = vmatmul.mubr.bf16.gmra.mxu0 %v2529
        %v2616 = vpop.f32.mrf.mxu0
        %v2617 = vadd.f32 %v2453, %v2616
        %v2618 = vpop.f32.mrf.mxu0
        %v2619 = vpop.f32.mrf.mxu0
        %v2620 = vadd.f32 %v2458, %v2619
        %v2621 = vpop.f32.mrf.mxu0
        %2622 = vmatprep.mubr.bf16.mxu0 0
        %2623 = vmatmul.mubr.bf16.gmra.mxu0 %v2532
        %v2624 = vpop.f32.mrf.mxu0
        %v2625 = vadd.f32 %v2463, %v2624
        %v2626 = vpop.f32.mrf.mxu0
        %v2627 = vpop.f32.mrf.mxu0
        %v2628 = vadd.f32 %v2468, %v2627
        %v2629 = vpop.f32.mrf.mxu0
        %2630 = vdwg.mxu0
        %v2631 = vmax.f32 %v2569, 0.0
        %v2632 = vmax.f32 %v2572, 0.0
        %v2633 = vmax.f32 %v2577, 0.0
        %v2634 = vmax.f32 %v2580, 0.0
        %v2635 = vmax.f32 %v2585, 0.0
        %v2636 = vmax.f32 %v2588, 0.0
        %v2637 = vmax.f32 %v2593, 0.0
        %v2638 = vmax.f32 %v2596, 0.0
        %v2639 = vmax.f32 %v2601, 0.0
        %v2640 = vmax.f32 %v2604, 0.0
        %v2641 = vmax.f32 %v2609, 0.0
        %v2642 = vmax.f32 %v2612, 0.0
        %v2643 = vmax.f32 %v2617, 0.0
        %v2644 = vmax.f32 %v2620, 0.0
        %v2645 = vmax.f32 %v2625, 0.0
        %v2646 = vmax.f32 %v2628, 0.0
        %v2647 = vmin.f32 %v2631, 8.0
        %v2648 = vmin.f32 %v2632, 8.0
        %v2649 = vmin.f32 %v2633, 8.0
        %v2650 = vmin.f32 %v2634, 8.0
        %v2651 = vmin.f32 %v2635, 8.0
        %v2652 = vmin.f32 %v2636, 8.0
        %v2653 = vmin.f32 %v2637, 8.0
        %v2654 = vmin.f32 %v2638, 8.0
        %v2655 = vmin.f32 %v2639, 8.0
        %v2656 = vmin.f32 %v2640, 8.0
        %v2657 = vmin.f32 %v2641, 8.0
        %v2658 = vmin.f32 %v2642, 8.0
        %v2659 = vmin.f32 %v2643, 8.0
        %v2660 = vmin.f32 %v2644, 8.0
        %v2661 = vmin.f32 %v2645, 8.0
        %v2662 = vmin.f32 %v2646, 8.0
        %v2663 = vadd.f32 %v2647, 0.5
        %v2664 = vadd.f32 %v2648, 0.5
        %v2665 = vadd.f32 %v2649, 0.5
        %v2666 = vadd.f32 %v2650, 0.5
        %v2667 = vadd.f32 %v2651, 0.5
        %v2668 = vadd.f32 %v2652, 0.5
        %v2669 = vadd.f32 %v2653, 0.5
        %v2670 = vadd.f32 %v2654, 0.5
        %v2671 = vadd.f32 %v2655, 0.5
        %v2672 = vadd.f32 %v2656, 0.5
        %v2673 = vadd.f32 %v2657, 0.5
        %v2674 = vadd.f32 %v2658, 0.5
        %v2675 = vadd.f32 %v2659, 0.5
        %v2676 = vadd.f32 %v2660, 0.5
        %v2677 = vadd.f32 %v2661, 0.5
        %v2678 = vadd.f32 %v2662, 0.5
        %v2679 = vfloor.f32 %v2663
        %v2680 = vfloor.f32 %v2664
        %v2681 = vfloor.f32 %v2665
        %v2682 = vfloor.f32 %v2666
        %v2683 = vfloor.f32 %v2667
        %v2684 = vfloor.f32 %v2668
        %v2685 = vfloor.f32 %v2669
        %v2686 = vfloor.f32 %v2670
        %v2687 = vfloor.f32 %v2671
        %v2688 = vfloor.f32 %v2672
        %v2689 = vfloor.f32 %v2673
        %v2690 = vfloor.f32 %v2674
        %v2691 = vfloor.f32 %v2675
        %v2692 = vfloor.f32 %v2676
        %v2693 = vfloor.f32 %v2677
        %v2694 = vfloor.f32 %v2678
        %v2695 = vmul.f32 %v2679, 0.125
        %v2696 = vmul.f32 %v2680, 0.125
        %v2697 = vmul.f32 %v2681, 0.125
        %v2698 = vmul.f32 %v2682, 0.125
        %v2699 = vmul.f32 %v2683, 0.125
        %v2700 = vmul.f32 %v2684, 0.125
        %v2701 = vmul.f32 %v2685, 0.125
        %v2702 = vmul.f32 %v2686, 0.125
        %v2703 = vmul.f32 %v2687, 0.125
        %v2704 = vmul.f32 %v2688, 0.125
        %v2705 = vmul.f32 %v2689, 0.125
        %v2706 = vmul.f32 %v2690, 0.125
        %v2707 = vmul.f32 %v2691, 0.125
        %v2708 = vmul.f32 %v2692, 0.125
        %v2709 = vmul.f32 %v2693, 0.125
        %v2710 = vmul.f32 %v2694, 0.125
        %v2711 = vpack.c.bf16 %v2696, %v2695
        %v2712 = vpack.c.bf16 %v2698, %v2697
        %v2713 = vpack.c.bf16 %v2700, %v2699
        %v2714 = vpack.c.bf16 %v2702, %v2701
        %v2715 = vpack.c.bf16 %v2704, %v2703
        %v2716 = vpack.c.bf16 %v2706, %v2705
        %v2717 = vpack.c.bf16 %v2708, %v2707
        %v2718 = vpack.c.bf16 %v2710, %v2709
        %v2719 = vld [vmem:[%s7] sm:$0xf]
        %v2720 = vld [vmem:[%s7 + $0x4] sm:$0xf]
        %v2721 = vld [vmem:[%s7 + $0x8] sm:$0xf]
        %v2722 = vld [vmem:[%s7 + $0xc] sm:$0xf]
        %v2723 = vld [vmem:[%s8] sm:$0xff]
        %v2724 = vld [vmem:[%s8 + $0x8] sm:$0xff]
        %v2725 = vld [vmem:[%s8 + $0x10] sm:$0xff]
        %v2726 = vld [vmem:[%s8 + $0x18] sm:$0xff]
        %2728 = vset.pattern.permute.xlu0 0
        %2729 = vperm.xlu0 %2728, %v2723
        %v2730 = vpop.permute.xlu0 %2729
        %2733 = vset.pattern.permute.xlu0 0
        %2734 = vperm.xlu0 %2733, %v2724
        %v2735 = vpop.permute.xlu0 %2734
        %2738 = vset.pattern.permute.xlu0 0
        %2739 = vperm.xlu0 %2738, %v2725
        %v2740 = vpop.permute.xlu0 %2739
        %2743 = vset.pattern.permute.xlu0 0
        %2744 = vperm.xlu0 %2743, %v2726
        %v2745 = vpop.permute.xlu0 %2744
        %v2751 = vunpack.c.l.b16 %v2719
        %v2752 = vunpack.c.l.b16 %v2720
        %v2753 = vunpack.c.l.b16 %v2721
        %v2754 = vunpack.c.l.b16 %v2722
        %v2755 = vpack.c.b16 %v2752, %v2751
        %v2756 = vpack.c.b16 %v2754, %v2753
        %2759 = vmatprep.subr.bf16.mxu0 0
        %2760 = vmatpush1.bf16.msra.mxu0 %v2718
        %2761 = vmatprep.subr.bf16.mxu0 0
        %2762 = vmatpush1.bf16.msra.mxu0 %v2717
        %2763 = vmatprep.subr.bf16.mxu0 0
        %2764 = vmatpush1.bf16.msra.mxu0 %v2716
        %2765 = vmatprep.subr.bf16.mxu0 0
        %2766 = vmatpush1.bf16.msra.mxu0 %v2715
        %2767 = vmatprep.subr.bf16.mxu0 0
        %2768 = vmatpush1.bf16.msra.mxu0 %v2714
        %2769 = vmatprep.subr.bf16.mxu0 0
        %2770 = vmatpush1.bf16.msra.mxu0 %v2713
        %2771 = vmatprep.subr.bf16.mxu0 0
        %2772 = vmatpush1.bf16.msra.mxu0 %v2712
        %2773 = vmatprep.subr.bf16.mxu0 0
        %2774 = vmatpush1.bf16.msra.mxu0 %v2711
        %2775 = vmatprep.subr.bf16.mxu0 0
        %2776 = vmatpush2.bf16.msra.mxu0 0
        %2777 = vmatprep.subr.bf16.mxu0 0
        %2778 = vmatpush2.bf16.msra.mxu0 0
        %2779 = vmatprep.subr.bf16.mxu0 0
        %2780 = vmatpush2.bf16.msra.mxu0 0
        %2781 = vmatprep.subr.bf16.mxu0 0
        %2782 = vmatpush2.bf16.msra.mxu0 0
        %2783 = vmatprep.subr.bf16.mxu0 0
        %2784 = vmatpush2.bf16.msra.mxu0 0
        %2785 = vmatprep.subr.bf16.mxu0 0
        %2786 = vmatpush2.bf16.msra.mxu0 0
        %2787 = vmatprep.subr.bf16.mxu0 0
        %2788 = vmatpush2.bf16.msra.mxu0 0
        %2789 = vmatprep.subr.bf16.mxu0 0
        %2790 = vmatpush2.bf16.msra.mxu0 0
        %2791 = vmatprep.mubr.bf16.mxu0 0
        %2792 = vmatmul.mubr.bf16.gmra.mxu0 %v2755
        %v2793 = vpop.f32.mrf.mxu0
        %v2794 = vadd.f32 %v2730, %v2793
        %v2795 = vpop.f32.mrf.mxu0
        %v2796 = vpop.f32.mrf.mxu0
        %v2797 = vadd.f32 %v2735, %v2796
        %v2798 = vpop.f32.mrf.mxu0
        %2799 = vmatprep.mubr.bf16.mxu0 0
        %2800 = vmatmul.mubr.bf16.gmra.mxu0 %v2756
        %v2801 = vpop.f32.mrf.mxu0
        %v2802 = vadd.f32 %v2740, %v2801
        %v2803 = vpop.f32.mrf.mxu0
        %v2804 = vpop.f32.mrf.mxu0
        %v2805 = vadd.f32 %v2745, %v2804
        %v2806 = vpop.f32.mrf.mxu0
        %2807 = vdwg.mxu0
        %v2808 = vadd.f32 %v2332, %v2794
        %v2809 = vadd.f32 %v2333, %v2797
        %v2810 = vadd.f32 %v2334, %v2802
        %v2811 = vadd.f32 %v2335, %v2805
        %2812 = vst [vmem:[%s377] sm:$0xff] %v2808
        %2813 = vst [vmem:[%s377 + $0x8] sm:$0xff] %v2809
        %2814 = vst [vmem:[%s377 + $0x10] sm:$0xff] %v2810
        %2815 = vst [vmem:[%s377 + $0x18] sm:$0xff] %v2811
        %s2816 = sand.u32 %s225, 1
        %s2817 = scalar_lea.sflag [#allocation5], %s2816
        %s2818 = sand.u32 %s225, 1
        %s2819 = smul.addr %s2818, 32
        %s2820 = scalar_lea.vmem [#allocation4], %s2819
        // Predicated region
        $region95: #{_ms_block_lanes.1} parent=89 // pred_check
          %p2821 = pneg %p235
        $region96: #{_ms_block_lanes.1} parent=89 // pred_check_branch
          %2823 = sbr.rel (%p2821) target = $region98
        $region97: #{_ms_block_lanes.1} parent=89 // pred_region
          %s2825 = ssub.s32 512, 512
          %2826 = vsyncadd %s2817, %s2825
          %s2827 = smul.addr %s23, 128
          %s2828 = scalar_lea.hbm %s9, %s2827
          %s2829 = sshll.u32 %s2820, 4
          %s2830 = int_to_ptr.vmem [resolvable:$true] %s2829
          %2835 = dma.vmem_to_hbm [thread:$0]  %s2830, 512, %s2828, %s2817, 128, 256, 8
        $region98: #{_ms_block_lanes.1} parent=89 // pred_fallthru
          _
      $region90: #{_ms_block_lanes.1} parent=5 // pred_fallthru
        _
      %p2836 = scmp.le.s32.totalorder 2, %s18
      // Predicated region
      $region99: #{_ms_block_lanes.1} parent=5 // pred_check
        %p2837 = pneg %p2836
      $region100: #{_ms_block_lanes.1} parent=5 // pred_check_branch
        %2839 = sbr.rel (%p2837) target = $region102
      $region101: #{_ms_block_lanes.1} parent=5 // pred_region
        %s2840 = ssub.s32 %s18, 2
        // Predicated region
        $region103: #{_ms_block_lanes.1} parent=101 // pred_check
          %p2841 = pneg %p241
        $region104: #{_ms_block_lanes.1} parent=101 // pred_check_branch
          %2843 = sbr.rel (%p2841) target = $region106
        $region105: #{_ms_block_lanes.1} parent=101 // pred_region
          %s2844 = sand.u32 %s226, 1
          %s2845 = scalar_lea.sflag [#allocation5], %s2844
          %s2846 = sand.u32 %s226, 1
          %s2847 = smul.addr %s2846, 32
          %s2848 = scalar_lea.vmem [#allocation4], %s2847
          %2849 = dma.done %s2845, 512
        $region106: #{_ms_block_lanes.1} parent=101 // pred_fallthru
          _
      $region102: #{_ms_block_lanes.1} parent=5 // pred_fallthru
        _
    $region6: #{_ms_block_lanes.1} parent=1 // loop_footer
      %s22 = sadd.s32 1, %s18
    $region7: #{_ms_block_lanes.1} parent=1 // loop_footer_branch
      %17 = sbr.rel target = $region3
    $region8: #{_ms_block_lanes.1} parent=1 // loop_exit
      _
    %2850 = vsyncpa [#allocation5], 1
    %s2851 = scalar_lea.sflag [#allocation5], 1
    %2852 = vsyncpa %s2851, 1

</llo_original>
